<compile_context>
chip_gen: v7x
topology: tpu7x:2x2x1
jax: 0.10.0
libtpu: 0.0.40
codegen_flags: <defaults>
</compile_context>

<pallas_src>
import math
import functools

import jax
import jax.numpy as jnp
from jax.experimental import pallas as pl
from jax.experimental.pallas import tpu as pltpu


_PARALLEL = pltpu.CompilerParams(dimension_semantics=("parallel",))
_LN_EPS = 1e-5


# ----------------------------------------------------------------------------
# Helpers
# ----------------------------------------------------------------------------
def _pick_row_block(rows, row_bytes, *, target_bytes=4 << 20,
                    min_multi_tile=256 << 10):
    """Largest multiple-of-8 divisor of `rows` whose tile fits ~target_bytes.
    Prefer >=2 grid steps (v7x megacore) only when tiles stay >= min_multi_tile
    so tiny problems are not fragmented on single-TC chips."""
    if rows % 8 != 0:
        return rows  # full-extent block is always legal
    divs = [d for d in range(8, rows + 1, 8) if rows % d == 0]
    fitting = [d for d in divs if d * row_bytes <= target_bytes] or [8]
    multi = [d for d in fitting
             if rows // d >= 2 and d * row_bytes >= min_multi_tile]
    return max(multi) if multi else max(fitting)


def make_pe_table(max_len: int, d_model: int, dtype=jnp.float32):
    """Sin/cos table identical to PositionalEncoding.__init__ (shape (L, D))."""
    position = jnp.arange(max_len, dtype=jnp.float32)[:, None]
    div_term = jnp.exp(
        jnp.arange(0, d_model, 2, dtype=jnp.float32) * (-math.log(10000.0) / d_model)
    )
    pe = jnp.zeros((max_len, d_model), dtype=jnp.float32)
    pe = pe.at[:, 0::2].set(jnp.sin(position * div_term))
    pe = pe.at[:, 1::2].set(jnp.cos(position * div_term))
    return pe.astype(dtype)


def _row_spec(br, cols):
    return pl.BlockSpec((br, cols), lambda i: (i, 0))


def _const_spec(shape):
    return pl.BlockSpec(shape, lambda i: (0, 0))


# ----------------------------------------------------------------------------
# Kernel bodies
# ----------------------------------------------------------------------------
def _embed_pe_kernel(x_ref, w1_ref, b1_ref, w2_ref, b2_ref, pe_ref, o_ref, *, scale):
    """relu(relu(x@w1+b1)@w2+b2) * scale + pe  (intermediate stays in VMEM)."""
    h = jnp.dot(x_ref[...].astype(jnp.float32), w1_ref[...],
                preferred_element_type=jnp.float32)
    h = jnp.maximum(h + b1_ref[...], 0.0)
    y = jnp.dot(h, w2_ref[...], preferred_element_type=jnp.float32)
    y = jnp.maximum(y + b2_ref[...], 0.0) * jnp.float32(scale)
    y = y + pe_ref[...].astype(jnp.float32)
    o_ref[...] = y.astype(o_ref.dtype)


def _mlp2_kernel(x_ref, w1_ref, b1_ref, w2_ref, b2_ref, o_ref, *, relu2, scale):
    """Fused two-layer MLP (relu after fc1, optional relu after fc2)."""
    h = jnp.dot(x_ref[...].astype(jnp.float32), w1_ref[...],
                preferred_element_type=jnp.float32)
    h = jnp.maximum(h + b1_ref[...], 0.0)
    y = jnp.dot(h, w2_ref[...], preferred_element_type=jnp.float32) + b2_ref[...]
    if relu2:
        y = jnp.maximum(y, 0.0)
    if scale != 1.0:
        y = y * jnp.float32(scale)
    o_ref[...] = y.astype(o_ref.dtype)


def _attn_kernel(x_ref, wq_ref, wk_ref, wv_ref, bq_ref, bk_ref, bv_ref, o_ref,
                 *, num_heads, scale):
    """Per-batch self-attention: fused QKV projection, in-kernel head split,
    lane-dense (S, D) output with heads concatenated."""
    x = x_ref[0].astype(jnp.float32)                                   # (S, D)
    q = (jnp.dot(x, wq_ref[...], preferred_element_type=jnp.float32)
         + bq_ref[...]) * jnp.float32(scale)                           # scale folded into q
    k = jnp.dot(x, wk_ref[...], preferred_element_type=jnp.float32) + bk_ref[...]
    v = jnp.dot(x, wv_ref[...], preferred_element_type=jnp.float32) + bv_ref[...]
    d_model = x.shape[1]
    dh = d_model // num_heads
    outs = []
    for h in range(num_heads):                                         # static unroll
        sl = slice(h * dh, (h + 1) * dh)
        qh, kh, vh = q[:, sl], k[:, sl], v[:, sl]
        # contract last dims of both -> no in-kernel transpose of k
        s = jax.lax.dot_general(qh, kh, (((1,), (1,)), ((), ())),
                                preferred_element_type=jnp.float32)    # (S, S)
        s = s - jnp.max(s, axis=-1, keepdims=True)
        p = jnp.exp(s)
        p = p * pl.reciprocal(jnp.sum(p, axis=-1, keepdims=True), approx=True)
        outs.append(jnp.dot(p, vh, preferred_element_type=jnp.float32))
    o_ref[0] = jnp.concatenate(outs, axis=-1).astype(o_ref.dtype)      # (S, D) dense store


def _linear_add_ln_kernel(x_ref, w_ref, b_ref, r_ref, g_ref, beta_ref, o_ref, *, eps):
    """LayerNorm((x @ W + b) + residual) — used for the attention out-projection."""
    y = jnp.dot(x_ref[...].astype(jnp.float32), w_ref[...],
                preferred_element_type=jnp.float32)
    y = y + b_ref[...] + r_ref[...].astype(jnp.float32)
    mean = jnp.mean(y, axis=-1, keepdims=True)
    c = y - mean
    var = jnp.mean(c * c, axis=-1, keepdims=True)
    out = c * jax.lax.rsqrt(var + eps) * g_ref[...] + beta_ref[...]
    o_ref[...] = out.astype(o_ref.dtype)


def _ffn_add_ln_kernel(x_ref, w1_ref, b1_ref, w2_ref, b2_ref, g_ref, beta_ref,
                       o_ref, *, eps):
    """LayerNorm(relu(x@w1+b1)@w2 + b2 + x) — FFN + residual + LN in one pass;
    the (br, dim_ff) intermediate never leaves VMEM."""
    x = x_ref[...].astype(jnp.float32)
    h = jnp.dot(x, w1_ref[...], preferred_element_type=jnp.float32)
    h = jnp.maximum(h + b1_ref[...], 0.0)
    y = jnp.dot(h, w2_ref[...], preferred_element_type=jnp.float32) + b2_ref[...] + x
    mean = jnp.mean(y, axis=-1, keepdims=True)
    c = y - mean
    var = jnp.mean(c * c, axis=-1, keepdims=True)
    out = c * jax.lax.rsqrt(var + eps) * g_ref[...] + beta_ref[...]
    o_ref[...] = out.astype(o_ref.dtype)


# ----------------------------------------------------------------------------
# Wrappers
# ----------------------------------------------------------------------------
def embed_with_pe(x, w1, b1, w2, b2, pe, *, seq_len, scale):
    """x: (bs*seq_len, in_dim), batch-major rows. Fused embed MLP + scale + PE add."""
    R, K = x.shape
    Kh = w1.shape[1]
    D = w2.shape[1]
    row_bytes = (K + Kh + 2 * D) * 4
    if seq_len % 8 == 0:
        divs = [d for d in range(8, seq_len + 1, 8)
                if seq_len % d == 0 and d * row_bytes <= (4 << 20)]
        br = max(divs) if divs else 8
        nsb = seq_len // br
        return pl.pallas_call(
            functools.partial(_embed_pe_kernel, scale=scale),
            out_shape=jax.ShapeDtypeStruct((R, D), x.dtype),
            grid=(R // br,),
            in_specs=[_row_spec(br, K),
                      _const_spec((K, Kh)), _const_spec((1, Kh)),
                      _const_spec((Kh, D)), _const_spec((1, D)),
                      pl.BlockSpec((br, D), lambda i: (i % nsb, 0))],
            out_specs=_row_spec(br, D),
            compiler_params=_PARALLEL,
        )(x, w1, b1.reshape(1, -1), w2, b2.reshape(1, -1), pe[:seq_len])
    # Fallback (seq_len not a multiple of 8): PE add via XLA broadcast.
    y = mlp2(x, w1, b1, w2, b2, relu2=True, scale=scale)
    return (y.reshape(-1, seq_len, D) + pe[None, :seq_len, :]).reshape(R, D)


def mlp2(x, w1, b1, w2, b2, *, relu2, scale=1.0):
    R, K = x.shape
    Kh = w1.shape[1]
    N = w2.shape[1]
    br = _pick_row_block(R, (K + Kh + N) * 4)
    return pl.pallas_call(
        functools.partial(_mlp2_kernel, relu2=relu2, scale=scale),
        out_shape=jax.ShapeDtypeStruct((R, N), x.dtype),
        grid=(R // br,),
        in_specs=[_row_spec(br, K),
                  _const_spec((K, Kh)), _const_spec((1, Kh)),
                  _const_spec((Kh, N)), _const_spec((1, N))],
        out_specs=_row_spec(br, N),
        compiler_params=_PARALLEL,
    )(x, w1, b1.reshape(1, -1), w2, b2.reshape(1, -1))


def self_attention(x, wq, wk, wv, bq, bk, bv, *, num_heads):
    """x: (bs, S, D) batch-first. Returns softmax(qk^T/sqrt(dh)) v, heads concat."""
    bs, S, D = x.shape
    dh = D // num_heads
    return pl.pallas_call(
        functools.partial(_attn_kernel, num_heads=num_heads,
                          scale=1.0 / math.sqrt(dh)),
        out_shape=jax.ShapeDtypeStruct((bs, S, D), x.dtype),
        grid=(bs,),
        in_specs=[pl.BlockSpec((1, S, D), lambda b: (b, 0, 0)),
                  _const_spec((D, D)), _const_spec((D, D)), _const_spec((D, D)),
                  _const_spec((1, D)), _const_spec((1, D)), _const_spec((1, D))],
        out_specs=pl.BlockSpec((1, S, D), lambda b: (b, 0, 0)),
        compiler_params=_PARALLEL,
    )(x, wq, wk, wv, bq.reshape(1, -1), bk.reshape(1, -1), bv.reshape(1, -1))


def linear_add_ln(x, w, b, residual, gamma, beta, *, eps=_LN_EPS):
    R, K = x.shape
    N = w.shape[1]
    br = _pick_row_block(R, (K + 2 * N) * 4)
    return pl.pallas_call(
        functools.partial(_linear_add_ln_kernel, eps=eps),
        out_shape=jax.ShapeDtypeStruct((R, N), x.dtype),
        grid=(R // br,),
        in_specs=[_row_spec(br, K), _const_spec((K, N)), _const_spec((1, N)),
                  _row_spec(br, N), _const_spec((1, N)), _const_spec((1, N))],
        out_specs=_row_spec(br, N),
        compiler_params=_PARALLEL,
    )(x, w, b.reshape(1, -1), residual, gamma.reshape(1, -1), beta.reshape(1, -1))


def ffn_add_ln(x, w1, b1, w2, b2, gamma, beta, *, eps=_LN_EPS):
    R, D = x.shape
    F = w1.shape[1]
    br = _pick_row_block(R, (2 * D + F) * 4)
    return pl.pallas_call(
        functools.partial(_ffn_add_ln_kernel, eps=eps),
        out_shape=jax.ShapeDtypeStruct((R, D), x.dtype),
        grid=(R // br,),
        in_specs=[_row_spec(br, D),
                  _const_spec((D, F)), _const_spec((1, F)),
                  _const_spec((F, D)), _const_spec((1, D)),
                  _const_spec((1, D)), _const_spec((1, D))],
        out_specs=_row_spec(br, D),
        compiler_params=_PARALLEL,
    )(x, w1, b1.reshape(1, -1), w2, b2.reshape(1, -1),
      gamma.reshape(1, -1), beta.reshape(1, -1))


# ----------------------------------------------------------------------------
# Encoder layer (post-norm, relu, eval-mode dropout = identity)
# ----------------------------------------------------------------------------
def encoder_layer(x, p, *, num_heads):
    bs, S, D = x.shape
    x2 = x.reshape(bs * S, D)
    attn = self_attention(x, p["wq"], p["wk"], p["wv"], p["bq"], p["bk"], p["bv"],
                          num_heads=num_heads).reshape(bs * S, D)
    y = linear_add_ln(attn, p["wo"], p["bo"], x2, p["ln1_g"], p["ln1_b"])
    y = ffn_add_ln(y, p["w1"], p["b1"], p["w2"], p["b2"], p["ln2_g"], p["ln2_b"])
    return y.reshape(bs, S, D)


# ----------------------------------------------------------------------------
# Full PoseTransformer forward (batch-first; equivalent to PyTorch's seq-first
# pipeline because self-attention with mask=None is per-batch over S).
# ----------------------------------------------------------------------------
def pose_transformer_forward(src, params, *, d_model, num_heads):
    bs, t, n, d = src.shape
    S = t * n
    rows = bs * S
    x = src.reshape(rows, d)
    x = embed_with_pe(x, params["embed_w1"], params["embed_b1"],
                      params["embed_w2"], params["embed_b2"], params["pe"],
                      seq_len=S, scale=math.sqrt(d_model))
    x = x.reshape(bs, S, d_model)
    for lp in params["layers"]:
        x = encoder_layer(x, lp, num_heads=num_heads)
    x = x.reshape(rows, d_model)
    x = mlp2(x, params["pose_w1"], params["pose_b1"],
             params["pose_w2"], params["pose_b2"], relu2=True)
    out_dim = params["pose_b2"].shape[0]
    return x.reshape(bs, t, n, out_dim)


# ----------------------------------------------------------------------------
# Parameter init (self-contained; mirrors the module's layer shapes)
# ----------------------------------------------------------------------------
def init_params(key, *, input_dim, d_model, num_heads, num_layers, dim_ff,
                output_dim, max_len):
    del num_heads  # head split is a runtime view, no extra params
    keys = jax.random.split(key, 4 + num_layers)

    def dense(k, fan_in, fan_out):
        kw, kb = jax.random.split(k)
        lim = 1.0 / math.sqrt(fan_in)
        w = jax.random.uniform(kw, (fan_in, fan_out), jnp.float32, -lim, lim)
        b = jax.random.uniform(kb, (fan_out,), jnp.float32, -lim, lim)
        return w, b

    p = {}
    p["embed_w1"], p["embed_b1"] = dense(keys[0], input_dim, d_model)
    p["embed_w2"], p["embed_b2"] = dense(keys[1], d_model, d_model)
    p["pose_w1"], p["pose_b1"] = dense(keys[2], d_model, d_model)
    p["pose_w2"], p["pose_b2"] = dense(keys[3], d_model, output_dim)
    p["pe"] = make_pe_table(max_len, d_model)
    layers = []
    for i in range(num_layers):
        ks = jax.random.split(keys[4 + i], 6)
        lp = {}
        lp["wq"], lp["bq"] = dense(ks[0], d_model, d_model)
        lp["wk"], lp["bk"] = dense(ks[1], d_model, d_model)
        lp["wv"], lp["bv"] = dense(ks[2], d_model, d_model)
        lp["wo"], lp["bo"] = dense(ks[3], d_model, d_model)
        lp["w1"], lp["b1"] = dense(ks[4], d_model, dim_ff)
        lp["w2"], lp["b2"] = dense(ks[5], dim_ff, d_model)
        lp["ln1_g"] = jnp.ones((d_model,), jnp.float32)
        lp["ln1_b"] = jnp.zeros((d_model,), jnp.float32)
        lp["ln2_g"] = jnp.ones((d_model,), jnp.float32)
        lp["ln2_b"] = jnp.zeros((d_model,), jnp.float32)
        layers.append(lp)
    p["layers"] = layers
    return p


# ----------------------------------------------------------------------------
# Pure-JAX reference in the module's own seq-first layout (correctness check
# of both the math and the batch-first restructuring).
# ----------------------------------------------------------------------------
def _ref_forward(src, params, *, d_model, num_heads):
    def ln(x, g, b, eps=_LN_EPS):
        m = x.mean(-1, keepdims=True)
        v = ((x - m) ** 2).mean(-1, keepdims=True)
        return (x - m) / jnp.sqrt(v + eps) * g + b

    bs, t, n, d = src.shape
    x = src.reshape(-1, d)
    x = jnp.maximum(x @ params["embed_w1"] + params["embed_b1"], 0.0)
    x = jnp.maximum(x @ params["embed_w2"] + params["embed_b2"], 0.0)
    x = x.reshape(bs, t * n, d_model) * math.sqrt(d_model)
    x = x.transpose(1, 0, 2)                       # seq-first, like the module
    S, B, D = x.shape
    x = x + params["pe"][:S][:, None, :]
    H, dh = num_heads, D // num_heads
    for p in params["layers"]:
        q = (x @ p["wq"] + p["bq"]).reshape(S, B, H, dh)
        k = (x @ p["wk"] + p["bk"]).reshape(S, B, H, dh)
        v = (x @ p["wv"] + p["bv"]).reshape(S, B, H, dh)
        s = jnp.einsum("sbhd,tbhd->bhst", q, k) / math.sqrt(dh)
        a = jax.nn.softmax(s, axis=-1)
        o = jnp.einsum("bhst,tbhd->sbhd", a, v).reshape(S * B, D)
        o = o @ p["wo"] + p["bo"]
        x2 = x.reshape(S * B, D)
        x2 = ln(x2 + o, p["ln1_g"], p["ln1_b"])
        h = jnp.maximum(x2 @ p["w1"] + p["b1"], 0.0)
        h = h @ p["w2"] + p["b2"]
        x2 = ln(x2 + h, p["ln2_g"], p["ln2_b"])
        x = x2.reshape(S, B, D)
    x = x.transpose(1, 0, 2).reshape(bs * t * n, D)
    x = jnp.maximum(x @ params["pose_w1"] + params["pose_b1"], 0.0)
    x = jnp.maximum(x @ params["pose_w2"] + params["pose_b2"], 0.0)
    return x.reshape(bs, t, n, -1)


# ----------------------------------------------------------------------------
# Demo / self-test
# ----------------------------------------------------------------------------
if __name__ == "__main__":
    key = jax.random.PRNGKey(0)
    # Small, module-consistent config: src is (bs, t, n, input_dim);
    # d_model multiple of 128 so every activation store is lane-dense.
    BS, T, N_JOINTS, IN_DIM = 2, 8, 4, 2          # seq = T*N_JOINTS = 32
    D_MODEL, N_HEAD, N_LAYERS, DIM_FF, OUT_DIM = 128, 4, 2, 256, 3
    MAX_LEN = 256

    k_param, k_x = jax.random.split(key)
    params = init_params(k_param, input_dim=IN_DIM, d_model=D_MODEL,
                         num_heads=N_HEAD, num_layers=N_LAYERS,
                         dim_ff=DIM_FF, output_dim=OUT_DIM, max_len=MAX_LEN)
    src = jax.random.normal(k_x, (BS, T, N_JOINTS, IN_DIM), dtype=jnp.float32)

    fwd = jax.jit(functools.partial(pose_transformer_forward,
                                    d_model=D_MODEL, num_heads=N_HEAD))
    out = jax.block_until_ready(fwd(src, params))
    assert out.shape == (BS, T, N_JOINTS, OUT_DIM) and out.dtype == src.dtype
    assert bool(jnp.all(jnp.isfinite(out)))

    ref = _ref_forward(src, params, d_model=D_MODEL, num_heads=N_HEAD)
    diff = float(jnp.max(jnp.abs(out - ref)))
    assert jnp.allclose(out, ref, atol=5e-3, rtol=5e-3), f"max abs diff {diff}"

    print("KERNEL_OK")
</pallas_src>

<mosaic_0001>
module attributes {stable_mosaic.version = 11 : i64} {
  func.func @_embed_pe_kernel(%arg0: i32, %arg1: memref<32x2xf32, #tpu.memory_space<vmem>>, %arg2: memref<2x128xf32, #tpu.memory_space<vmem>>, %arg3: memref<1x128xf32, #tpu.memory_space<vmem>>, %arg4: memref<128x128xf32, #tpu.memory_space<vmem>>, %arg5: memref<1x128xf32, #tpu.memory_space<vmem>>, %arg6: memref<32x128xf32, #tpu.memory_space<vmem>>, %arg7: memref<32x128xf32, #tpu.memory_space<vmem>>) attributes {dimension_semantics = [#tpu.dimension_semantics<parallel>], iteration_bounds = array<i64: 2>, scalar_prefetch = 0 : i64, scratch_operands = 0 : i64, tpu.core_type = #tpu.core_type<tc>, window_params = [{transform_indices = @transform_0, window_bounds = array<i64: 32, 2>}, {pipeline_mode = #tpu.pipeline_mode<synchronous>, transform_indices = @transform_1, window_bounds = array<i64: 2, 128>}, {pipeline_mode = #tpu.pipeline_mode<synchronous>, transform_indices = @transform_2, window_bounds = array<i64: 1, 128>}, {pipeline_mode = #tpu.pipeline_mode<synchronous>, transform_indices = @transform_3, window_bounds = array<i64: 128, 128>}, {pipeline_mode = #tpu.pipeline_mode<synchronous>, transform_indices = @transform_4, window_bounds = array<i64: 1, 128>}, {transform_indices = @transform_5, window_bounds = array<i64: 32, 128>}, {transform_indices = @transform_6, window_bounds = array<i64: 32, 128>}]} {
    %c0 = arith.constant 0 : index
    %c0_0 = arith.constant 0 : index
    %0 = vector.load %arg1[%c0, %c0_0] : memref<32x2xf32, #tpu.memory_space<vmem>>, vector<32x2xf32>
    %c0_1 = arith.constant 0 : index
    %c0_2 = arith.constant 0 : index
    %1 = vector.load %arg2[%c0_1, %c0_2] : memref<2x128xf32, #tpu.memory_space<vmem>>, vector<2x128xf32>
    %cst = arith.constant dense<0.000000e+00> : vector<32x128xf32>
    %2 = tpu.matmul %0, %1, %cst {dimension_numbers = #tpu.dot_dimension_numbers<[1], [0], [0], [1], [0, 0, 1, 1], [], []>} : vector<32x2xf32>, vector<2x128xf32>, vector<32x128xf32> -> vector<32x128xf32>
    %c0_3 = arith.constant 0 : index
    %c0_4 = arith.constant 0 : index
    %3 = vector.load %arg3[%c0_3, %c0_4] : memref<1x128xf32, #tpu.memory_space<vmem>>, vector<1x128xf32>
    %4 = vector.broadcast %3 : vector<1x128xf32> to vector<32x128xf32>
    %5 = arith.addf %2, %4 : vector<32x128xf32>
    %cst_5 = arith.constant 0.000000e+00 : f32
    %6 = vector.broadcast %cst_5 : f32 to vector<32x128xf32>
    %7 = arith.maximumf %5, %6 : vector<32x128xf32>
    %c0_6 = arith.constant 0 : index
    %c0_7 = arith.constant 0 : index
    %8 = vector.load %arg4[%c0_6, %c0_7] : memref<128x128xf32, #tpu.memory_space<vmem>>, vector<128x128xf32>
    %cst_8 = arith.constant dense<0.000000e+00> : vector<32x128xf32>
    %9 = tpu.matmul %7, %8, %cst_8 {dimension_numbers = #tpu.dot_dimension_numbers<[1], [0], [0], [1], [0, 0, 1, 1], [], []>} : vector<32x128xf32>, vector<128x128xf32>, vector<32x128xf32> -> vector<32x128xf32>
    %c0_9 = arith.constant 0 : index
    %c0_10 = arith.constant 0 : index
    %10 = vector.load %arg5[%c0_9, %c0_10] : memref<1x128xf32, #tpu.memory_space<vmem>>, vector<1x128xf32>
    %11 = vector.broadcast %10 : vector<1x128xf32> to vector<32x128xf32>
    %12 = arith.addf %9, %11 : vector<32x128xf32>
    %cst_11 = arith.constant 0.000000e+00 : f32
    %13 = vector.broadcast %cst_11 : f32 to vector<32x128xf32>
    %14 = arith.maximumf %12, %13 : vector<32x128xf32>
    %cst_12 = arith.constant 11.3137083 : f32
    %15 = vector.broadcast %cst_12 : f32 to vector<32x128xf32>
    %16 = arith.mulf %14, %15 : vector<32x128xf32>
    %c0_13 = arith.constant 0 : index
    %c0_14 = arith.constant 0 : index
    %17 = vector.load %arg6[%c0_13, %c0_14] : memref<32x128xf32, #tpu.memory_space<vmem>>, vector<32x128xf32>
    %18 = arith.addf %16, %17 : vector<32x128xf32>
    %c0_15 = arith.constant 0 : index
    %c0_16 = arith.constant 0 : index
    %19 = vector.load %arg7[%c0_15, %c0_16] : memref<32x128xf32, #tpu.memory_space<vmem>>, vector<32x128xf32>
    tpu.vector_store %arg7[%c0_15, %c0_16], %18 {strides = array<i32>} : memref<32x128xf32, #tpu.memory_space<vmem>>, vector<32x128xf32>,
    return
  }
  func.func @transform_0(%arg0: i32) -> (i32, i32) {
    %c0_i32 = arith.constant 0 : i32
    %c0_i32_0 = arith.constant 0 : i32
    return %arg0, %c0_i32 : i32, i32
  }
  func.func @transform_1(%arg0: i32) -> (i32, i32) {
    %c0_i32 = arith.constant 0 : i32
    %c0_i32_0 = arith.constant 0 : i32
    %c0_i32_1 = arith.constant 0 : i32
    return %c0_i32, %c0_i32_0 : i32, i32
  }
  func.func @transform_2(%arg0: i32) -> (i32, i32) {
    %c0_i32 = arith.constant 0 : i32
    %c0_i32_0 = arith.constant 0 : i32
    %c0_i32_1 = arith.constant 0 : i32
    return %c0_i32, %c0_i32_0 : i32, i32
  }
  func.func @transform_3(%arg0: i32) -> (i32, i32) {
    %c0_i32 = arith.constant 0 : i32
    %c0_i32_0 = arith.constant 0 : i32
    %c0_i32_1 = arith.constant 0 : i32
    return %c0_i32, %c0_i32_0 : i32, i32
  }
  func.func @transform_4(%arg0: i32) -> (i32, i32) {
    %c0_i32 = arith.constant 0 : i32
    %c0_i32_0 = arith.constant 0 : i32
    %c0_i32_1 = arith.constant 0 : i32
    return %c0_i32, %c0_i32_0 : i32, i32
  }
  func.func @transform_5(%arg0: i32) -> (i32, i32) {
    %c1_i32 = arith.constant 1 : i32
    %c0_i32 = arith.constant 0 : i32
    %0 = arith.cmpi eq, %c1_i32, %c0_i32 : i32
    %c1_i32_0 = arith.constant 1 : i32
    %1 = arith.select %0, %c1_i32_0, %c1_i32 : i32
    %2 = arith.remsi %arg0, %1 : i32
    %c0_i32_1 = arith.constant 0 : i32
    %3 = arith.cmpi ne, %2, %c0_i32_1 : i32
    %c0_i32_2 = arith.constant 0 : i32
    %4 = arith.cmpi slt, %2, %c0_i32_2 : i32
    %c0_i32_3 = arith.constant 0 : i32
    %5 = arith.cmpi slt, %1, %c0_i32_3 : i32
    %6 = arith.xori %4, %5 : i1
    %7 = arith.andi %6, %3 : i1
    %8 = arith.addi %2, %1 : i32
    %9 = arith.select %7, %8, %2 : i32
    %c0_i32_4 = arith.constant 0 : i32
    %c0_i32_5 = arith.constant 0 : i32
    return %9, %c0_i32_4 : i32, i32
  }
  func.func @transform_6(%arg0: i32) -> (i32, i32) {
    %c0_i32 = arith.constant 0 : i32
    %c0_i32_0 = arith.constant 0 : i32
    return %arg0, %c0_i32 : i32, i32
  }
}

module attributes {stable_mosaic.version = 11 : i64} {
  func.func @_attn_kernel(%arg0: i32, %arg1: memref<1x32x128xf32, #tpu.memory_space<vmem>>, %arg2: memref<128x128xf32, #tpu.memory_space<vmem>>, %arg3: memref<128x128xf32, #tpu.memory_space<vmem>>, %arg4: memref<128x128xf32, #tpu.memory_space<vmem>>, %arg5: memref<1x128xf32, #tpu.memory_space<vmem>>, %arg6: memref<1x128xf32, #tpu.memory_space<vmem>>, %arg7: memref<1x128xf32, #tpu.memory_space<vmem>>, %arg8: memref<1x32x128xf32, #tpu.memory_space<vmem>>) attributes {dimension_semantics = [#tpu.dimension_semantics<parallel>], iteration_bounds = array<i64: 2>, scalar_prefetch = 0 : i64, scratch_operands = 0 : i64, tpu.core_type = #tpu.core_type<tc>, window_params = [{transform_indices = @transform_0, window_bounds = array<i64: 1, 32, 128>}, {pipeline_mode = #tpu.pipeline_mode<synchronous>, transform_indices = @transform_1, window_bounds = array<i64: 128, 128>}, {pipeline_mode = #tpu.pipeline_mode<synchronous>, transform_indices = @transform_2, window_bounds = array<i64: 128, 128>}, {pipeline_mode = #tpu.pipeline_mode<synchronous>, transform_indices = @transform_3, window_bounds = array<i64: 128, 128>}, {pipeline_mode = #tpu.pipeline_mode<synchronous>, transform_indices = @transform_4, window_bounds = array<i64: 1, 128>}, {pipeline_mode = #tpu.pipeline_mode<synchronous>, transform_indices = @transform_5, window_bounds = array<i64: 1, 128>}, {pipeline_mode = #tpu.pipeline_mode<synchronous>, transform_indices = @transform_6, window_bounds = array<i64: 1, 128>}, {transform_indices = @transform_7, window_bounds = array<i64: 1, 32, 128>}]} {
    %c0 = arith.constant 0 : index
    %c0_0 = arith.constant 0 : index
    %c0_1 = arith.constant 0 : index
    %0 = vector.load %arg1[%c0, %c0_0, %c0_1] : memref<1x32x128xf32, #tpu.memory_space<vmem>>, vector<1x32x128xf32>
    %1 = vector.shape_cast %0 : vector<1x32x128xf32> to vector<32x128xf32>
    %c0_2 = arith.constant 0 : index
    %c0_3 = arith.constant 0 : index
    %2 = vector.load %arg2[%c0_2, %c0_3] : memref<128x128xf32, #tpu.memory_space<vmem>>, vector<128x128xf32>
    %cst = arith.constant dense<0.000000e+00> : vector<32x128xf32>
    %3 = tpu.matmul %1, %2, %cst {dimension_numbers = #tpu.dot_dimension_numbers<[1], [0], [0], [1], [0, 0, 1, 1], [], []>} : vector<32x128xf32>, vector<128x128xf32>, vector<32x128xf32> -> vector<32x128xf32>
    %c0_4 = arith.constant 0 : index
    %c0_5 = arith.constant 0 : index
    %4 = vector.load %arg5[%c0_4, %c0_5] : memref<1x128xf32, #tpu.memory_space<vmem>>, vector<1x128xf32>
    %5 = vector.broadcast %4 : vector<1x128xf32> to vector<32x128xf32>
    %6 = arith.addf %3, %5 : vector<32x128xf32>
    %cst_6 = arith.constant 0.176776692 : f32
    %7 = vector.broadcast %cst_6 : f32 to vector<32x128xf32>
    %8 = arith.mulf %6, %7 : vector<32x128xf32>
    %c0_7 = arith.constant 0 : index
    %c0_8 = arith.constant 0 : index
    %9 = vector.load %arg3[%c0_7, %c0_8] : memref<128x128xf32, #tpu.memory_space<vmem>>, vector<128x128xf32>
    %cst_9 = arith.constant dense<0.000000e+00> : vector<32x128xf32>
    %10 = tpu.matmul %1, %9, %cst_9 {dimension_numbers = #tpu.dot_dimension_numbers<[1], [0], [0], [1], [0, 0, 1, 1], [], []>} : vector<32x128xf32>, vector<128x128xf32>, vector<32x128xf32> -> vector<32x128xf32>
    %c0_10 = arith.constant 0 : index
    %c0_11 = arith.constant 0 : index
    %11 = vector.load %arg6[%c0_10, %c0_11] : memref<1x128xf32, #tpu.memory_space<vmem>>, vector<1x128xf32>
    %12 = vector.broadcast %11 : vector<1x128xf32> to vector<32x128xf32>
    %13 = arith.addf %10, %12 : vector<32x128xf32>
    %c0_12 = arith.constant 0 : index
    %c0_13 = arith.constant 0 : index
    %14 = vector.load %arg4[%c0_12, %c0_13] : memref<128x128xf32, #tpu.memory_space<vmem>>, vector<128x128xf32>
    %cst_14 = arith.constant dense<0.000000e+00> : vector<32x128xf32>
    %15 = tpu.matmul %1, %14, %cst_14 {dimension_numbers = #tpu.dot_dimension_numbers<[1], [0], [0], [1], [0, 0, 1, 1], [], []>} : vector<32x128xf32>, vector<128x128xf32>, vector<32x128xf32> -> vector<32x128xf32>
    %c0_15 = arith.constant 0 : index
    %c0_16 = arith.constant 0 : index
    %16 = vector.load %arg7[%c0_15, %c0_16] : memref<1x128xf32, #tpu.memory_space<vmem>>, vector<1x128xf32>
    %17 = vector.broadcast %16 : vector<1x128xf32> to vector<32x128xf32>
    %18 = arith.addf %15, %17 : vector<32x128xf32>
    %19 = vector.extract_strided_slice %8 {offsets = [0, 0], sizes = [32, 32], strides = [1, 1]} : vector<32x128xf32> to vector<32x32xf32>
    %20 = vector.extract_strided_slice %13 {offsets = [0, 0], sizes = [32, 32], strides = [1, 1]} : vector<32x128xf32> to vector<32x32xf32>
    %21 = vector.extract_strided_slice %18 {offsets = [0, 0], sizes = [32, 32], strides = [1, 1]} : vector<32x128xf32> to vector<32x32xf32>
    %cst_17 = arith.constant dense<0.000000e+00> : vector<32x32xf32>
    %22 = tpu.matmul %19, %20, %cst_17 {dimension_numbers = #tpu.dot_dimension_numbers<[1], [1], [0], [0], [0, 0, 1, 0], [], []>} : vector<32x32xf32>, vector<32x32xf32>, vector<32x32xf32> -> vector<32x32xf32>
    %cst_18 = arith.constant dense<0xFF800000> : vector<32xf32>
    %23 = vector.multi_reduction <maximumf>, %22, %cst_18 [1] : vector<32x32xf32> to vector<32xf32>
    %24 = vector.shape_cast %23 : vector<32xf32> to vector<32x1xf32>
    %25 = vector.broadcast %24 : vector<32x1xf32> to vector<32x32xf32>
    %26 = arith.subf %22, %25 : vector<32x32xf32>
    %27 = math.exp %26 : vector<32x32xf32>
    %cst_19 = arith.constant dense<0.000000e+00> : vector<32xf32>
    %28 = vector.multi_reduction <add>, %27, %cst_19 [1] : vector<32x32xf32> to vector<32xf32>
    %29 = vector.shape_cast %28 : vector<32xf32> to vector<32x1xf32>
    %30 = tpu.reciprocal %29 {approx = true} : vector<32x1xf32> -> vector<32x1xf32>
    %31 = vector.broadcast %30 : vector<32x1xf32> to vector<32x32xf32>
    %32 = arith.mulf %27, %31 : vector<32x32xf32>
    %cst_20 = arith.constant dense<0.000000e+00> : vector<32x32xf32>
    %33 = tpu.matmul %32, %21, %cst_20 {dimension_numbers = #tpu.dot_dimension_numbers<[1], [0], [0], [1], [0, 0, 1, 1], [], []>} : vector<32x32xf32>, vector<32x32xf32>, vector<32x32xf32> -> vector<32x32xf32>
    %34 = vector.extract_strided_slice %8 {offsets = [0, 32], sizes = [32, 32], strides = [1, 1]} : vector<32x128xf32> to vector<32x32xf32>
    %35 = vector.extract_strided_slice %13 {offsets = [0, 32], sizes = [32, 32], strides = [1, 1]} : vector<32x128xf32> to vector<32x32xf32>
    %36 = vector.extract_strided_slice %18 {offsets = [0, 32], sizes = [32, 32], strides = [1, 1]} : vector<32x128xf32> to vector<32x32xf32>
    %cst_21 = arith.constant dense<0.000000e+00> : vector<32x32xf32>
    %37 = tpu.matmul %34, %35, %cst_21 {dimension_numbers = #tpu.dot_dimension_numbers<[1], [1], [0], [0], [0, 0, 1, 0], [], []>} : vector<32x32xf32>, vector<32x32xf32>, vector<32x32xf32> -> vector<32x32xf32>
    %cst_22 = arith.constant dense<0xFF800000> : vector<32xf32>
    %38 = vector.multi_reduction <maximumf>, %37, %cst_22 [1] : vector<32x32xf32> to vector<32xf32>
    %39 = vector.shape_cast %38 : vector<32xf32> to vector<32x1xf32>
    %40 = vector.broadcast %39 : vector<32x1xf32> to vector<32x32xf32>
    %41 = arith.subf %37, %40 : vector<32x32xf32>
    %42 = math.exp %41 : vector<32x32xf32>
    %cst_23 = arith.constant dense<0.000000e+00> : vector<32xf32>
    %43 = vector.multi_reduction <add>, %42, %cst_23 [1] : vector<32x32xf32> to vector<32xf32>
    %44 = vector.shape_cast %43 : vector<32xf32> to vector<32x1xf32>
    %45 = tpu.reciprocal %44 {approx = true} : vector<32x1xf32> -> vector<32x1xf32>
    %46 = vector.broadcast %45 : vector<32x1xf32> to vector<32x32xf32>
    %47 = arith.mulf %42, %46 : vector<32x32xf32>
    %cst_24 = arith.constant dense<0.000000e+00> : vector<32x32xf32>
    %48 = tpu.matmul %47, %36, %cst_24 {dimension_numbers = #tpu.dot_dimension_numbers<[1], [0], [0], [1], [0, 0, 1, 1], [], []>} : vector<32x32xf32>, vector<32x32xf32>, vector<32x32xf32> -> vector<32x32xf32>
    %49 = vector.extract_strided_slice %8 {offsets = [0, 64], sizes = [32, 32], strides = [1, 1]} : vector<32x128xf32> to vector<32x32xf32>
    %50 = vector.extract_strided_slice %13 {offsets = [0, 64], sizes = [32, 32], strides = [1, 1]} : vector<32x128xf32> to vector<32x32xf32>
    %51 = vector.extract_strided_slice %18 {offsets = [0, 64], sizes = [32, 32], strides = [1, 1]} : vector<32x128xf32> to vector<32x32xf32>
    %cst_25 = arith.constant dense<0.000000e+00> : vector<32x32xf32>
    %52 = tpu.matmul %49, %50, %cst_25 {dimension_numbers = #tpu.dot_dimension_numbers<[1], [1], [0], [0], [0, 0, 1, 0], [], []>} : vector<32x32xf32>, vector<32x32xf32>, vector<32x32xf32> -> vector<32x32xf32>
    %cst_26 = arith.constant dense<0xFF800000> : vector<32xf32>
    %53 = vector.multi_reduction <maximumf>, %52, %cst_26 [1] : vector<32x32xf32> to vector<32xf32>
    %54 = vector.shape_cast %53 : vector<32xf32> to vector<32x1xf32>
    %55 = vector.broadcast %54 : vector<32x1xf32> to vector<32x32xf32>
    %56 = arith.subf %52, %55 : vector<32x32xf32>
    %57 = math.exp %56 : vector<32x32xf32>
    %cst_27 = arith.constant dense<0.000000e+00> : vector<32xf32>
    %58 = vector.multi_reduction <add>, %57, %cst_27 [1] : vector<32x32xf32> to vector<32xf32>
    %59 = vector.shape_cast %58 : vector<32xf32> to vector<32x1xf32>
    %60 = tpu.reciprocal %59 {approx = true} : vector<32x1xf32> -> vector<32x1xf32>
    %61 = vector.broadcast %60 : vector<32x1xf32> to vector<32x32xf32>
    %62 = arith.mulf %57, %61 : vector<32x32xf32>
    %cst_28 = arith.constant dense<0.000000e+00> : vector<32x32xf32>
    %63 = tpu.matmul %62, %51, %cst_28 {dimension_numbers = #tpu.dot_dimension_numbers<[1], [0], [0], [1], [0, 0, 1, 1], [], []>} : vector<32x32xf32>, vector<32x32xf32>, vector<32x32xf32> -> vector<32x32xf32>
    %64 = vector.extract_strided_slice %8 {offsets = [0, 96], sizes = [32, 32], strides = [1, 1]} : vector<32x128xf32> to vector<32x32xf32>
    %65 = vector.extract_strided_slice %13 {offsets = [0, 96], sizes = [32, 32], strides = [1, 1]} : vector<32x128xf32> to vector<32x32xf32>
    %66 = vector.extract_strided_slice %18 {offsets = [0, 96], sizes = [32, 32], strides = [1, 1]} : vector<32x128xf32> to vector<32x32xf32>
    %cst_29 = arith.constant dense<0.000000e+00> : vector<32x32xf32>
    %67 = tpu.matmul %64, %65, %cst_29 {dimension_numbers = #tpu.dot_dimension_numbers<[1], [1], [0], [0], [0, 0, 1, 0], [], []>} : vector<32x32xf32>, vector<32x32xf32>, vector<32x32xf32> -> vector<32x32xf32>
    %cst_30 = arith.constant dense<0xFF800000> : vector<32xf32>
    %68 = vector.multi_reduction <maximumf>, %67, %cst_30 [1] : vector<32x32xf32> to vector<32xf32>
    %69 = vector.shape_cast %68 : vector<32xf32> to vector<32x1xf32>
    %70 = vector.broadcast %69 : vector<32x1xf32> to vector<32x32xf32>
    %71 = arith.subf %67, %70 : vector<32x32xf32>
    %72 = math.exp %71 : vector<32x32xf32>
    %cst_31 = arith.constant dense<0.000000e+00> : vector<32xf32>
    %73 = vector.multi_reduction <add>, %72, %cst_31 [1] : vector<32x32xf32> to vector<32xf32>
    %74 = vector.shape_cast %73 : vector<32xf32> to vector<32x1xf32>
    %75 = tpu.reciprocal %74 {approx = true} : vector<32x1xf32> -> vector<32x1xf32>
    %76 = vector.broadcast %75 : vector<32x1xf32> to vector<32x32xf32>
    %77 = arith.mulf %72, %76 : vector<32x32xf32>
    %cst_32 = arith.constant dense<0.000000e+00> : vector<32x32xf32>
    %78 = tpu.matmul %77, %66, %cst_32 {dimension_numbers = #tpu.dot_dimension_numbers<[1], [0], [0], [1], [0, 0, 1, 1], [], []>} : vector<32x32xf32>, vector<32x32xf32>, vector<32x32xf32> -> vector<32x32xf32>
    %79 = tpu.concatenate %33, %48, %63, %78 in 1 : vector<32x32xf32>, vector<32x32xf32>, vector<32x32xf32>, vector<32x32xf32> -> vector<32x128xf32>
    %c0_33 = arith.constant 0 : index
    %c0_34 = arith.constant 0 : index
    %c0_35 = arith.constant 0 : index
    %80 = vector.load %arg8[%c0_33, %c0_34, %c0_35] : memref<1x32x128xf32, #tpu.memory_space<vmem>>, vector<1x32x128xf32>
    %81 = vector.shape_cast %80 : vector<1x32x128xf32> to vector<32x128xf32>
    %82 = vector.shape_cast %79 : vector<32x128xf32> to vector<1x32x128xf32>
    tpu.vector_store %arg8[%c0_33, %c0_34, %c0_35], %82 {strides = array<i32>} : memref<1x32x128xf32, #tpu.memory_space<vmem>>, vector<1x32x128xf32>,
    return
  }
  func.func @transform_0(%arg0: i32) -> (i32, i32, i32) {
    %c0_i32 = arith.constant 0 : i32
    %c0_i32_0 = arith.constant 0 : i32
    %c0_i32_1 = arith.constant 0 : i32
    return %arg0, %c0_i32, %c0_i32_0 : i32, i32, i32
  }
  func.func @transform_1(%arg0: i32) -> (i32, i32) {
    %c0_i32 = arith.constant 0 : i32
    %c0_i32_0 = arith.constant 0 : i32
    %c0_i32_1 = arith.constant 0 : i32
    return %c0_i32, %c0_i32_0 : i32, i32
  }
  func.func @transform_2(%arg0: i32) -> (i32, i32) {
    %c0_i32 = arith.constant 0 : i32
    %c0_i32_0 = arith.constant 0 : i32
    %c0_i32_1 = arith.constant 0 : i32
    return %c0_i32, %c0_i32_0 : i32, i32
  }
  func.func @transform_3(%arg0: i32) -> (i32, i32) {
    %c0_i32 = arith.constant 0 : i32
    %c0_i32_0 = arith.constant 0 : i32
    %c0_i32_1 = arith.constant 0 : i32
    return %c0_i32, %c0_i32_0 : i32, i32
  }
  func.func @transform_4(%arg0: i32) -> (i32, i32) {
    %c0_i32 = arith.constant 0 : i32
    %c0_i32_0 = arith.constant 0 : i32
    %c0_i32_1 = arith.constant 0 : i32
    return %c0_i32, %c0_i32_0 : i32, i32
  }
  func.func @transform_5(%arg0: i32) -> (i32, i32) {
    %c0_i32 = arith.constant 0 : i32
    %c0_i32_0 = arith.constant 0 : i32
    %c0_i32_1 = arith.constant 0 : i32
    return %c0_i32, %c0_i32_0 : i32, i32
  }
  func.func @transform_6(%arg0: i32) -> (i32, i32) {
    %c0_i32 = arith.constant 0 : i32
    %c0_i32_0 = arith.constant 0 : i32
    %c0_i32_1 = arith.constant 0 : i32
    return %c0_i32, %c0_i32_0 : i32, i32
  }
  func.func @transform_7(%arg0: i32) -> (i32, i32, i32) {
    %c0_i32 = arith.constant 0 : i32
    %c0_i32_0 = arith.constant 0 : i32
    %c0_i32_1 = arith.constant 0 : i32
    return %arg0, %c0_i32, %c0_i32_0 : i32, i32, i32
  }
}

module attributes {stable_mosaic.version = 11 : i64} {
  func.func @_linear_add_ln_kernel(%arg0: i32, %arg1: memref<64x128xf32, #tpu.memory_space<vmem>>, %arg2: memref<128x128xf32, #tpu.memory_space<vmem>>, %arg3: memref<1x128xf32, #tpu.memory_space<vmem>>, %arg4: memref<64x128xf32, #tpu.memory_space<vmem>>, %arg5: memref<1x128xf32, #tpu.memory_space<vmem>>, %arg6: memref<1x128xf32, #tpu.memory_space<vmem>>, %arg7: memref<64x128xf32, #tpu.memory_space<vmem>>) attributes {dimension_semantics = [#tpu.dimension_semantics<parallel>], iteration_bounds = array<i64: 1>, scalar_prefetch = 0 : i64, scratch_operands = 0 : i64, tpu.core_type = #tpu.core_type<tc>, window_params = [{transform_indices = @transform_0, window_bounds = array<i64: 64, 128>}, {pipeline_mode = #tpu.pipeline_mode<synchronous>, transform_indices = @transform_1, window_bounds = array<i64: 128, 128>}, {pipeline_mode = #tpu.pipeline_mode<synchronous>, transform_indices = @transform_2, window_bounds = array<i64: 1, 128>}, {transform_indices = @transform_3, window_bounds = array<i64: 64, 128>}, {pipeline_mode = #tpu.pipeline_mode<synchronous>, transform_indices = @transform_4, window_bounds = array<i64: 1, 128>}, {pipeline_mode = #tpu.pipeline_mode<synchronous>, transform_indices = @transform_5, window_bounds = array<i64: 1, 128>}, {transform_indices = @transform_6, window_bounds = array<i64: 64, 128>}]} {
    %c0 = arith.constant 0 : index
    %c0_0 = arith.constant 0 : index
    %0 = vector.load %arg1[%c0, %c0_0] : memref<64x128xf32, #tpu.memory_space<vmem>>, vector<64x128xf32>
    %c0_1 = arith.constant 0 : index
    %c0_2 = arith.constant 0 : index
    %1 = vector.load %arg2[%c0_1, %c0_2] : memref<128x128xf32, #tpu.memory_space<vmem>>, vector<128x128xf32>
    %cst = arith.constant dense<0.000000e+00> : vector<64x128xf32>
    %2 = tpu.matmul %0, %1, %cst {dimension_numbers = #tpu.dot_dimension_numbers<[1], [0], [0], [1], [0, 0, 1, 1], [], []>} : vector<64x128xf32>, vector<128x128xf32>, vector<64x128xf32> -> vector<64x128xf32>
    %c0_3 = arith.constant 0 : index
    %c0_4 = arith.constant 0 : index
    %3 = vector.load %arg3[%c0_3, %c0_4] : memref<1x128xf32, #tpu.memory_space<vmem>>, vector<1x128xf32>
    %4 = vector.broadcast %3 : vector<1x128xf32> to vector<64x128xf32>
    %5 = arith.addf %2, %4 : vector<64x128xf32>
    %c0_5 = arith.constant 0 : index
    %c0_6 = arith.constant 0 : index
    %6 = vector.load %arg4[%c0_5, %c0_6] : memref<64x128xf32, #tpu.memory_space<vmem>>, vector<64x128xf32>
    %7 = arith.addf %5, %6 : vector<64x128xf32>
    %cst_7 = arith.constant dense<0.000000e+00> : vector<64xf32>
    %8 = vector.multi_reduction <add>, %7, %cst_7 [1] : vector<64x128xf32> to vector<64xf32>
    %9 = vector.shape_cast %8 : vector<64xf32> to vector<64x1xf32>
    %cst_8 = arith.constant 1.280000e+02 : f32
    %10 = vector.broadcast %cst_8 : f32 to vector<64x1xf32>
    %11 = arith.divf %9, %10 : vector<64x1xf32>
    %12 = vector.broadcast %11 : vector<64x1xf32> to vector<64x128xf32>
    %13 = arith.subf %7, %12 : vector<64x128xf32>
    %14 = arith.mulf %13, %13 : vector<64x128xf32>
    %cst_9 = arith.constant dense<0.000000e+00> : vector<64xf32>
    %15 = vector.multi_reduction <add>, %14, %cst_9 [1] : vector<64x128xf32> to vector<64xf32>
    %16 = vector.shape_cast %15 : vector<64xf32> to vector<64x1xf32>
    %cst_10 = arith.constant 1.280000e+02 : f32
    %17 = vector.broadcast %cst_10 : f32 to vector<64x1xf32>
    %18 = arith.divf %16, %17 : vector<64x1xf32>
    %cst_11 = arith.constant 9.99999974E-6 : f32
    %19 = vector.broadcast %cst_11 : f32 to vector<64x1xf32>
    %20 = arith.addf %18, %19 : vector<64x1xf32>
    %21 = math.rsqrt %20 : vector<64x1xf32>
    %22 = vector.broadcast %21 : vector<64x1xf32> to vector<64x128xf32>
    %23 = arith.mulf %13, %22 : vector<64x128xf32>
    %c0_12 = arith.constant 0 : index
    %c0_13 = arith.constant 0 : index
    %24 = vector.load %arg5[%c0_12, %c0_13] : memref<1x128xf32, #tpu.memory_space<vmem>>, vector<1x128xf32>
    %25 = vector.broadcast %24 : vector<1x128xf32> to vector<64x128xf32>
    %26 = arith.mulf %23, %25 : vector<64x128xf32>
    %c0_14 = arith.constant 0 : index
    %c0_15 = arith.constant 0 : index
    %27 = vector.load %arg6[%c0_14, %c0_15] : memref<1x128xf32, #tpu.memory_space<vmem>>, vector<1x128xf32>
    %28 = vector.broadcast %27 : vector<1x128xf32> to vector<64x128xf32>
    %29 = arith.addf %26, %28 : vector<64x128xf32>
    %c0_16 = arith.constant 0 : index
    %c0_17 = arith.constant 0 : index
    %30 = vector.load %arg7[%c0_16, %c0_17] : memref<64x128xf32, #tpu.memory_space<vmem>>, vector<64x128xf32>
    tpu.vector_store %arg7[%c0_16, %c0_17], %29 {strides = array<i32>} : memref<64x128xf32, #tpu.memory_space<vmem>>, vector<64x128xf32>,
    return
  }
  func.func @transform_0(%arg0: i32) -> (i32, i32) {
    %c0_i32 = arith.constant 0 : i32
    %c0_i32_0 = arith.constant 0 : i32
    return %arg0, %c0_i32 : i32, i32
  }
  func.func @transform_1(%arg0: i32) -> (i32, i32) {
    %c0_i32 = arith.constant 0 : i32
    %c0_i32_0 = arith.constant 0 : i32
    %c0_i32_1 = arith.constant 0 : i32
    return %c0_i32, %c0_i32_0 : i32, i32
  }
  func.func @transform_2(%arg0: i32) -> (i32, i32) {
    %c0_i32 = arith.constant 0 : i32
    %c0_i32_0 = arith.constant 0 : i32
    %c0_i32_1 = arith.constant 0 : i32
    return %c0_i32, %c0_i32_0 : i32, i32
  }
  func.func @transform_3(%arg0: i32) -> (i32, i32) {
    %c0_i32 = arith.constant 0 : i32
    %c0_i32_0 = arith.constant 0 : i32
    return %arg0, %c0_i32 : i32, i32
  }
  func.func @transform_4(%arg0: i32) -> (i32, i32) {
    %c0_i32 = arith.constant 0 : i32
    %c0_i32_0 = arith.constant 0 : i32
    %c0_i32_1 = arith.constant 0 : i32
    return %c0_i32, %c0_i32_0 : i32, i32
  }
  func.func @transform_5(%arg0: i32) -> (i32, i32) {
    %c0_i32 = arith.constant 0 : i32
    %c0_i32_0 = arith.constant 0 : i32
    %c0_i32_1 = arith.constant 0 : i32
    return %c0_i32, %c0_i32_0 : i32, i32
  }
  func.func @transform_6(%arg0: i32) -> (i32, i32) {
    %c0_i32 = arith.constant 0 : i32
    %c0_i32_0 = arith.constant 0 : i32
    return %arg0, %c0_i32 : i32, i32
  }
}

module attributes {stable_mosaic.version = 11 : i64} {
  func.func @_ffn_add_ln_kernel(%arg0: i32, %arg1: memref<64x128xf32, #tpu.memory_space<vmem>>, %arg2: memref<128x256xf32, #tpu.memory_space<vmem>>, %arg3: memref<1x256xf32, #tpu.memory_space<vmem>>, %arg4: memref<256x128xf32, #tpu.memory_space<vmem>>, %arg5: memref<1x128xf32, #tpu.memory_space<vmem>>, %arg6: memref<1x128xf32, #tpu.memory_space<vmem>>, %arg7: memref<1x128xf32, #tpu.memory_space<vmem>>, %arg8: memref<64x128xf32, #tpu.memory_space<vmem>>) attributes {dimension_semantics = [#tpu.dimension_semantics<parallel>], iteration_bounds = array<i64: 1>, scalar_prefetch = 0 : i64, scratch_operands = 0 : i64, tpu.core_type = #tpu.core_type<tc>, window_params = [{transform_indices = @transform_0, window_bounds = array<i64: 64, 128>}, {pipeline_mode = #tpu.pipeline_mode<synchronous>, transform_indices = @transform_1, window_bounds = array<i64: 128, 256>}, {pipeline_mode = #tpu.pipeline_mode<synchronous>, transform_indices = @transform_2, window_bounds = array<i64: 1, 256>}, {pipeline_mode = #tpu.pipeline_mode<synchronous>, transform_indices = @transform_3, window_bounds = array<i64: 256, 128>}, {pipeline_mode = #tpu.pipeline_mode<synchronous>, transform_indices = @transform_4, window_bounds = array<i64: 1, 128>}, {pipeline_mode = #tpu.pipeline_mode<synchronous>, transform_indices = @transform_5, window_bounds = array<i64: 1, 128>}, {pipeline_mode = #tpu.pipeline_mode<synchronous>, transform_indices = @transform_6, window_bounds = array<i64: 1, 128>}, {transform_indices = @transform_7, window_bounds = array<i64: 64, 128>}]} {
    %c0 = arith.constant 0 : index
    %c0_0 = arith.constant 0 : index
    %0 = vector.load %arg1[%c0, %c0_0] : memref<64x128xf32, #tpu.memory_space<vmem>>, vector<64x128xf32>
    %c0_1 = arith.constant 0 : index
    %c0_2 = arith.constant 0 : index
    %1 = vector.load %arg2[%c0_1, %c0_2] : memref<128x256xf32, #tpu.memory_space<vmem>>, vector<128x256xf32>
    %cst = arith.constant dense<0.000000e+00> : vector<64x256xf32>
    %2 = tpu.matmul %0, %1, %cst {dimension_numbers = #tpu.dot_dimension_numbers<[1], [0], [0], [1], [0, 0, 1, 1], [], []>} : vector<64x128xf32>, vector<128x256xf32>, vector<64x256xf32> -> vector<64x256xf32>
    %c0_3 = arith.constant 0 : index
    %c0_4 = arith.constant 0 : index
    %3 = vector.load %arg3[%c0_3, %c0_4] : memref<1x256xf32, #tpu.memory_space<vmem>>, vector<1x256xf32>
    %4 = vector.broadcast %3 : vector<1x256xf32> to vector<64x256xf32>
    %5 = arith.addf %2, %4 : vector<64x256xf32>
    %cst_5 = arith.constant 0.000000e+00 : f32
    %6 = vector.broadcast %cst_5 : f32 to vector<64x256xf32>
    %7 = arith.maximumf %5, %6 : vector<64x256xf32>
    %c0_6 = arith.constant 0 : index
    %c0_7 = arith.constant 0 : index
    %8 = vector.load %arg4[%c0_6, %c0_7] : memref<256x128xf32, #tpu.memory_space<vmem>>, vector<256x128xf32>
    %cst_8 = arith.constant dense<0.000000e+00> : vector<64x128xf32>
    %9 = tpu.matmul %7, %8, %cst_8 {dimension_numbers = #tpu.dot_dimension_numbers<[1], [0], [0], [1], [0, 0, 1, 1], [], []>} : vector<64x256xf32>, vector<256x128xf32>, vector<64x128xf32> -> vector<64x128xf32>
    %c0_9 = arith.constant 0 : index
    %c0_10 = arith.constant 0 : index
    %10 = vector.load %arg5[%c0_9, %c0_10] : memref<1x128xf32, #tpu.memory_space<vmem>>, vector<1x128xf32>
    %11 = vector.broadcast %10 : vector<1x128xf32> to vector<64x128xf32>
    %12 = arith.addf %9, %11 : vector<64x128xf32>
    %13 = arith.addf %12, %0 : vector<64x128xf32>
    %cst_11 = arith.constant dense<0.000000e+00> : vector<64xf32>
    %14 = vector.multi_reduction <add>, %13, %cst_11 [1] : vector<64x128xf32> to vector<64xf32>
    %15 = vector.shape_cast %14 : vector<64xf32> to vector<64x1xf32>
    %cst_12 = arith.constant 1.280000e+02 : f32
    %16 = vector.broadcast %cst_12 : f32 to vector<64x1xf32>
    %17 = arith.divf %15, %16 : vector<64x1xf32>
    %18 = vector.broadcast %17 : vector<64x1xf32> to vector<64x128xf32>
    %19 = arith.subf %13, %18 : vector<64x128xf32>
    %20 = arith.mulf %19, %19 : vector<64x128xf32>
    %cst_13 = arith.constant dense<0.000000e+00> : vector<64xf32>
    %21 = vector.multi_reduction <add>, %20, %cst_13 [1] : vector<64x128xf32> to vector<64xf32>
    %22 = vector.shape_cast %21 : vector<64xf32> to vector<64x1xf32>
    %cst_14 = arith.constant 1.280000e+02 : f32
    %23 = vector.broadcast %cst_14 : f32 to vector<64x1xf32>
    %24 = arith.divf %22, %23 : vector<64x1xf32>
    %cst_15 = arith.constant 9.99999974E-6 : f32
    %25 = vector.broadcast %cst_15 : f32 to vector<64x1xf32>
    %26 = arith.addf %24, %25 : vector<64x1xf32>
    %27 = math.rsqrt %26 : vector<64x1xf32>
    %28 = vector.broadcast %27 : vector<64x1xf32> to vector<64x128xf32>
    %29 = arith.mulf %19, %28 : vector<64x128xf32>
    %c0_16 = arith.constant 0 : index
    %c0_17 = arith.constant 0 : index
    %30 = vector.load %arg6[%c0_16, %c0_17] : memref<1x128xf32, #tpu.memory_space<vmem>>, vector<1x128xf32>
    %31 = vector.broadcast %30 : vector<1x128xf32> to vector<64x128xf32>
    %32 = arith.mulf %29, %31 : vector<64x128xf32>
    %c0_18 = arith.constant 0 : index
    %c0_19 = arith.constant 0 : index
    %33 = vector.load %arg7[%c0_18, %c0_19] : memref<1x128xf32, #tpu.memory_space<vmem>>, vector<1x128xf32>
    %34 = vector.broadcast %33 : vector<1x128xf32> to vector<64x128xf32>
    %35 = arith.addf %32, %34 : vector<64x128xf32>
    %c0_20 = arith.constant 0 : index
    %c0_21 = arith.constant 0 : index
    %36 = vector.load %arg8[%c0_20, %c0_21] : memref<64x128xf32, #tpu.memory_space<vmem>>, vector<64x128xf32>
    tpu.vector_store %arg8[%c0_20, %c0_21], %35 {strides = array<i32>} : memref<64x128xf32, #tpu.memory_space<vmem>>, vector<64x128xf32>,
    return
  }
  func.func @transform_0(%arg0: i32) -> (i32, i32) {
    %c0_i32 = arith.constant 0 : i32
    %c0_i32_0 = arith.constant 0 : i32
    return %arg0, %c0_i32 : i32, i32
  }
  func.func @transform_1(%arg0: i32) -> (i32, i32) {
    %c0_i32 = arith.constant 0 : i32
    %c0_i32_0 = arith.constant 0 : i32
    %c0_i32_1 = arith.constant 0 : i32
    return %c0_i32, %c0_i32_0 : i32, i32
  }
  func.func @transform_2(%arg0: i32) -> (i32, i32) {
    %c0_i32 = arith.constant 0 : i32
    %c0_i32_0 = arith.constant 0 : i32
    %c0_i32_1 = arith.constant 0 : i32
    return %c0_i32, %c0_i32_0 : i32, i32
  }
  func.func @transform_3(%arg0: i32) -> (i32, i32) {
    %c0_i32 = arith.constant 0 : i32
    %c0_i32_0 = arith.constant 0 : i32
    %c0_i32_1 = arith.constant 0 : i32
    return %c0_i32, %c0_i32_0 : i32, i32
  }
  func.func @transform_4(%arg0: i32) -> (i32, i32) {
    %c0_i32 = arith.constant 0 : i32
    %c0_i32_0 = arith.constant 0 : i32
    %c0_i32_1 = arith.constant 0 : i32
    return %c0_i32, %c0_i32_0 : i32, i32
  }
  func.func @transform_5(%arg0: i32) -> (i32, i32) {
    %c0_i32 = arith.constant 0 : i32
    %c0_i32_0 = arith.constant 0 : i32
    %c0_i32_1 = arith.constant 0 : i32
    return %c0_i32, %c0_i32_0 : i32, i32
  }
  func.func @transform_6(%arg0: i32) -> (i32, i32) {
    %c0_i32 = arith.constant 0 : i32
    %c0_i32_0 = arith.constant 0 : i32
    %c0_i32_1 = arith.constant 0 : i32
    return %c0_i32, %c0_i32_0 : i32, i32
  }
  func.func @transform_7(%arg0: i32) -> (i32, i32) {
    %c0_i32 = arith.constant 0 : i32
    %c0_i32_0 = arith.constant 0 : i32
    return %arg0, %c0_i32 : i32, i32
  }
}

module attributes {stable_mosaic.version = 11 : i64} {
  func.func @_mlp2_kernel(%arg0: i32, %arg1: memref<64x128xf32, #tpu.memory_space<vmem>>, %arg2: memref<128x128xf32, #tpu.memory_space<vmem>>, %arg3: memref<1x128xf32, #tpu.memory_space<vmem>>, %arg4: memref<128x3xf32, #tpu.memory_space<vmem>>, %arg5: memref<1x3xf32, #tpu.memory_space<vmem>>, %arg6: memref<64x3xf32, #tpu.memory_space<vmem>>) attributes {dimension_semantics = [#tpu.dimension_semantics<parallel>], iteration_bounds = array<i64: 1>, scalar_prefetch = 0 : i64, scratch_operands = 0 : i64, tpu.core_type = #tpu.core_type<tc>, window_params = [{transform_indices = @transform_0, window_bounds = array<i64: 64, 128>}, {pipeline_mode = #tpu.pipeline_mode<synchronous>, transform_indices = @transform_1, window_bounds = array<i64: 128, 128>}, {pipeline_mode = #tpu.pipeline_mode<synchronous>, transform_indices = @transform_2, window_bounds = array<i64: 1, 128>}, {pipeline_mode = #tpu.pipeline_mode<synchronous>, transform_indices = @transform_3, window_bounds = array<i64: 128, 3>}, {pipeline_mode = #tpu.pipeline_mode<synchronous>, transform_indices = @transform_4, window_bounds = array<i64: 1, 3>}, {transform_indices = @transform_5, window_bounds = array<i64: 64, 3>}]} {
    %c0 = arith.constant 0 : index
    %c0_0 = arith.constant 0 : index
    %0 = vector.load %arg1[%c0, %c0_0] : memref<64x128xf32, #tpu.memory_space<vmem>>, vector<64x128xf32>
    %c0_1 = arith.constant 0 : index
    %c0_2 = arith.constant 0 : index
    %1 = vector.load %arg2[%c0_1, %c0_2] : memref<128x128xf32, #tpu.memory_space<vmem>>, vector<128x128xf32>
    %cst = arith.constant dense<0.000000e+00> : vector<64x128xf32>
    %2 = tpu.matmul %0, %1, %cst {dimension_numbers = #tpu.dot_dimension_numbers<[1], [0], [0], [1], [0, 0, 1, 1], [], []>} : vector<64x128xf32>, vector<128x128xf32>, vector<64x128xf32> -> vector<64x128xf32>
    %c0_3 = arith.constant 0 : index
    %c0_4 = arith.constant 0 : index
    %3 = vector.load %arg3[%c0_3, %c0_4] : memref<1x128xf32, #tpu.memory_space<vmem>>, vector<1x128xf32>
    %4 = vector.broadcast %3 : vector<1x128xf32> to vector<64x128xf32>
    %5 = arith.addf %2, %4 : vector<64x128xf32>
    %cst_5 = arith.constant 0.000000e+00 : f32
    %6 = vector.broadcast %cst_5 : f32 to vector<64x128xf32>
    %7 = arith.maximumf %5, %6 : vector<64x128xf32>
    %c0_6 = arith.constant 0 : index
    %c0_7 = arith.constant 0 : index
    %8 = vector.load %arg4[%c0_6, %c0_7] : memref<128x3xf32, #tpu.memory_space<vmem>>, vector<128x3xf32>
    %cst_8 = arith.constant dense<0.000000e+00> : vector<64x3xf32>
    %9 = tpu.matmul %7, %8, %cst_8 {dimension_numbers = #tpu.dot_dimension_numbers<[1], [0], [0], [1], [0, 0, 1, 1], [], []>} : vector<64x128xf32>, vector<128x3xf32>, vector<64x3xf32> -> vector<64x3xf32>
    %c0_9 = arith.constant 0 : index
    %c0_10 = arith.constant 0 : index
    %10 = vector.load %arg5[%c0_9, %c0_10] : memref<1x3xf32, #tpu.memory_space<vmem>>, vector<1x3xf32>
    %11 = vector.broadcast %10 : vector<1x3xf32> to vector<64x3xf32>
    %12 = arith.addf %9, %11 : vector<64x3xf32>
    %cst_11 = arith.constant 0.000000e+00 : f32
    %13 = vector.broadcast %cst_11 : f32 to vector<64x3xf32>
    %14 = arith.maximumf %12, %13 : vector<64x3xf32>
    %c0_12 = arith.constant 0 : index
    %c0_13 = arith.constant 0 : index
    %15 = vector.load %arg6[%c0_12, %c0_13] : memref<64x3xf32, #tpu.memory_space<vmem>>, vector<64x3xf32>
    tpu.vector_store %arg6[%c0_12, %c0_13], %14 {strides = array<i32>} : memref<64x3xf32, #tpu.memory_space<vmem>>, vector<64x3xf32>,
    return
  }
  func.func @transform_0(%arg0: i32) -> (i32, i32) {
    %c0_i32 = arith.constant 0 : i32
    %c0_i32_0 = arith.constant 0 : i32
    return %arg0, %c0_i32 : i32, i32
  }
  func.func @transform_1(%arg0: i32) -> (i32, i32) {
    %c0_i32 = arith.constant 0 : i32
    %c0_i32_0 = arith.constant 0 : i32
    %c0_i32_1 = arith.constant 0 : i32
    return %c0_i32, %c0_i32_0 : i32, i32
  }
  func.func @transform_2(%arg0: i32) -> (i32, i32) {
    %c0_i32 = arith.constant 0 : i32
    %c0_i32_0 = arith.constant 0 : i32
    %c0_i32_1 = arith.constant 0 : i32
    return %c0_i32, %c0_i32_0 : i32, i32
  }
  func.func @transform_3(%arg0: i32) -> (i32, i32) {
    %c0_i32 = arith.constant 0 : i32
    %c0_i32_0 = arith.constant 0 : i32
    %c0_i32_1 = arith.constant 0 : i32
    return %c0_i32, %c0_i32_0 : i32, i32
  }
  func.func @transform_4(%arg0: i32) -> (i32, i32) {
    %c0_i32 = arith.constant 0 : i32
    %c0_i32_0 = arith.constant 0 : i32
    %c0_i32_1 = arith.constant 0 : i32
    return %c0_i32, %c0_i32_0 : i32, i32
  }
  func.func @transform_5(%arg0: i32) -> (i32, i32) {
    %c0_i32 = arith.constant 0 : i32
    %c0_i32_0 = arith.constant 0 : i32
    return %arg0, %c0_i32 : i32, i32
  }
}

</mosaic_0001>

<llo_original>
// kernel: pose_transformer_forward.10
$region0: #{pose_transformer_forward.10}
  #allocation0 [shape = 'u32[]', space=smem, size = 0x4, offset = 0x4, fixed_abs, tag = 'smem constant byte address 0x4 - core index']
  #allocation1 [shape = 'u32[144,128]{1,0:T(1,128)}', space=vmem, size = 0x12000, scoped, tag = 'internal scratch']
  %s0 = inlined_call_operand.vmem [shape: f32[64,128], index: 0, kind: input, shape index: {}]
  %s1 = inlined_call_operand.vmem [shape: f32[128,128], index: 1, kind: input, shape index: {}]
  %s2 = inlined_call_operand.vmem [shape: f32[1,128], index: 2, kind: input, shape index: {}]
  %s3 = inlined_call_operand.vmem [shape: f32[64,128], index: 3, kind: input, shape index: {}]
  %s4 = inlined_call_operand.vmem [shape: f32[1,128], index: 4, kind: input, shape index: {}]
  %s5 = inlined_call_operand.vmem [shape: f32[1,128], index: 5, kind: input, shape index: {}]
  %s6 = inlined_call_operand.vmem [shape: f32[64,128], index: 6, kind: output, shape index: {}]
  %s7 = sld [smem:[#allocation0]]
  $region34: #{pose_transformer_forward.10} parent=0
    _
  %s9 = ssub.s32 1, %s7
  %s10 = scalar_select 0, %s9, %s7
  // Predicated region
  $region2: #{pose_transformer_forward.10} parent=0 // pred_check
    _
  $region3: #{pose_transformer_forward.10} parent=0 // pred_check_branch
    %12 = sbr.rel (0) target = $region5
  $region4: #{pose_transformer_forward.10} parent=0 // pred_region
    _
  $region5: #{pose_transformer_forward.10} parent=0 // pred_fallthru
    _
  // Predicated region
  $region6: #{pose_transformer_forward.10} parent=0 // pred_check
    _
  $region7: #{pose_transformer_forward.10} parent=0 // pred_check_branch
    %14 = sbr.rel (0) target = $region9
  $region8: #{pose_transformer_forward.10} parent=0 // pred_region
    _
  $region9: #{pose_transformer_forward.10} parent=0 // pred_fallthru
    _
  // Predicated region
  $region10: #{pose_transformer_forward.10} parent=0 // pred_check
    _
  $region11: #{pose_transformer_forward.10} parent=0 // pred_check_branch
    %16 = sbr.rel (0) target = $region13
  $region12: #{pose_transformer_forward.10} parent=0 // pred_region
    _
  $region13: #{pose_transformer_forward.10} parent=0 // pred_fallthru
    _
  // Predicated region
  $region14: #{pose_transformer_forward.10} parent=0 // pred_check
    _
  $region15: #{pose_transformer_forward.10} parent=0 // pred_check_branch
    %18 = sbr.rel (0) target = $region17
  $region16: #{pose_transformer_forward.10} parent=0 // pred_region
    _
  $region17: #{pose_transformer_forward.10} parent=0 // pred_fallthru
    _
  // Predicated region
  $region18: #{pose_transformer_forward.10} parent=0 // pred_check
    _
  $region19: #{pose_transformer_forward.10} parent=0 // pred_check_branch
    %20 = sbr.rel (0) target = $region21
  $region20: #{pose_transformer_forward.10} parent=0 // pred_region
    _
  $region21: #{pose_transformer_forward.10} parent=0 // pred_fallthru
    _
  // Predicated region
  $region22: #{pose_transformer_forward.10} parent=0 // pred_check
    _
  $region23: #{pose_transformer_forward.10} parent=0 // pred_check_branch
    %22 = sbr.rel (0) target = $region25
  $region24: #{pose_transformer_forward.10} parent=0 // pred_region
    _
  $region25: #{pose_transformer_forward.10} parent=0 // pred_fallthru
    _
  %v23 = vld [vmem:[%s0] sm:$0xff]
  %v24 = vld [vmem:[%s0 + $0x8] sm:$0xff]
  %v25 = vld [vmem:[%s0 + $0x10] sm:$0xff]
  %v26 = vld [vmem:[%s0 + $0x18] sm:$0xff]
  %v27 = vld [vmem:[%s0 + $0x20] sm:$0xff]
  %v28 = vld [vmem:[%s0 + $0x28] sm:$0xff]
  %v29 = vld [vmem:[%s0 + $0x30] sm:$0xff]
  %v30 = vld [vmem:[%s0 + $0x38] sm:$0xff]
  %v31 = vld [vmem:[%s1] sm:$0xff]
  %v32 = vld [vmem:[%s1 + $0x8] sm:$0xff]
  %v33 = vld [vmem:[%s1 + $0x10] sm:$0xff]
  %v34 = vld [vmem:[%s1 + $0x18] sm:$0xff]
  %v35 = vld [vmem:[%s1 + $0x20] sm:$0xff]
  %v36 = vld [vmem:[%s1 + $0x28] sm:$0xff]
  %v37 = vld [vmem:[%s1 + $0x30] sm:$0xff]
  %v38 = vld [vmem:[%s1 + $0x38] sm:$0xff]
  %v39 = vld [vmem:[%s1 + $0x40] sm:$0xff]
  %v40 = vld [vmem:[%s1 + $0x48] sm:$0xff]
  %v41 = vld [vmem:[%s1 + $0x50] sm:$0xff]
  %v42 = vld [vmem:[%s1 + $0x58] sm:$0xff]
  %v43 = vld [vmem:[%s1 + $0x60] sm:$0xff]
  %v44 = vld [vmem:[%s1 + $0x68] sm:$0xff]
  %v45 = vld [vmem:[%s1 + $0x70] sm:$0xff]
  %v46 = vld [vmem:[%s1 + $0x78] sm:$0xff]
  %v47 = vld [vmem:[%s2] sm:$0x1]
  %v49 = vlaneseq
  %v50 = vshrl.u32 %v49, 7
  %v51 = vsub.s32 0, %v50
  %v52 = vrot.slane %v47, %v51
  %54 = vmatprep.subr.mxu0 0.0
  %55 = vmatpush1.msra.mxu0 %v31
  %56 = vmatprep.subr.mxu0 0.0
  %57 = vmatpush1.msra.mxu0 %v32
  %58 = vmatprep.subr.mxu0 0.0
  %59 = vmatpush1.msra.mxu0 %v33
  %60 = vmatprep.subr.mxu0 0.0
  %61 = vmatpush1.msra.mxu0 %v34
  %62 = vmatprep.subr.mxu0 0.0
  %63 = vmatpush1.msra.mxu0 %v35
  %64 = vmatprep.subr.mxu0 0.0
  %65 = vmatpush1.msra.mxu0 %v36
  %66 = vmatprep.subr.mxu0 0.0
  %67 = vmatpush1.msra.mxu0 %v37
  %68 = vmatprep.subr.mxu0 0.0
  %69 = vmatpush1.msra.mxu0 %v38
  %70 = vmatprep.subr.mxu0 0.0
  %71 = vmatpush1.msra.mxu0 %v39
  %72 = vmatprep.subr.mxu0 0.0
  %73 = vmatpush1.msra.mxu0 %v40
  %74 = vmatprep.subr.mxu0 0.0
  %75 = vmatpush1.msra.mxu0 %v41
  %76 = vmatprep.subr.mxu0 0.0
  %77 = vmatpush1.msra.mxu0 %v42
  %78 = vmatprep.subr.mxu0 0.0
  %79 = vmatpush1.msra.mxu0 %v43
  %80 = vmatprep.subr.mxu0 0.0
  %81 = vmatpush1.msra.mxu0 %v44
  %82 = vmatprep.subr.mxu0 0.0
  %83 = vmatpush1.msra.mxu0 %v45
  %84 = vmatprep.subr.mxu0 0.0
  %85 = vmatpush1.msra.mxu0 %v46
  %86 = vmatprep.subr.mxu0 0.0
  %87 = vmatpush1.msra.mxu0 0.0
  %88 = vmatprep.subr.mxu0 0.0
  %89 = vmatpush1.msra.mxu0 0.0
  %90 = vmatprep.subr.mxu0 0.0
  %91 = vmatpush1.msra.mxu0 0.0
  %92 = vmatprep.subr.mxu0 0.0
  %93 = vmatpush1.msra.mxu0 0.0
  %94 = vmatprep.subr.mxu0 0.0
  %95 = vmatpush1.msra.mxu0 0.0
  %96 = vmatprep.subr.mxu0 0.0
  %97 = vmatpush1.msra.mxu0 0.0
  %98 = vmatprep.subr.mxu0 0.0
  %99 = vmatpush1.msra.mxu0 0.0
  %100 = vmatprep.subr.mxu0 0.0
  %101 = vmatpush1.msra.mxu0 0.0
  %102 = vmatprep.subr.mxu0 0.0
  %103 = vmatpush1.msra.mxu0 0.0
  %104 = vmatprep.subr.mxu0 0.0
  %105 = vmatpush1.msra.mxu0 0.0
  %106 = vmatprep.subr.mxu0 0.0
  %107 = vmatpush1.msra.mxu0 0.0
  %108 = vmatprep.subr.mxu0 0.0
  %109 = vmatpush1.msra.mxu0 0.0
  %110 = vmatprep.subr.mxu0 0.0
  %111 = vmatpush1.msra.mxu0 0.0
  %112 = vmatprep.subr.mxu0 0.0
  %113 = vmatpush1.msra.mxu0 0.0
  %114 = vmatprep.subr.mxu0 0.0
  %115 = vmatpush1.msra.mxu0 0.0
  %116 = vmatprep.subr.mxu0 0.0
  %117 = vmatpush1.msra.mxu0 0.0
  %118 = vmatprep.mubr.f32.mxu0 0.0
  %119 = vmatmul.mubr.f32.gmra.mrb[0].mxu0 %v23
  %v120 = vpop.f32.mrb[0].mxu0
  %v121 = vadd.f32 %v52, %v120
  %v122 = vpop.f32.mrb[0].mxu0
  %123 = vmatprep.mubr.f32.mxu0 0.0
  %124 = vmatmul.mubr.f32.gmra.mrb[0].mxu0 %v24
  %v125 = vpop.f32.mrb[0].mxu0
  %v126 = vadd.f32 %v52, %v125
  %v127 = vpop.f32.mrb[0].mxu0
  %128 = vmatprep.mubr.f32.mxu0 0.0
  %129 = vmatmul.mubr.f32.gmra.mrb[0].mxu0 %v25
  %v130 = vpop.f32.mrb[0].mxu0
  %v131 = vadd.f32 %v52, %v130
  %v132 = vpop.f32.mrb[0].mxu0
  %133 = vmatprep.mubr.f32.mxu0 0.0
  %134 = vmatmul.mubr.f32.gmra.mrb[0].mxu0 %v26
  %v135 = vpop.f32.mrb[0].mxu0
  %v136 = vadd.f32 %v52, %v135
  %v137 = vpop.f32.mrb[0].mxu0
  %138 = vmatprep.mubr.f32.mxu0 0.0
  %139 = vmatmul.mubr.f32.gmra.mrb[0].mxu0 %v27
  %v140 = vpop.f32.mrb[0].mxu0
  %v141 = vadd.f32 %v52, %v140
  %v142 = vpop.f32.mrb[0].mxu0
  %143 = vmatprep.mubr.f32.mxu0 0.0
  %144 = vmatmul.mubr.f32.gmra.mrb[0].mxu0 %v28
  %v145 = vpop.f32.mrb[0].mxu0
  %v146 = vadd.f32 %v52, %v145
  %v147 = vpop.f32.mrb[0].mxu0
  %148 = vmatprep.mubr.f32.mxu0 0.0
  %149 = vmatmul.mubr.f32.gmra.mrb[0].mxu0 %v29
  %v150 = vpop.f32.mrb[0].mxu0
  %v151 = vadd.f32 %v52, %v150
  %v152 = vpop.f32.mrb[0].mxu0
  %153 = vmatprep.mubr.f32.mxu0 0.0
  %154 = vmatmul.mubr.f32.gmra.mrb[0].mxu0 %v30
  %v155 = vpop.f32.mrb[0].mxu0
  %v156 = vadd.f32 %v52, %v155
  %v157 = vpop.f32.mrb[0].mxu0
  %158 = vdwg.mxu0
  %v159 = vld [vmem:[%s3] sm:$0xff]
  %v160 = vld [vmem:[%s3 + $0x8] sm:$0xff]
  %v161 = vld [vmem:[%s3 + $0x10] sm:$0xff]
  %v162 = vld [vmem:[%s3 + $0x18] sm:$0xff]
  %v163 = vld [vmem:[%s3 + $0x20] sm:$0xff]
  %v164 = vld [vmem:[%s3 + $0x28] sm:$0xff]
  %v165 = vld [vmem:[%s3 + $0x30] sm:$0xff]
  %v166 = vld [vmem:[%s3 + $0x38] sm:$0xff]
  %v167 = vadd.f32 %v121, %v159
  %v168 = vadd.f32 %v126, %v160
  %v169 = vadd.f32 %v131, %v161
  %v170 = vadd.f32 %v136, %v162
  %v171 = vadd.f32 %v141, %v163
  %v172 = vadd.f32 %v146, %v164
  %v173 = vadd.f32 %v151, %v165
  %v174 = vadd.f32 %v156, %v166
  %175 = vadd.xlane.f32.xlu0 %v167
  %v176 = vpop.xlane.xlu0 %175
  %177 = vadd.xlane.f32.xlu0 %v168
  %v178 = vpop.xlane.xlu0 %177
  %179 = vadd.xlane.f32.xlu0 %v169
  %v180 = vpop.xlane.xlu0 %179
  %181 = vadd.xlane.f32.xlu0 %v170
  %v182 = vpop.xlane.xlu0 %181
  %183 = vadd.xlane.f32.xlu0 %v171
  %v184 = vpop.xlane.xlu0 %183
  %185 = vadd.xlane.f32.xlu0 %v172
  %v186 = vpop.xlane.xlu0 %185
  %187 = vadd.xlane.f32.xlu0 %v173
  %v188 = vpop.xlane.xlu0 %187
  %189 = vadd.xlane.f32.xlu0 %v174
  %v190 = vpop.xlane.xlu0 %189
  %v191 = vrcp.pop 128.0
  %v192 = vmul.f32 %v176, %v191
  %v193 = vmul.f32 %v178, %v191
  %v194 = vmul.f32 %v180, %v191
  %v195 = vmul.f32 %v182, %v191
  %v196 = vmul.f32 %v184, %v191
  %v197 = vmul.f32 %v186, %v191
  %v198 = vmul.f32 %v188, %v191
  %v199 = vmul.f32 %v190, %v191
  %v200 = vsub.f32 %v167, %v192
  %v201 = vsub.f32 %v168, %v193
  %v202 = vsub.f32 %v169, %v194
  %v203 = vsub.f32 %v170, %v195
  %v204 = vsub.f32 %v171, %v196
  %v205 = vsub.f32 %v172, %v197
  %v206 = vsub.f32 %v173, %v198
  %v207 = vsub.f32 %v174, %v199
  %v208 = vmul.f32 %v200, %v200
  %v209 = vmul.f32 %v201, %v201
  %v210 = vmul.f32 %v202, %v202
  %v211 = vmul.f32 %v203, %v203
  %v212 = vmul.f32 %v204, %v204
  %v213 = vmul.f32 %v205, %v205
  %v214 = vmul.f32 %v206, %v206
  %v215 = vmul.f32 %v207, %v207
  %216 = vadd.xlane.f32.xlu0 %v208
  %v217 = vpop.xlane.xlu0 %216
  %218 = vadd.xlane.f32.xlu0 %v209
  %v219 = vpop.xlane.xlu0 %218
  %220 = vadd.xlane.f32.xlu0 %v210
  %v221 = vpop.xlane.xlu0 %220
  %222 = vadd.xlane.f32.xlu0 %v211
  %v223 = vpop.xlane.xlu0 %222
  %224 = vadd.xlane.f32.xlu0 %v212
  %v225 = vpop.xlane.xlu0 %224
  %226 = vadd.xlane.f32.xlu0 %v213
  %v227 = vpop.xlane.xlu0 %226
  %228 = vadd.xlane.f32.xlu0 %v214
  %v229 = vpop.xlane.xlu0 %228
  %230 = vadd.xlane.f32.xlu0 %v215
  %v231 = vpop.xlane.xlu0 %230
  %v232 = vmul.f32 %v217, %v191
  %v233 = vmul.f32 %v219, %v191
  %v234 = vmul.f32 %v221, %v191
  %v235 = vmul.f32 %v223, %v191
  %v236 = vmul.f32 %v225, %v191
  %v237 = vmul.f32 %v227, %v191
  %v238 = vmul.f32 %v229, %v191
  %v239 = vmul.f32 %v231, %v191
  %v240 = vadd.f32 %v232, 1e-05
  %v241 = vadd.f32 %v233, 1e-05
  %v242 = vadd.f32 %v234, 1e-05
  %v243 = vadd.f32 %v235, 1e-05
  %v244 = vadd.f32 %v236, 1e-05
  %v245 = vadd.f32 %v237, 1e-05
  %v246 = vadd.f32 %v238, 1e-05
  %v247 = vadd.f32 %v239, 1e-05
  %v248 = vrsqrt.pop %v240
  %v249 = vrsqrt.pop %v241
  %v250 = vrsqrt.pop %v242
  %v251 = vrsqrt.pop %v243
  %v252 = vrsqrt.pop %v244
  %v253 = vrsqrt.pop %v245
  %v254 = vrsqrt.pop %v246
  %v255 = vrsqrt.pop %v247
  %v256 = vmul.f32 %v200, %v248
  %v257 = vmul.f32 %v201, %v249
  %v258 = vmul.f32 %v202, %v250
  %v259 = vmul.f32 %v203, %v251
  %v260 = vmul.f32 %v204, %v252
  %v261 = vmul.f32 %v205, %v253
  %v262 = vmul.f32 %v206, %v254
  %v263 = vmul.f32 %v207, %v255
  %v264 = vld [vmem:[%s4] sm:$0x1]
  %v266 = vlaneseq
  %v267 = vshrl.u32 %v266, 7
  %v268 = vsub.s32 0, %v267
  %v269 = vrot.slane %v264, %v268
  %v271 = vmul.f32 %v256, %v269
  %v272 = vmul.f32 %v257, %v269
  %v273 = vmul.f32 %v258, %v269
  %v274 = vmul.f32 %v259, %v269
  %v275 = vmul.f32 %v260, %v269
  %v276 = vmul.f32 %v261, %v269
  %v277 = vmul.f32 %v262, %v269
  %v278 = vmul.f32 %v263, %v269
  %v279 = vld [vmem:[%s5] sm:$0x1]
  %v281 = vlaneseq
  %v282 = vshrl.u32 %v281, 7
  %v283 = vsub.s32 0, %v282
  %v284 = vrot.slane %v279, %v283
  %v286 = vadd.f32 %v271, %v284
  %v287 = vadd.f32 %v272, %v284
  %v288 = vadd.f32 %v273, %v284
  %v289 = vadd.f32 %v274, %v284
  %v290 = vadd.f32 %v275, %v284
  %v291 = vadd.f32 %v276, %v284
  %v292 = vadd.f32 %v277, %v284
  %v293 = vadd.f32 %v278, %v284
  %294 = vst [vmem:[%s6] sm:$0xff] %v286
  %295 = vst [vmem:[%s6 + $0x8] sm:$0xff] %v287
  %296 = vst [vmem:[%s6 + $0x10] sm:$0xff] %v288
  %297 = vst [vmem:[%s6 + $0x18] sm:$0xff] %v289
  %298 = vst [vmem:[%s6 + $0x20] sm:$0xff] %v290
  %299 = vst [vmem:[%s6 + $0x28] sm:$0xff] %v291
  %300 = vst [vmem:[%s6 + $0x30] sm:$0xff] %v292
  %301 = vst [vmem:[%s6 + $0x38] sm:$0xff] %v293
  // Predicated region
  $region26: #{pose_transformer_forward.10} parent=0 // pred_check
    _
  $region27: #{pose_transformer_forward.10} parent=0 // pred_check_branch
    %303 = sbr.rel (0) target = $region29
  $region28: #{pose_transformer_forward.10} parent=0 // pred_region
    _
  $region29: #{pose_transformer_forward.10} parent=0 // pred_fallthru
    _
  // Predicated region
  $region30: #{pose_transformer_forward.10} parent=0 // pred_check
    _
  $region31: #{pose_transformer_forward.10} parent=0 // pred_check_branch
    %305 = sbr.rel (0) target = $region33
  $region32: #{pose_transformer_forward.10} parent=0 // pred_region
    _
  $region33: #{pose_transformer_forward.10} parent=0 // pred_fallthru
    _

// kernel: pose_transformer_forward.8
$region0: #{pose_transformer_forward.8}
  #allocation0 [shape = 'u32[]', space=smem, size = 0x4, offset = 0x4, fixed_abs, tag = 'smem constant byte address 0x4 - core index']
  #allocation1 [shape = 'u32[144,128]{1,0:T(1,128)}', space=vmem, size = 0x12000, scoped, tag = 'internal scratch']
  %s0 = inlined_call_operand.vmem [shape: f32[64,2], index: 0, kind: input, shape index: {}]
  %s1 = inlined_call_operand.vmem [shape: f32[2,128], index: 1, kind: input, shape index: {}]
  %s2 = inlined_call_operand.vmem [shape: f32[1,128], index: 2, kind: input, shape index: {}]
  %s3 = inlined_call_operand.vmem [shape: f32[128,128], index: 3, kind: input, shape index: {}]
  %s4 = inlined_call_operand.hbm [shape: f32[1,128], index: 4, kind: input, shape index: {}]
  %s5 = inlined_call_operand.vmem [shape: f32[32,128], index: 5, kind: input, shape index: {}]
  %s6 = inlined_call_operand.vmem [shape: f32[64,128], index: 6, kind: output, shape index: {}]
  %s7 = sld [smem:[#allocation0]]
  $region61: #{pose_transformer_forward.8} parent=0
    _
  %s9 = ssub.s32 1, %s7
  %s10 = scalar_select 0, %s9, %s7
  $region1: #{pose_transformer_forward.8} parent=0
    #allocation2 [shape = 'u8[512]{0}', space=vmem, size = 0x400, scoped, tag = 'input window, operand 4, single buffered']
    #allocation3 [shape = 's32[2]{0}', space=sflag, size = 0x8, scoped, tag = 'scoped memory for pose_transformer_forward.8']
    %11 = vsyncpa [#allocation3], 0
    loop: start=0, step=1, limit=4
    $region2: #{pose_transformer_forward.8} parent=1 // loop_pre_header
      _
    $region3: #{pose_transformer_forward.8} parent=1 // loop_header
      %s13 = sphi 0, %s17
      %p14 = scmp.ge.s32.totalorder %s13, 4
      %s23 = sphi 0, %s25
      %s26 = sphi 0, %s23
      %s27 = sphi 0, %s26
      %s43 = sphi 0, %s27
      %s47 = sphi 0, %s47
      %s49 = sphi 0, %s47
      %s50 = sphi 0, %s49
      %s64 = sphi 0, %s50
      %s68 = sphi 0, %s68
      %s70 = sphi 0, %s68
      %s71 = sphi 0, %s70
      %s85 = sphi 0, %s71
      %s89 = sphi 0, %s89
      %s91 = sphi 0, %s89
      %s92 = sphi 0, %s91
      %s106 = sphi 0, %s92
      %s110 = sphi 0, %s110
      %s112 = sphi 0, %s110
      %s113 = sphi 0, %s112
      %s127 = sphi 0, %s113
      %s131 = sphi 0, %s131
      %s133 = sphi 0, %s131
      %s134 = sphi 0, %s133
      %s148 = sphi 0, %s134
      %s154 = sphi 0, %s156
      %s157 = sphi 0, %s154
      %s158 = sphi 0, %s157
      %s174 = sphi 0, %s158
    $region4: #{pose_transformer_forward.8} parent=1 // loop_header_branch
      %16 = sbr.rel (%p14) target = $region8
    $region5: #{pose_transformer_forward.8} parent=1 // loop_body
      %s18 = ssub.s32 %s13, 1
      %s19 = ssub.s32 %s13, 2
      %s20 = sadd.s32 %s13, 1
      %s21 = ssub.s32 %s13, %s20
      %p22 = scmp.eq.s32.totalorder %s21, 0
      %s24 = sadd.s32 %s23, 1
      %s25 = scalar_select %p22, %s23, %s24
      %p28 = pneg %p22
      %p29 = scmp.eq.s32.totalorder %s13, 1
      %p30 = por %p28, %p29
      %p31 = scmp.ne.s32.totalorder %s23, %s26
      %p32 = scmp.eq.s32.totalorder %s13, 0
      %p33 = por %p31, %p32
      %p34 = scmp.ne.s32.totalorder %s23, %s26
      %p35 = scmp.eq.s32.totalorder %s18, 1
      %p36 = por %p34, %p35
      %p37 = scmp.ne.s32.totalorder %s26, %s27
      %p38 = scmp.eq.s32.totalorder %s18, 0
      %p39 = por %p37, %p38
      %p40 = scmp.ne.s32.totalorder %s26, %s27
      %p41 = scmp.eq.s32.totalorder %s19, 1
      %p42 = por %p40, %p41
      %p44 = scmp.ne.s32.totalorder %s27, %s43
      %p45 = scmp.eq.s32.totalorder %s19, 0
      %p46 = por %p44, %p45
      %s48 = sadd.s32 %s47, 1
      %p51 = scmp.eq.s32.totalorder %s13, 1
      %p52 = scmp.ne.s32.totalorder %s47, %s49
      %p53 = scmp.eq.s32.totalorder %s13, 0
      %p54 = por %p52, %p53
      %p55 = scmp.ne.s32.totalorder %s47, %s49
      %p56 = scmp.eq.s32.totalorder %s18, 1
      %p57 = por %p55, %p56
      %p58 = scmp.ne.s32.totalorder %s49, %s50
      %p59 = scmp.eq.s32.totalorder %s18, 0
      %p60 = por %p58, %p59
      %p61 = scmp.ne.s32.totalorder %s49, %s50
      %p62 = scmp.eq.s32.totalorder %s19, 1
      %p63 = por %p61, %p62
      %p65 = scmp.ne.s32.totalorder %s50, %s64
      %p66 = scmp.eq.s32.totalorder %s19, 0
      %p67 = por %p65, %p66
      %s69 = sadd.s32 %s68, 1
      %p72 = scmp.eq.s32.totalorder %s13, 1
      %p73 = scmp.ne.s32.totalorder %s68, %s70
      %p74 = scmp.eq.s32.totalorder %s13, 0
      %p75 = por %p73, %p74
      %p76 = scmp.ne.s32.totalorder %s68, %s70
      %p77 = scmp.eq.s32.totalorder %s18, 1
      %p78 = por %p76, %p77
      %p79 = scmp.ne.s32.totalorder %s70, %s71
      %p80 = scmp.eq.s32.totalorder %s18, 0
      %p81 = por %p79, %p80
      %p82 = scmp.ne.s32.totalorder %s70, %s71
      %p83 = scmp.eq.s32.totalorder %s19, 1
      %p84 = por %p82, %p83
      %p86 = scmp.ne.s32.totalorder %s71, %s85
      %p87 = scmp.eq.s32.totalorder %s19, 0
      %p88 = por %p86, %p87
      %s90 = sadd.s32 %s89, 1
      %p93 = scmp.eq.s32.totalorder %s13, 1
      %p94 = scmp.ne.s32.totalorder %s89, %s91
      %p95 = scmp.eq.s32.totalorder %s13, 0
      %p96 = por %p94, %p95
      %p97 = scmp.ne.s32.totalorder %s89, %s91
      %p98 = scmp.eq.s32.totalorder %s18, 1
      %p99 = por %p97, %p98
      %p100 = scmp.ne.s32.totalorder %s91, %s92
      %p101 = scmp.eq.s32.totalorder %s18, 0
      %p102 = por %p100, %p101
      %p103 = scmp.ne.s32.totalorder %s91, %s92
      %p104 = scmp.eq.s32.totalorder %s19, 1
      %p105 = por %p103, %p104
      %p107 = scmp.ne.s32.totalorder %s92, %s106
      %p108 = scmp.eq.s32.totalorder %s19, 0
      %p109 = por %p107, %p108
      %s111 = sadd.s32 %s110, 1
      %p114 = scmp.eq.s32.totalorder %s13, 1
      %p115 = scmp.ne.s32.totalorder %s110, %s112
      %p116 = scmp.eq.s32.totalorder %s13, 0
      %p117 = por %p115, %p116
      %p118 = scmp.ne.s32.totalorder %s110, %s112
      %p119 = scmp.eq.s32.totalorder %s18, 1
      %p120 = por %p118, %p119
      %p121 = scmp.ne.s32.totalorder %s112, %s113
      %p122 = scmp.eq.s32.totalorder %s18, 0
      %p123 = por %p121, %p122
      %p124 = scmp.ne.s32.totalorder %s112, %s113
      %p125 = scmp.eq.s32.totalorder %s19, 1
      %p126 = por %p124, %p125
      %p128 = scmp.ne.s32.totalorder %s113, %s127
      %p129 = scmp.eq.s32.totalorder %s19, 0
      %p130 = por %p128, %p129
      %s132 = sadd.s32 %s131, 1
      %p135 = scmp.eq.s32.totalorder %s13, 1
      %p136 = scmp.ne.s32.totalorder %s131, %s133
      %p137 = scmp.eq.s32.totalorder %s13, 0
      %p138 = por %p136, %p137
      %p139 = scmp.ne.s32.totalorder %s131, %s133
      %p140 = scmp.eq.s32.totalorder %s18, 1
      %p141 = por %p139, %p140
      %p142 = scmp.ne.s32.totalorder %s133, %s134
      %p143 = scmp.eq.s32.totalorder %s18, 0
      %p144 = por %p142, %p143
      %p145 = scmp.ne.s32.totalorder %s133, %s134
      %p146 = scmp.eq.s32.totalorder %s19, 1
      %p147 = por %p145, %p146
      %p149 = scmp.ne.s32.totalorder %s134, %s148
      %p150 = scmp.eq.s32.totalorder %s19, 0
      %p151 = por %p149, %p150
      %s152 = ssub.s32 %s13, %s20
      %p153 = scmp.eq.s32.totalorder %s152, 0
      %s155 = sadd.s32 %s154, 1
      %s156 = scalar_select %p153, %s154, %s155
      %p159 = pneg %p153
      %p160 = scmp.eq.s32.totalorder %s13, 1
      %p161 = por %p159, %p160
      %p162 = scmp.ne.s32.totalorder %s154, %s157
      %p163 = scmp.eq.s32.totalorder %s13, 0
      %p164 = por %p162, %p163
      %p165 = scmp.ne.s32.totalorder %s154, %s157
      %p166 = scmp.eq.s32.totalorder %s18, 1
      %p167 = por %p165, %p166
      %p168 = scmp.ne.s32.totalorder %s157, %s158
      %p169 = scmp.eq.s32.totalorder %s18, 0
      %p170 = por %p168, %p169
      %p171 = scmp.ne.s32.totalorder %s157, %s158
      %p172 = scmp.eq.s32.totalorder %s19, 1
      %p173 = por %p171, %p172
      %p175 = scmp.ne.s32.totalorder %s158, %s174
      %p176 = scmp.eq.s32.totalorder %s19, 0
      %p177 = por %p175, %p176
      %p178 = scmp.le.s32.totalorder 1, %s13
      %p179 = scmp.lt.s32.totalorder %s13, 3
      %p180 = pnand %p178, %p179
      %p181 = pneg %p180
      // Predicated region
      $region9: #{pose_transformer_forward.8} parent=5 // pred_check
        _
      $region10: #{pose_transformer_forward.8} parent=5 // pred_check_branch
        %183 = sbr.rel (%p180) target = $region12
      $region11: #{pose_transformer_forward.8} parent=5 // pred_region
        %s184 = ssub.s32 %s13, 1
        // Predicated region
        $region13: #{pose_transformer_forward.8} parent=11 // pred_check
          %p185 = pneg %p60
        $region14: #{pose_transformer_forward.8} parent=11 // pred_check_branch
          %187 = sbr.rel (%p185) target = $region16
        $region15: #{pose_transformer_forward.8} parent=11 // pred_region
          _
        $region16: #{pose_transformer_forward.8} parent=11 // pred_fallthru
          _
        // Predicated region
        $region17: #{pose_transformer_forward.8} parent=11 // pred_check
          %p188 = pneg %p81
        $region18: #{pose_transformer_forward.8} parent=11 // pred_check_branch
          %190 = sbr.rel (%p188) target = $region20
        $region19: #{pose_transformer_forward.8} parent=11 // pred_region
          _
        $region20: #{pose_transformer_forward.8} parent=11 // pred_fallthru
          _
        // Predicated region
        $region21: #{pose_transformer_forward.8} parent=11 // pred_check
          %p191 = pneg %p102
        $region22: #{pose_transformer_forward.8} parent=11 // pred_check_branch
          %193 = sbr.rel (%p191) target = $region24
        $region23: #{pose_transformer_forward.8} parent=11 // pred_region
          _
        $region24: #{pose_transformer_forward.8} parent=11 // pred_fallthru
          _
        // Predicated region
        $region25: #{pose_transformer_forward.8} parent=11 // pred_check
          %p194 = pneg %p123
        $region26: #{pose_transformer_forward.8} parent=11 // pred_check_branch
          %196 = sbr.rel (%p194) target = $region28
        $region27: #{pose_transformer_forward.8} parent=11 // pred_region
          %s198 = ssub.s32 16, 16
          %199 = vsyncadd [#allocation3], %s198
          %s201 = sshll.u32 [#allocation2], 4
          %s202 = int_to_ptr.vmem [resolvable:$true] %s201
          %204 = dma.hbm_to_vmem [thread:$0]  %s4, 16, %s202, [#allocation3]
        $region28: #{pose_transformer_forward.8} parent=11 // pred_fallthru
          _
        // Predicated region
        $region29: #{pose_transformer_forward.8} parent=11 // pred_check
          %p205 = pneg %p144
        $region30: #{pose_transformer_forward.8} parent=11 // pred_check_branch
          %207 = sbr.rel (%p205) target = $region32
        $region31: #{pose_transformer_forward.8} parent=11 // pred_region
          _
        $region32: #{pose_transformer_forward.8} parent=11 // pred_fallthru
          _
      $region12: #{pose_transformer_forward.8} parent=5 // pred_fallthru
        _
      %p208 = scmp.lt.s32.totalorder %s13, 2
      // Predicated region
      $region33: #{pose_transformer_forward.8} parent=5 // pred_check
        %p209 = pneg %p208
      $region34: #{pose_transformer_forward.8} parent=5 // pred_check_branch
        %211 = sbr.rel (%p209) target = $region36
      $region35: #{pose_transformer_forward.8} parent=5 // pred_region
        // Predicated region
        $region37: #{pose_transformer_forward.8} parent=35 // pred_check
          %p212 = pneg %p33
        $region38: #{pose_transformer_forward.8} parent=35 // pred_check_branch
          %214 = sbr.rel (%p212) target = $region40
        $region39: #{pose_transformer_forward.8} parent=35 // pred_region
          %s215 = smul.u32 4, %s13
          %p216 = scmp.lt.s32.totalorder %s215, 7
          %s217 = scalar_select %p216, %s215, 7
          %s218 = smul.addr %s217, 8
          %s219 = scalar_lea.vmem %s0, %s218
          %s220 = smul.u32 4, %s13
        $region40: #{pose_transformer_forward.8} parent=35 // pred_fallthru
          _
      $region36: #{pose_transformer_forward.8} parent=5 // pred_fallthru
        _
      %p221 = scmp.le.s32.totalorder 1, %s13
      %p222 = scmp.lt.s32.totalorder %s13, 3
      %p223 = pnand %p221, %p222
      %p224 = pneg %p223
      // Predicated region
      $region41: #{pose_transformer_forward.8} parent=5 // pred_check
        _
      $region42: #{pose_transformer_forward.8} parent=5 // pred_check_branch
        %226 = sbr.rel (%p223) target = $region44
      $region43: #{pose_transformer_forward.8} parent=5 // pred_region
        %s227 = ssub.s32 %s13, 1
        // Predicated region
        $region45: #{pose_transformer_forward.8} parent=43 // pred_check
          %p228 = pneg %p123
        $region46: #{pose_transformer_forward.8} parent=43 // pred_check_branch
          %230 = sbr.rel (%p228) target = $region48
        $region47: #{pose_transformer_forward.8} parent=43 // pred_region
          %231 = dma.done [#allocation3], 16
        $region48: #{pose_transformer_forward.8} parent=43 // pred_fallthru
          _
        %s232 = smul.u32 4, %s18
        %p233 = scmp.lt.s32.totalorder %s232, 7
        %s234 = scalar_select %p233, %s232, 7
        %s235 = smul.addr %s234, 8
        %s236 = scalar_lea.vmem %s0, %s235
        %p237 = pneg %p39
        %p238 = pneg %p36
        %p239 = pneg %p60
        %p240 = pneg %p57
        %p241 = pneg %p81
        %p242 = pneg %p78
        %p243 = pneg %p102
        %p244 = pneg %p99
        %p245 = pneg %p123
        %p246 = pneg %p120
        %p247 = pneg %p144
        %p248 = pneg %p141
        %p249 = pneg %p170
        %p250 = pneg %p167
        %s251 = smul.u32 4, %s18
        %p252 = scmp.lt.s32.totalorder %s251, 7
        %s253 = scalar_select %p252, %s251, 7
        %s254 = smul.addr %s253, 8
        %s255 = scalar_lea.vmem %s6, %s254
        %s256 = smul.u32 4, %s18
        %p257 = scmp.lt.s32.totalorder %s256, 7
        %s258 = scalar_select %p257, %s256, 7
        %s259 = smul.addr %s258, 8
        %s260 = scalar_lea.vmem %s0, %s259
        %s261 = smul.u32 4, %s18
        %s262 = smul.u32 4, %s18
        %p263 = scmp.lt.s32.totalorder %s262, 7
        %s264 = scalar_select %p263, %s262, 7
        %s265 = smul.addr %s264, 8
        %s266 = scalar_lea.vmem %s6, %s265
        %s267 = smul.u32 4, %s18
        %v268 = vld [vmem:[%s260] sm:$0xff]
        %v269 = vld [vmem:[%s260 + $0x8] sm:$0xff]
        %v270 = vld [vmem:[%s260 + $0x10] sm:$0xff]
        %v271 = vld [vmem:[%s260 + $0x18] sm:$0xff]
        %v272 = vld [vmem:[%s1] sm:$0x3]
        %v273 = vld [vmem:[%s2] sm:$0x1]
        %v275 = vlaneseq
        %v276 = vshrl.u32 %v275, 7
        %v277 = vsub.s32 0, %v276
        %v278 = vrot.slane %v273, %v277
        %vm280 = vcmask 15360
        %v282 = vsel %vm280, %v268, 0
        %v285 = vsel %vm280, %v269, 0
        %v288 = vsel %vm280, %v270, 0
        %v291 = vsel %vm280, %v271, 0
        %vm293 = vcmask 1041408
        %v295 = vsel %vm293, %v272, 0
        %297 = vmatprep.subr.mxu0 0.0
        %298 = vmatpush1.msra.mxu0 %v295
        %299 = vmatprep.subr.mxu0 0.0
        %300 = vmatpush1.msra.mxu0 0.0
        %301 = vmatprep.subr.mxu0 0.0
        %302 = vmatpush1.msra.mxu0 0.0
        %303 = vmatprep.subr.mxu0 0.0
        %304 = vmatpush1.msra.mxu0 0.0
        %305 = vmatprep.subr.mxu0 0.0
        %306 = vmatpush1.msra.mxu0 0.0
        %307 = vmatprep.subr.mxu0 0.0
        %308 = vmatpush1.msra.mxu0 0.0
        %309 = vmatprep.subr.mxu0 0.0
        %310 = vmatpush1.msra.mxu0 0.0
        %311 = vmatprep.subr.mxu0 0.0
        %312 = vmatpush1.msra.mxu0 0.0
        %313 = vmatprep.subr.mxu0 0.0
        %314 = vmatpush1.msra.mxu0 0.0
        %315 = vmatprep.subr.mxu0 0.0
        %316 = vmatpush1.msra.mxu0 0.0
        %317 = vmatprep.subr.mxu0 0.0
        %318 = vmatpush1.msra.mxu0 0.0
        %319 = vmatprep.subr.mxu0 0.0
        %320 = vmatpush1.msra.mxu0 0.0
        %321 = vmatprep.subr.mxu0 0.0
        %322 = vmatpush1.msra.mxu0 0.0
        %323 = vmatprep.subr.mxu0 0.0
        %324 = vmatpush1.msra.mxu0 0.0
        %325 = vmatprep.subr.mxu0 0.0
        %326 = vmatpush1.msra.mxu0 0.0
        %327 = vmatprep.subr.mxu0 0.0
        %328 = vmatpush1.msra.mxu0 0.0
        %329 = vmatprep.subr.mxu0 0.0
        %330 = vmatpush1.msra.mxu0 0.0
        %331 = vmatprep.subr.mxu0 0.0
        %332 = vmatpush1.msra.mxu0 0.0
        %333 = vmatprep.subr.mxu0 0.0
        %334 = vmatpush1.msra.mxu0 0.0
        %335 = vmatprep.subr.mxu0 0.0
        %336 = vmatpush1.msra.mxu0 0.0
        %337 = vmatprep.subr.mxu0 0.0
        %338 = vmatpush1.msra.mxu0 0.0
        %339 = vmatprep.subr.mxu0 0.0
        %340 = vmatpush1.msra.mxu0 0.0
        %341 = vmatprep.subr.mxu0 0.0
        %342 = vmatpush1.msra.mxu0 0.0
        %343 = vmatprep.subr.mxu0 0.0
        %344 = vmatpush1.msra.mxu0 0.0
        %345 = vmatprep.subr.mxu0 0.0
        %346 = vmatpush1.msra.mxu0 0.0
        %347 = vmatprep.subr.mxu0 0.0
        %348 = vmatpush1.msra.mxu0 0.0
        %349 = vmatprep.subr.mxu0 0.0
        %350 = vmatpush1.msra.mxu0 0.0
        %351 = vmatprep.subr.mxu0 0.0
        %352 = vmatpush1.msra.mxu0 0.0
        %353 = vmatprep.subr.mxu0 0.0
        %354 = vmatpush1.msra.mxu0 0.0
        %355 = vmatprep.subr.mxu0 0.0
        %356 = vmatpush1.msra.mxu0 0.0
        %357 = vmatprep.subr.mxu0 0.0
        %358 = vmatpush1.msra.mxu0 0.0
        %359 = vmatprep.subr.mxu0 0.0
        %360 = vmatpush1.msra.mxu0 0.0
        %361 = vmatprep.mubr.f32.mxu0 0.0
        %362 = vmatmul.mubr.f32.gmra.mrb[0].mxu0 %v282
        %v363 = vpop.f32.mrb[0].mxu0
        %v364 = vadd.f32 %v278, %v363
        %v365 = vpop.f32.mrb[0].mxu0
        %366 = vmatprep.mubr.f32.mxu0 0.0
        %367 = vmatmul.mubr.f32.gmra.mrb[0].mxu0 %v285
        %v368 = vpop.f32.mrb[0].mxu0
        %v369 = vadd.f32 %v278, %v368
        %v370 = vpop.f32.mrb[0].mxu0
        %371 = vmatprep.mubr.f32.mxu0 0.0
        %372 = vmatmul.mubr.f32.gmra.mrb[0].mxu0 %v288
        %v373 = vpop.f32.mrb[0].mxu0
        %v374 = vadd.f32 %v278, %v373
        %v375 = vpop.f32.mrb[0].mxu0
        %376 = vmatprep.mubr.f32.mxu0 0.0
        %377 = vmatmul.mubr.f32.gmra.mrb[0].mxu0 %v291
        %v378 = vpop.f32.mrb[0].mxu0
        %v379 = vadd.f32 %v278, %v378
        %v380 = vpop.f32.mrb[0].mxu0
        %381 = vdwg.mxu0
        %v382 = vmax.f32 %v364, 0.0
        %v383 = vmax.f32 %v369, 0.0
        %v384 = vmax.f32 %v374, 0.0
        %v385 = vmax.f32 %v379, 0.0
        %v386 = vld [vmem:[%s3] sm:$0xff]
        %v387 = vld [vmem:[%s3 + $0x8] sm:$0xff]
        %v388 = vld [vmem:[%s3 + $0x10] sm:$0xff]
        %v389 = vld [vmem:[%s3 + $0x18] sm:$0xff]
        %v390 = vld [vmem:[%s3 + $0x20] sm:$0xff]
        %v391 = vld [vmem:[%s3 + $0x28] sm:$0xff]
        %v392 = vld [vmem:[%s3 + $0x30] sm:$0xff]
        %v393 = vld [vmem:[%s3 + $0x38] sm:$0xff]
        %v394 = vld [vmem:[%s3 + $0x40] sm:$0xff]
        %v395 = vld [vmem:[%s3 + $0x48] sm:$0xff]
        %v396 = vld [vmem:[%s3 + $0x50] sm:$0xff]
        %v397 = vld [vmem:[%s3 + $0x58] sm:$0xff]
        %v398 = vld [vmem:[%s3 + $0x60] sm:$0xff]
        %v399 = vld [vmem:[%s3 + $0x68] sm:$0xff]
        %v400 = vld [vmem:[%s3 + $0x70] sm:$0xff]
        %v401 = vld [vmem:[%s3 + $0x78] sm:$0xff]
        %v402 = vld [vmem:[#allocation2] sm:$0x1]
        %v404 = vlaneseq
        %v405 = vshrl.u32 %v404, 7
        %v406 = vsub.s32 0, %v405
        %v407 = vrot.slane %v402, %v406
        %409 = vmatprep.subr.mxu0 0.0
        %410 = vmatpush1.msra.mxu0 %v386
        %411 = vmatprep.subr.mxu0 0.0
        %412 = vmatpush1.msra.mxu0 %v387
        %413 = vmatprep.subr.mxu0 0.0
        %414 = vmatpush1.msra.mxu0 %v388
        %415 = vmatprep.subr.mxu0 0.0
        %416 = vmatpush1.msra.mxu0 %v389
        %417 = vmatprep.subr.mxu0 0.0
        %418 = vmatpush1.msra.mxu0 %v390
        %419 = vmatprep.subr.mxu0 0.0
        %420 = vmatpush1.msra.mxu0 %v391
        %421 = vmatprep.subr.mxu0 0.0
        %422 = vmatpush1.msra.mxu0 %v392
        %423 = vmatprep.subr.mxu0 0.0
        %424 = vmatpush1.msra.mxu0 %v393
        %425 = vmatprep.subr.mxu0 0.0
        %426 = vmatpush1.msra.mxu0 %v394
        %427 = vmatprep.subr.mxu0 0.0
        %428 = vmatpush1.msra.mxu0 %v395
        %429 = vmatprep.subr.mxu0 0.0
        %430 = vmatpush1.msra.mxu0 %v396
        %431 = vmatprep.subr.mxu0 0.0
        %432 = vmatpush1.msra.mxu0 %v397
        %433 = vmatprep.subr.mxu0 0.0
        %434 = vmatpush1.msra.mxu0 %v398
        %435 = vmatprep.subr.mxu0 0.0
        %436 = vmatpush1.msra.mxu0 %v399
        %437 = vmatprep.subr.mxu0 0.0
        %438 = vmatpush1.msra.mxu0 %v400
        %439 = vmatprep.subr.mxu0 0.0
        %440 = vmatpush1.msra.mxu0 %v401
        %441 = vmatprep.subr.mxu0 0.0
        %442 = vmatpush1.msra.mxu0 0.0
        %443 = vmatprep.subr.mxu0 0.0
        %444 = vmatpush1.msra.mxu0 0.0
        %445 = vmatprep.subr.mxu0 0.0
        %446 = vmatpush1.msra.mxu0 0.0
        %447 = vmatprep.subr.mxu0 0.0
        %448 = vmatpush1.msra.mxu0 0.0
        %449 = vmatprep.subr.mxu0 0.0
        %450 = vmatpush1.msra.mxu0 0.0
        %451 = vmatprep.subr.mxu0 0.0
        %452 = vmatpush1.msra.mxu0 0.0
        %453 = vmatprep.subr.mxu0 0.0
        %454 = vmatpush1.msra.mxu0 0.0
        %455 = vmatprep.subr.mxu0 0.0
        %456 = vmatpush1.msra.mxu0 0.0
        %457 = vmatprep.subr.mxu0 0.0
        %458 = vmatpush1.msra.mxu0 0.0
        %459 = vmatprep.subr.mxu0 0.0
        %460 = vmatpush1.msra.mxu0 0.0
        %461 = vmatprep.subr.mxu0 0.0
        %462 = vmatpush1.msra.mxu0 0.0
        %463 = vmatprep.subr.mxu0 0.0
        %464 = vmatpush1.msra.mxu0 0.0
        %465 = vmatprep.subr.mxu0 0.0
        %466 = vmatpush1.msra.mxu0 0.0
        %467 = vmatprep.subr.mxu0 0.0
        %468 = vmatpush1.msra.mxu0 0.0
        %469 = vmatprep.subr.mxu0 0.0
        %470 = vmatpush1.msra.mxu0 0.0
        %471 = vmatprep.subr.mxu0 0.0
        %472 = vmatpush1.msra.mxu0 0.0
        %473 = vmatprep.mubr.f32.mxu0 0.0
        %474 = vmatmul.mubr.f32.gmra.mrb[0].mxu0 %v382
        %v475 = vpop.f32.mrb[0].mxu0
        %v476 = vadd.f32 %v407, %v475
        %v477 = vpop.f32.mrb[0].mxu0
        %478 = vmatprep.mubr.f32.mxu0 0.0
        %479 = vmatmul.mubr.f32.gmra.mrb[0].mxu0 %v383
        %v480 = vpop.f32.mrb[0].mxu0
        %v481 = vadd.f32 %v407, %v480
        %v482 = vpop.f32.mrb[0].mxu0
        %483 = vmatprep.mubr.f32.mxu0 0.0
        %484 = vmatmul.mubr.f32.gmra.mrb[0].mxu0 %v384
        %v485 = vpop.f32.mrb[0].mxu0
        %v486 = vadd.f32 %v407, %v485
        %v487 = vpop.f32.mrb[0].mxu0
        %488 = vmatprep.mubr.f32.mxu0 0.0
        %489 = vmatmul.mubr.f32.gmra.mrb[0].mxu0 %v385
        %v490 = vpop.f32.mrb[0].mxu0
        %v491 = vadd.f32 %v407, %v490
        %v492 = vpop.f32.mrb[0].mxu0
        %493 = vdwg.mxu0
        %v494 = vmax.f32 %v476, 0.0
        %v495 = vmax.f32 %v481, 0.0
        %v496 = vmax.f32 %v486, 0.0
        %v497 = vmax.f32 %v491, 0.0
        %v498 = vmul.f32 %v494, 11.313708
        %v499 = vmul.f32 %v495, 11.313708
        %v500 = vmul.f32 %v496, 11.313708
        %v501 = vmul.f32 %v497, 11.313708
        %v502 = vld [vmem:[%s5] sm:$0xff]
        %v503 = vld [vmem:[%s5 + $0x8] sm:$0xff]
        %v504 = vld [vmem:[%s5 + $0x10] sm:$0xff]
        %v505 = vld [vmem:[%s5 + $0x18] sm:$0xff]
        %v506 = vadd.f32 %v498, %v502
        %v507 = vadd.f32 %v499, %v503
        %v508 = vadd.f32 %v500, %v504
        %v509 = vadd.f32 %v501, %v505
        %510 = vst [vmem:[%s266] sm:$0xff] %v506
        %511 = vst [vmem:[%s266 + $0x8] sm:$0xff] %v507
        %512 = vst [vmem:[%s266 + $0x10] sm:$0xff] %v508
        %513 = vst [vmem:[%s266 + $0x18] sm:$0xff] %v509
        %s514 = smul.u32 4, %s18
        %p515 = scmp.lt.s32.totalorder %s514, 7
        %s516 = scalar_select %p515, %s514, 7
        %s517 = smul.addr %s516, 8
        %s518 = scalar_lea.vmem %s6, %s517
        // Predicated region
        $region49: #{pose_transformer_forward.8} parent=43 // pred_check
          %p519 = pneg %p167
        $region50: #{pose_transformer_forward.8} parent=43 // pred_check_branch
          %521 = sbr.rel (%p519) target = $region52
        $region51: #{pose_transformer_forward.8} parent=43 // pred_region
          %s522 = smul.u32 4, %s18
        $region52: #{pose_transformer_forward.8} parent=43 // pred_fallthru
          _
      $region44: #{pose_transformer_forward.8} parent=5 // pred_fallthru
        _
      %p523 = scmp.le.s32.totalorder 2, %s13
      // Predicated region
      $region53: #{pose_transformer_forward.8} parent=5 // pred_check
        %p524 = pneg %p523
      $region54: #{pose_transformer_forward.8} parent=5 // pred_check_branch
        %526 = sbr.rel (%p524) target = $region56
      $region55: #{pose_transformer_forward.8} parent=5 // pred_region
        %s527 = ssub.s32 %s13, 2
        // Predicated region
        $region57: #{pose_transformer_forward.8} parent=55 // pred_check
          %p528 = pneg %p173
        $region58: #{pose_transformer_forward.8} parent=55 // pred_check_branch
          %530 = sbr.rel (%p528) target = $region60
        $region59: #{pose_transformer_forward.8} parent=55 // pred_region
          %s531 = smul.u32 4, %s19
          %p532 = scmp.lt.s32.totalorder %s531, 7
          %s533 = scalar_select %p532, %s531, 7
          %s534 = smul.addr %s533, 8
          %s535 = scalar_lea.vmem %s6, %s534
        $region60: #{pose_transformer_forward.8} parent=55 // pred_fallthru
          _
      $region56: #{pose_transformer_forward.8} parent=5 // pred_fallthru
        _
    $region6: #{pose_transformer_forward.8} parent=1 // loop_footer
      %s17 = sadd.s32 1, %s13
    $region7: #{pose_transformer_forward.8} parent=1 // loop_footer_branch
      %12 = sbr.rel target = $region3
    $region8: #{pose_transformer_forward.8} parent=1 // loop_exit
      _
    %536 = vsyncpa [#allocation3], 1
    %s537 = scalar_lea.sflag [#allocation3], 1
    %538 = vsyncpa %s537, 1

// kernel: pose_transformer_forward.9
$region0: #{pose_transformer_forward.9}
  #allocation0 [shape = 'u32[]', space=smem, size = 0x4, offset = 0x4, fixed_abs, tag = 'smem constant byte address 0x4 - core index']
  #allocation1 [shape = 'u32[144,128]{1,0:T(1,128)}', space=vmem, size = 0x12000, scoped, tag = 'internal scratch']
  %s0 = inlined_call_operand.vmem [shape: f32[2,32,128], index: 0, kind: input, shape index: {}]
  %s1 = inlined_call_operand.vmem [shape: f32[128,128], index: 1, kind: input, shape index: {}]
  %s2 = inlined_call_operand.vmem [shape: f32[128,128], index: 2, kind: input, shape index: {}]
  %s3 = inlined_call_operand.vmem [shape: f32[128,128], index: 3, kind: input, shape index: {}]
  %s4 = inlined_call_operand.vmem [shape: f32[1,128], index: 4, kind: input, shape index: {}]
  %s5 = inlined_call_operand.vmem [shape: f32[1,128], index: 5, kind: input, shape index: {}]
  %s6 = inlined_call_operand.vmem [shape: f32[1,128], index: 6, kind: input, shape index: {}]
  %s7 = inlined_call_operand.vmem [shape: f32[2,32,128], index: 7, kind: output, shape index: {}]
  %s8 = sld [smem:[#allocation0]]
  $region61: #{pose_transformer_forward.9} parent=0
    _
  %s10 = ssub.s32 1, %s8
  %s11 = scalar_select 0, %s10, %s8
  loop: start=0, step=1, limit=4
  $region2: #{pose_transformer_forward.9} parent=0 // loop_pre_header
    _
  $region3: #{pose_transformer_forward.9} parent=0 // loop_header
    %s13 = sphi 0, %s17
    %p14 = scmp.ge.s32.totalorder %s13, 4
    %s23 = sphi 0, %s25
    %s26 = sphi 0, %s23
    %s27 = sphi 0, %s26
    %s43 = sphi 0, %s27
    %s47 = sphi 0, %s47
    %s49 = sphi 0, %s47
    %s50 = sphi 0, %s49
    %s64 = sphi 0, %s50
    %s68 = sphi 0, %s68
    %s70 = sphi 0, %s68
    %s71 = sphi 0, %s70
    %s85 = sphi 0, %s71
    %s89 = sphi 0, %s89
    %s91 = sphi 0, %s89
    %s92 = sphi 0, %s91
    %s106 = sphi 0, %s92
    %s110 = sphi 0, %s110
    %s112 = sphi 0, %s110
    %s113 = sphi 0, %s112
    %s127 = sphi 0, %s113
    %s131 = sphi 0, %s131
    %s133 = sphi 0, %s131
    %s134 = sphi 0, %s133
    %s148 = sphi 0, %s134
    %s152 = sphi 0, %s152
    %s154 = sphi 0, %s152
    %s155 = sphi 0, %s154
    %s169 = sphi 0, %s155
    %s175 = sphi 0, %s177
    %s178 = sphi 0, %s175
    %s179 = sphi 0, %s178
    %s195 = sphi 0, %s179
  $region4: #{pose_transformer_forward.9} parent=0 // loop_header_branch
    %16 = sbr.rel (%p14) target = $region8
  $region5: #{pose_transformer_forward.9} parent=0 // loop_body
    %s18 = ssub.s32 %s13, 1
    %s19 = ssub.s32 %s13, 2
    %s20 = sadd.s32 %s13, 1
    %s21 = ssub.s32 %s13, %s20
    %p22 = scmp.eq.s32.totalorder %s21, 0
    %s24 = sadd.s32 %s23, 1
    %s25 = scalar_select %p22, %s23, %s24
    %p28 = pneg %p22
    %p29 = scmp.eq.s32.totalorder %s13, 1
    %p30 = por %p28, %p29
    %p31 = scmp.ne.s32.totalorder %s23, %s26
    %p32 = scmp.eq.s32.totalorder %s13, 0
    %p33 = por %p31, %p32
    %p34 = scmp.ne.s32.totalorder %s23, %s26
    %p35 = scmp.eq.s32.totalorder %s18, 1
    %p36 = por %p34, %p35
    %p37 = scmp.ne.s32.totalorder %s26, %s27
    %p38 = scmp.eq.s32.totalorder %s18, 0
    %p39 = por %p37, %p38
    %p40 = scmp.ne.s32.totalorder %s26, %s27
    %p41 = scmp.eq.s32.totalorder %s19, 1
    %p42 = por %p40, %p41
    %p44 = scmp.ne.s32.totalorder %s27, %s43
    %p45 = scmp.eq.s32.totalorder %s19, 0
    %p46 = por %p44, %p45
    %s48 = sadd.s32 %s47, 1
    %p51 = scmp.eq.s32.totalorder %s13, 1
    %p52 = scmp.ne.s32.totalorder %s47, %s49
    %p53 = scmp.eq.s32.totalorder %s13, 0
    %p54 = por %p52, %p53
    %p55 = scmp.ne.s32.totalorder %s47, %s49
    %p56 = scmp.eq.s32.totalorder %s18, 1
    %p57 = por %p55, %p56
    %p58 = scmp.ne.s32.totalorder %s49, %s50
    %p59 = scmp.eq.s32.totalorder %s18, 0
    %p60 = por %p58, %p59
    %p61 = scmp.ne.s32.totalorder %s49, %s50
    %p62 = scmp.eq.s32.totalorder %s19, 1
    %p63 = por %p61, %p62
    %p65 = scmp.ne.s32.totalorder %s50, %s64
    %p66 = scmp.eq.s32.totalorder %s19, 0
    %p67 = por %p65, %p66
    %s69 = sadd.s32 %s68, 1
    %p72 = scmp.eq.s32.totalorder %s13, 1
    %p73 = scmp.ne.s32.totalorder %s68, %s70
    %p74 = scmp.eq.s32.totalorder %s13, 0
    %p75 = por %p73, %p74
    %p76 = scmp.ne.s32.totalorder %s68, %s70
    %p77 = scmp.eq.s32.totalorder %s18, 1
    %p78 = por %p76, %p77
    %p79 = scmp.ne.s32.totalorder %s70, %s71
    %p80 = scmp.eq.s32.totalorder %s18, 0
    %p81 = por %p79, %p80
    %p82 = scmp.ne.s32.totalorder %s70, %s71
    %p83 = scmp.eq.s32.totalorder %s19, 1
    %p84 = por %p82, %p83
    %p86 = scmp.ne.s32.totalorder %s71, %s85
    %p87 = scmp.eq.s32.totalorder %s19, 0
    %p88 = por %p86, %p87
    %s90 = sadd.s32 %s89, 1
    %p93 = scmp.eq.s32.totalorder %s13, 1
    %p94 = scmp.ne.s32.totalorder %s89, %s91
    %p95 = scmp.eq.s32.totalorder %s13, 0
    %p96 = por %p94, %p95
    %p97 = scmp.ne.s32.totalorder %s89, %s91
    %p98 = scmp.eq.s32.totalorder %s18, 1
    %p99 = por %p97, %p98
    %p100 = scmp.ne.s32.totalorder %s91, %s92
    %p101 = scmp.eq.s32.totalorder %s18, 0
    %p102 = por %p100, %p101
    %p103 = scmp.ne.s32.totalorder %s91, %s92
    %p104 = scmp.eq.s32.totalorder %s19, 1
    %p105 = por %p103, %p104
    %p107 = scmp.ne.s32.totalorder %s92, %s106
    %p108 = scmp.eq.s32.totalorder %s19, 0
    %p109 = por %p107, %p108
    %s111 = sadd.s32 %s110, 1
    %p114 = scmp.eq.s32.totalorder %s13, 1
    %p115 = scmp.ne.s32.totalorder %s110, %s112
    %p116 = scmp.eq.s32.totalorder %s13, 0
    %p117 = por %p115, %p116
    %p118 = scmp.ne.s32.totalorder %s110, %s112
    %p119 = scmp.eq.s32.totalorder %s18, 1
    %p120 = por %p118, %p119
    %p121 = scmp.ne.s32.totalorder %s112, %s113
    %p122 = scmp.eq.s32.totalorder %s18, 0
    %p123 = por %p121, %p122
    %p124 = scmp.ne.s32.totalorder %s112, %s113
    %p125 = scmp.eq.s32.totalorder %s19, 1
    %p126 = por %p124, %p125
    %p128 = scmp.ne.s32.totalorder %s113, %s127
    %p129 = scmp.eq.s32.totalorder %s19, 0
    %p130 = por %p128, %p129
    %s132 = sadd.s32 %s131, 1
    %p135 = scmp.eq.s32.totalorder %s13, 1
    %p136 = scmp.ne.s32.totalorder %s131, %s133
    %p137 = scmp.eq.s32.totalorder %s13, 0
    %p138 = por %p136, %p137
    %p139 = scmp.ne.s32.totalorder %s131, %s133
    %p140 = scmp.eq.s32.totalorder %s18, 1
    %p141 = por %p139, %p140
    %p142 = scmp.ne.s32.totalorder %s133, %s134
    %p143 = scmp.eq.s32.totalorder %s18, 0
    %p144 = por %p142, %p143
    %p145 = scmp.ne.s32.totalorder %s133, %s134
    %p146 = scmp.eq.s32.totalorder %s19, 1
    %p147 = por %p145, %p146
    %p149 = scmp.ne.s32.totalorder %s134, %s148
    %p150 = scmp.eq.s32.totalorder %s19, 0
    %p151 = por %p149, %p150
    %s153 = sadd.s32 %s152, 1
    %p156 = scmp.eq.s32.totalorder %s13, 1
    %p157 = scmp.ne.s32.totalorder %s152, %s154
    %p158 = scmp.eq.s32.totalorder %s13, 0
    %p159 = por %p157, %p158
    %p160 = scmp.ne.s32.totalorder %s152, %s154
    %p161 = scmp.eq.s32.totalorder %s18, 1
    %p162 = por %p160, %p161
    %p163 = scmp.ne.s32.totalorder %s154, %s155
    %p164 = scmp.eq.s32.totalorder %s18, 0
    %p165 = por %p163, %p164
    %p166 = scmp.ne.s32.totalorder %s154, %s155
    %p167 = scmp.eq.s32.totalorder %s19, 1
    %p168 = por %p166, %p167
    %p170 = scmp.ne.s32.totalorder %s155, %s169
    %p171 = scmp.eq.s32.totalorder %s19, 0
    %p172 = por %p170, %p171
    %s173 = ssub.s32 %s13, %s20
    %p174 = scmp.eq.s32.totalorder %s173, 0
    %s176 = sadd.s32 %s175, 1
    %s177 = scalar_select %p174, %s175, %s176
    %p180 = pneg %p174
    %p181 = scmp.eq.s32.totalorder %s13, 1
    %p182 = por %p180, %p181
    %p183 = scmp.ne.s32.totalorder %s175, %s178
    %p184 = scmp.eq.s32.totalorder %s13, 0
    %p185 = por %p183, %p184
    %p186 = scmp.ne.s32.totalorder %s175, %s178
    %p187 = scmp.eq.s32.totalorder %s18, 1
    %p188 = por %p186, %p187
    %p189 = scmp.ne.s32.totalorder %s178, %s179
    %p190 = scmp.eq.s32.totalorder %s18, 0
    %p191 = por %p189, %p190
    %p192 = scmp.ne.s32.totalorder %s178, %s179
    %p193 = scmp.eq.s32.totalorder %s19, 1
    %p194 = por %p192, %p193
    %p196 = scmp.ne.s32.totalorder %s179, %s195
    %p197 = scmp.eq.s32.totalorder %s19, 0
    %p198 = por %p196, %p197
    %p199 = scmp.le.s32.totalorder 1, %s13
    %p200 = scmp.lt.s32.totalorder %s13, 3
    %p201 = pnand %p199, %p200
    %p202 = pneg %p201
    // Predicated region
    $region9: #{pose_transformer_forward.9} parent=5 // pred_check
      _
    $region10: #{pose_transformer_forward.9} parent=5 // pred_check_branch
      %204 = sbr.rel (%p201) target = $region12
    $region11: #{pose_transformer_forward.9} parent=5 // pred_region
      %s205 = ssub.s32 %s13, 1
      // Predicated region
      $region13: #{pose_transformer_forward.9} parent=11 // pred_check
        %p206 = pneg %p60
      $region14: #{pose_transformer_forward.9} parent=11 // pred_check_branch
        %208 = sbr.rel (%p206) target = $region16
      $region15: #{pose_transformer_forward.9} parent=11 // pred_region
        _
      $region16: #{pose_transformer_forward.9} parent=11 // pred_fallthru
        _
      // Predicated region
      $region17: #{pose_transformer_forward.9} parent=11 // pred_check
        %p209 = pneg %p81
      $region18: #{pose_transformer_forward.9} parent=11 // pred_check_branch
        %211 = sbr.rel (%p209) target = $region20
      $region19: #{pose_transformer_forward.9} parent=11 // pred_region
        _
      $region20: #{pose_transformer_forward.9} parent=11 // pred_fallthru
        _
      // Predicated region
      $region21: #{pose_transformer_forward.9} parent=11 // pred_check
        %p212 = pneg %p102
      $region22: #{pose_transformer_forward.9} parent=11 // pred_check_branch
        %214 = sbr.rel (%p212) target = $region24
      $region23: #{pose_transformer_forward.9} parent=11 // pred_region
        _
      $region24: #{pose_transformer_forward.9} parent=11 // pred_fallthru
        _
      // Predicated region
      $region25: #{pose_transformer_forward.9} parent=11 // pred_check
        %p215 = pneg %p123
      $region26: #{pose_transformer_forward.9} parent=11 // pred_check_branch
        %217 = sbr.rel (%p215) target = $region28
      $region27: #{pose_transformer_forward.9} parent=11 // pred_region
        _
      $region28: #{pose_transformer_forward.9} parent=11 // pred_fallthru
        _
      // Predicated region
      $region29: #{pose_transformer_forward.9} parent=11 // pred_check
        %p218 = pneg %p144
      $region30: #{pose_transformer_forward.9} parent=11 // pred_check_branch
        %220 = sbr.rel (%p218) target = $region32
      $region31: #{pose_transformer_forward.9} parent=11 // pred_region
        _
      $region32: #{pose_transformer_forward.9} parent=11 // pred_fallthru
        _
      // Predicated region
      $region33: #{pose_transformer_forward.9} parent=11 // pred_check
        %p221 = pneg %p165
      $region34: #{pose_transformer_forward.9} parent=11 // pred_check_branch
        %223 = sbr.rel (%p221) target = $region36
      $region35: #{pose_transformer_forward.9} parent=11 // pred_region
        _
      $region36: #{pose_transformer_forward.9} parent=11 // pred_fallthru
        _
    $region12: #{pose_transformer_forward.9} parent=5 // pred_fallthru
      _
    %p224 = scmp.lt.s32.totalorder %s13, 2
    // Predicated region
    $region37: #{pose_transformer_forward.9} parent=5 // pred_check
      %p225 = pneg %p224
    $region38: #{pose_transformer_forward.9} parent=5 // pred_check_branch
      %227 = sbr.rel (%p225) target = $region40
    $region39: #{pose_transformer_forward.9} parent=5 // pred_region
      // Predicated region
      $region41: #{pose_transformer_forward.9} parent=39 // pred_check
        %p228 = pneg %p33
      $region42: #{pose_transformer_forward.9} parent=39 // pred_check_branch
        %230 = sbr.rel (%p228) target = $region44
      $region43: #{pose_transformer_forward.9} parent=39 // pred_region
        %p231 = scmp.lt.s32.totalorder %s13, 1
        %s232 = scalar_select %p231, %s13, 1
        %s233 = smul.addr %s232, 4
        %s234 = smul.addr %s233, 8
        %s235 = scalar_lea.vmem %s0, %s234
      $region44: #{pose_transformer_forward.9} parent=39 // pred_fallthru
        _
    $region40: #{pose_transformer_forward.9} parent=5 // pred_fallthru
      _
    %p236 = scmp.le.s32.totalorder 1, %s13
    %p237 = scmp.lt.s32.totalorder %s13, 3
    %p238 = pnand %p236, %p237
    %p239 = pneg %p238
    // Predicated region
    $region45: #{pose_transformer_forward.9} parent=5 // pred_check
      _
    $region46: #{pose_transformer_forward.9} parent=5 // pred_check_branch
      %241 = sbr.rel (%p238) target = $region48
    $region47: #{pose_transformer_forward.9} parent=5 // pred_region
      %s242 = ssub.s32 %s13, 1
      %p243 = scmp.lt.s32.totalorder %s18, 1
      %s244 = scalar_select %p243, %s18, 1
      %s245 = smul.addr %s244, 4
      %s246 = smul.addr %s245, 8
      %s247 = scalar_lea.vmem %s0, %s246
      %p248 = pneg %p39
      %p249 = pneg %p36
      %p250 = pneg %p60
      %p251 = pneg %p57
      %p252 = pneg %p81
      %p253 = pneg %p78
      %p254 = pneg %p102
      %p255 = pneg %p99
      %p256 = pneg %p123
      %p257 = pneg %p120
      %p258 = pneg %p144
      %p259 = pneg %p141
      %p260 = pneg %p165
      %p261 = pneg %p162
      %p262 = pneg %p191
      %p263 = pneg %p188
      %p264 = scmp.lt.s32.totalorder %s18, 1
      %s265 = scalar_select %p264, %s18, 1
      %s266 = smul.addr %s265, 4
      %s267 = smul.addr %s266, 8
      %s268 = scalar_lea.vmem %s7, %s267
      %p269 = scmp.lt.s32.totalorder %s18, 1
      %s270 = scalar_select %p269, %s18, 1
      %s271 = smul.addr %s270, 4
      %s272 = smul.addr %s271, 8
      %s273 = scalar_lea.vmem %s0, %s272
      %p274 = scmp.lt.s32.totalorder %s18, 1
      %s275 = scalar_select %p274, %s18, 1
      %s276 = smul.addr %s275, 4
      %s277 = smul.addr %s276, 8
      %s278 = scalar_lea.vmem %s7, %s277
      %v279 = vld [vmem:[%s273] sm:$0xff]
      %v280 = vld [vmem:[%s273 + $0x8] sm:$0xff]
      %v281 = vld [vmem:[%s273 + $0x10] sm:$0xff]
      %v282 = vld [vmem:[%s273 + $0x18] sm:$0xff]
      %v283 = vld [vmem:[%s1] sm:$0xff]
      %v284 = vld [vmem:[%s1 + $0x8] sm:$0xff]
      %v285 = vld [vmem:[%s1 + $0x10] sm:$0xff]
      %v286 = vld [vmem:[%s1 + $0x18] sm:$0xff]
      %v287 = vld [vmem:[%s1 + $0x20] sm:$0xff]
      %v288 = vld [vmem:[%s1 + $0x28] sm:$0xff]
      %v289 = vld [vmem:[%s1 + $0x30] sm:$0xff]
      %v290 = vld [vmem:[%s1 + $0x38] sm:$0xff]
      %v291 = vld [vmem:[%s1 + $0x40] sm:$0xff]
      %v292 = vld [vmem:[%s1 + $0x48] sm:$0xff]
      %v293 = vld [vmem:[%s1 + $0x50] sm:$0xff]
      %v294 = vld [vmem:[%s1 + $0x58] sm:$0xff]
      %v295 = vld [vmem:[%s1 + $0x60] sm:$0xff]
      %v296 = vld [vmem:[%s1 + $0x68] sm:$0xff]
      %v297 = vld [vmem:[%s1 + $0x70] sm:$0xff]
      %v298 = vld [vmem:[%s1 + $0x78] sm:$0xff]
      %v299 = vld [vmem:[%s4] sm:$0x1]
      %v301 = vlaneseq
      %v302 = vshrl.u32 %v301, 7
      %v303 = vsub.s32 0, %v302
      %v304 = vrot.slane %v299, %v303
      %306 = vmatprep.subr.mxu0 0.0
      %307 = vmatpush1.msra.mxu0 %v283
      %308 = vmatprep.subr.mxu0 0.0
      %309 = vmatpush1.msra.mxu0 %v284
      %310 = vmatprep.subr.mxu0 0.0
      %311 = vmatpush1.msra.mxu0 %v285
      %312 = vmatprep.subr.mxu0 0.0
      %313 = vmatpush1.msra.mxu0 %v286
      %314 = vmatprep.subr.mxu0 0.0
      %315 = vmatpush1.msra.mxu0 %v287
      %316 = vmatprep.subr.mxu0 0.0
      %317 = vmatpush1.msra.mxu0 %v288
      %318 = vmatprep.subr.mxu0 0.0
      %319 = vmatpush1.msra.mxu0 %v289
      %320 = vmatprep.subr.mxu0 0.0
      %321 = vmatpush1.msra.mxu0 %v290
      %322 = vmatprep.subr.mxu0 0.0
      %323 = vmatpush1.msra.mxu0 %v291
      %324 = vmatprep.subr.mxu0 0.0
      %325 = vmatpush1.msra.mxu0 %v292
      %326 = vmatprep.subr.mxu0 0.0
      %327 = vmatpush1.msra.mxu0 %v293
      %328 = vmatprep.subr.mxu0 0.0
      %329 = vmatpush1.msra.mxu0 %v294
      %330 = vmatprep.subr.mxu0 0.0
      %331 = vmatpush1.msra.mxu0 %v295
      %332 = vmatprep.subr.mxu0 0.0
      %333 = vmatpush1.msra.mxu0 %v296
      %334 = vmatprep.subr.mxu0 0.0
      %335 = vmatpush1.msra.mxu0 %v297
      %336 = vmatprep.subr.mxu0 0.0
      %337 = vmatpush1.msra.mxu0 %v298
      %338 = vmatprep.subr.mxu0 0.0
      %339 = vmatpush1.msra.mxu0 0.0
      %340 = vmatprep.subr.mxu0 0.0
      %341 = vmatpush1.msra.mxu0 0.0
      %342 = vmatprep.subr.mxu0 0.0
      %343 = vmatpush1.msra.mxu0 0.0
      %344 = vmatprep.subr.mxu0 0.0
      %345 = vmatpush1.msra.mxu0 0.0
      %346 = vmatprep.subr.mxu0 0.0
      %347 = vmatpush1.msra.mxu0 0.0
      %348 = vmatprep.subr.mxu0 0.0
      %349 = vmatpush1.msra.mxu0 0.0
      %350 = vmatprep.subr.mxu0 0.0
      %351 = vmatpush1.msra.mxu0 0.0
      %352 = vmatprep.subr.mxu0 0.0
      %353 = vmatpush1.msra.mxu0 0.0
      %354 = vmatprep.subr.mxu0 0.0
      %355 = vmatpush1.msra.mxu0 0.0
      %356 = vmatprep.subr.mxu0 0.0
      %357 = vmatpush1.msra.mxu0 0.0
      %358 = vmatprep.subr.mxu0 0.0
      %359 = vmatpush1.msra.mxu0 0.0
      %360 = vmatprep.subr.mxu0 0.0
      %361 = vmatpush1.msra.mxu0 0.0
      %362 = vmatprep.subr.mxu0 0.0
      %363 = vmatpush1.msra.mxu0 0.0
      %364 = vmatprep.subr.mxu0 0.0
      %365 = vmatpush1.msra.mxu0 0.0
      %366 = vmatprep.subr.mxu0 0.0
      %367 = vmatpush1.msra.mxu0 0.0
      %368 = vmatprep.subr.mxu0 0.0
      %369 = vmatpush1.msra.mxu0 0.0
      %370 = vmatprep.mubr.f32.mxu0 0.0
      %371 = vmatmul.mubr.f32.gmra.mrb[0].mxu0 %v279
      %v372 = vpop.f32.mrb[0].mxu0
      %v373 = vadd.f32 %v304, %v372
      %v374 = vpop.f32.mrb[0].mxu0
      %375 = vmatprep.mubr.f32.mxu0 0.0
      %376 = vmatmul.mubr.f32.gmra.mrb[0].mxu0 %v280
      %v377 = vpop.f32.mrb[0].mxu0
      %v378 = vadd.f32 %v304, %v377
      %v379 = vpop.f32.mrb[0].mxu0
      %380 = vmatprep.mubr.f32.mxu0 0.0
      %381 = vmatmul.mubr.f32.gmra.mrb[0].mxu0 %v281
      %v382 = vpop.f32.mrb[0].mxu0
      %v383 = vadd.f32 %v304, %v382
      %v384 = vpop.f32.mrb[0].mxu0
      %385 = vmatprep.mubr.f32.mxu0 0.0
      %386 = vmatmul.mubr.f32.gmra.mrb[0].mxu0 %v282
      %v387 = vpop.f32.mrb[0].mxu0
      %v388 = vadd.f32 %v304, %v387
      %v389 = vpop.f32.mrb[0].mxu0
      %390 = vdwg.mxu0
      %v391 = vmul.f32 %v373, 0.17677669
      %v392 = vmul.f32 %v378, 0.17677669
      %v393 = vmul.f32 %v383, 0.17677669
      %v394 = vmul.f32 %v388, 0.17677669
      %v395 = vld [vmem:[%s2] sm:$0xff]
      %v396 = vld [vmem:[%s2 + $0x8] sm:$0xff]
      %v397 = vld [vmem:[%s2 + $0x10] sm:$0xff]
      %v398 = vld [vmem:[%s2 + $0x18] sm:$0xff]
      %v399 = vld [vmem:[%s2 + $0x20] sm:$0xff]
      %v400 = vld [vmem:[%s2 + $0x28] sm:$0xff]
      %v401 = vld [vmem:[%s2 + $0x30] sm:$0xff]
      %v402 = vld [vmem:[%s2 + $0x38] sm:$0xff]
      %v403 = vld [vmem:[%s2 + $0x40] sm:$0xff]
      %v404 = vld [vmem:[%s2 + $0x48] sm:$0xff]
      %v405 = vld [vmem:[%s2 + $0x50] sm:$0xff]
      %v406 = vld [vmem:[%s2 + $0x58] sm:$0xff]
      %v407 = vld [vmem:[%s2 + $0x60] sm:$0xff]
      %v408 = vld [vmem:[%s2 + $0x68] sm:$0xff]
      %v409 = vld [vmem:[%s2 + $0x70] sm:$0xff]
      %v410 = vld [vmem:[%s2 + $0x78] sm:$0xff]
      %v411 = vld [vmem:[%s5] sm:$0x1]
      %v413 = vlaneseq
      %v414 = vshrl.u32 %v413, 7
      %v415 = vsub.s32 0, %v414
      %v416 = vrot.slane %v411, %v415
      %418 = vmatprep.subr.mxu0 0.0
      %419 = vmatpush1.msra.mxu0 %v395
      %420 = vmatprep.subr.mxu0 0.0
      %421 = vmatpush1.msra.mxu0 %v396
      %422 = vmatprep.subr.mxu0 0.0
      %423 = vmatpush1.msra.mxu0 %v397
      %424 = vmatprep.subr.mxu0 0.0
      %425 = vmatpush1.msra.mxu0 %v398
      %426 = vmatprep.subr.mxu0 0.0
      %427 = vmatpush1.msra.mxu0 %v399
      %428 = vmatprep.subr.mxu0 0.0
      %429 = vmatpush1.msra.mxu0 %v400
      %430 = vmatprep.subr.mxu0 0.0
      %431 = vmatpush1.msra.mxu0 %v401
      %432 = vmatprep.subr.mxu0 0.0
      %433 = vmatpush1.msra.mxu0 %v402
      %434 = vmatprep.subr.mxu0 0.0
      %435 = vmatpush1.msra.mxu0 %v403
      %436 = vmatprep.subr.mxu0 0.0
      %437 = vmatpush1.msra.mxu0 %v404
      %438 = vmatprep.subr.mxu0 0.0
      %439 = vmatpush1.msra.mxu0 %v405
      %440 = vmatprep.subr.mxu0 0.0
      %441 = vmatpush1.msra.mxu0 %v406
      %442 = vmatprep.subr.mxu0 0.0
      %443 = vmatpush1.msra.mxu0 %v407
      %444 = vmatprep.subr.mxu0 0.0
      %445 = vmatpush1.msra.mxu0 %v408
      %446 = vmatprep.subr.mxu0 0.0
      %447 = vmatpush1.msra.mxu0 %v409
      %448 = vmatprep.subr.mxu0 0.0
      %449 = vmatpush1.msra.mxu0 %v410
      %450 = vmatprep.subr.mxu0 0.0
      %451 = vmatpush1.msra.mxu0 0.0
      %452 = vmatprep.subr.mxu0 0.0
      %453 = vmatpush1.msra.mxu0 0.0
      %454 = vmatprep.subr.mxu0 0.0
      %455 = vmatpush1.msra.mxu0 0.0
      %456 = vmatprep.subr.mxu0 0.0
      %457 = vmatpush1.msra.mxu0 0.0
      %458 = vmatprep.subr.mxu0 0.0
      %459 = vmatpush1.msra.mxu0 0.0
      %460 = vmatprep.subr.mxu0 0.0
      %461 = vmatpush1.msra.mxu0 0.0
      %462 = vmatprep.subr.mxu0 0.0
      %463 = vmatpush1.msra.mxu0 0.0
      %464 = vmatprep.subr.mxu0 0.0
      %465 = vmatpush1.msra.mxu0 0.0
      %466 = vmatprep.subr.mxu0 0.0
      %467 = vmatpush1.msra.mxu0 0.0
      %468 = vmatprep.subr.mxu0 0.0
      %469 = vmatpush1.msra.mxu0 0.0
      %470 = vmatprep.subr.mxu0 0.0
      %471 = vmatpush1.msra.mxu0 0.0
      %472 = vmatprep.subr.mxu0 0.0
      %473 = vmatpush1.msra.mxu0 0.0
      %474 = vmatprep.subr.mxu0 0.0
      %475 = vmatpush1.msra.mxu0 0.0
      %476 = vmatprep.subr.mxu0 0.0
      %477 = vmatpush1.msra.mxu0 0.0
      %478 = vmatprep.subr.mxu0 0.0
      %479 = vmatpush1.msra.mxu0 0.0
      %480 = vmatprep.subr.mxu0 0.0
      %481 = vmatpush1.msra.mxu0 0.0
      %482 = vmatprep.mubr.f32.mxu0 0.0
      %483 = vmatmul.mubr.f32.gmra.mrb[0].mxu0 %v279
      %v484 = vpop.f32.mrb[0].mxu0
      %v485 = vadd.f32 %v416, %v484
      %v486 = vpop.f32.mrb[0].mxu0
      %487 = vmatprep.mubr.f32.mxu0 0.0
      %488 = vmatmul.mubr.f32.gmra.mrb[0].mxu0 %v280
      %v489 = vpop.f32.mrb[0].mxu0
      %v490 = vadd.f32 %v416, %v489
      %v491 = vpop.f32.mrb[0].mxu0
      %492 = vmatprep.mubr.f32.mxu0 0.0
      %493 = vmatmul.mubr.f32.gmra.mrb[0].mxu0 %v281
      %v494 = vpop.f32.mrb[0].mxu0
      %v495 = vadd.f32 %v416, %v494
      %v496 = vpop.f32.mrb[0].mxu0
      %497 = vmatprep.mubr.f32.mxu0 0.0
      %498 = vmatmul.mubr.f32.gmra.mrb[0].mxu0 %v282
      %v499 = vpop.f32.mrb[0].mxu0
      %v500 = vadd.f32 %v416, %v499
      %v501 = vpop.f32.mrb[0].mxu0
      %502 = vdwg.mxu0
      %v503 = vld [vmem:[%s3] sm:$0xff]
      %v504 = vld [vmem:[%s3 + $0x8] sm:$0xff]
      %v505 = vld [vmem:[%s3 + $0x10] sm:$0xff]
      %v506 = vld [vmem:[%s3 + $0x18] sm:$0xff]
      %v507 = vld [vmem:[%s3 + $0x20] sm:$0xff]
      %v508 = vld [vmem:[%s3 + $0x28] sm:$0xff]
      %v509 = vld [vmem:[%s3 + $0x30] sm:$0xff]
      %v510 = vld [vmem:[%s3 + $0x38] sm:$0xff]
      %v511 = vld [vmem:[%s3 + $0x40] sm:$0xff]
      %v512 = vld [vmem:[%s3 + $0x48] sm:$0xff]
      %v513 = vld [vmem:[%s3 + $0x50] sm:$0xff]
      %v514 = vld [vmem:[%s3 + $0x58] sm:$0xff]
      %v515 = vld [vmem:[%s3 + $0x60] sm:$0xff]
      %v516 = vld [vmem:[%s3 + $0x68] sm:$0xff]
      %v517 = vld [vmem:[%s3 + $0x70] sm:$0xff]
      %v518 = vld [vmem:[%s3 + $0x78] sm:$0xff]
      %v519 = vld [vmem:[%s6] sm:$0x1]
      %v521 = vlaneseq
      %v522 = vshrl.u32 %v521, 7
      %v523 = vsub.s32 0, %v522
      %v524 = vrot.slane %v519, %v523
      %526 = vmatprep.subr.mxu0 0.0
      %527 = vmatpush1.msra.mxu0 %v503
      %528 = vmatprep.subr.mxu0 0.0
      %529 = vmatpush1.msra.mxu0 %v504
      %530 = vmatprep.subr.mxu0 0.0
      %531 = vmatpush1.msra.mxu0 %v505
      %532 = vmatprep.subr.mxu0 0.0
      %533 = vmatpush1.msra.mxu0 %v506
      %534 = vmatprep.subr.mxu0 0.0
      %535 = vmatpush1.msra.mxu0 %v507
      %536 = vmatprep.subr.mxu0 0.0
      %537 = vmatpush1.msra.mxu0 %v508
      %538 = vmatprep.subr.mxu0 0.0
      %539 = vmatpush1.msra.mxu0 %v509
      %540 = vmatprep.subr.mxu0 0.0
      %541 = vmatpush1.msra.mxu0 %v510
      %542 = vmatprep.subr.mxu0 0.0
      %543 = vmatpush1.msra.mxu0 %v511
      %544 = vmatprep.subr.mxu0 0.0
      %545 = vmatpush1.msra.mxu0 %v512
      %546 = vmatprep.subr.mxu0 0.0
      %547 = vmatpush1.msra.mxu0 %v513
      %548 = vmatprep.subr.mxu0 0.0
      %549 = vmatpush1.msra.mxu0 %v514
      %550 = vmatprep.subr.mxu0 0.0
      %551 = vmatpush1.msra.mxu0 %v515
      %552 = vmatprep.subr.mxu0 0.0
      %553 = vmatpush1.msra.mxu0 %v516
      %554 = vmatprep.subr.mxu0 0.0
      %555 = vmatpush1.msra.mxu0 %v517
      %556 = vmatprep.subr.mxu0 0.0
      %557 = vmatpush1.msra.mxu0 %v518
      %558 = vmatprep.subr.mxu0 0.0
      %559 = vmatpush1.msra.mxu0 0.0
      %560 = vmatprep.subr.mxu0 0.0
      %561 = vmatpush1.msra.mxu0 0.0
      %562 = vmatprep.subr.mxu0 0.0
      %563 = vmatpush1.msra.mxu0 0.0
      %564 = vmatprep.subr.mxu0 0.0
      %565 = vmatpush1.msra.mxu0 0.0
      %566 = vmatprep.subr.mxu0 0.0
      %567 = vmatpush1.msra.mxu0 0.0
      %568 = vmatprep.subr.mxu0 0.0
      %569 = vmatpush1.msra.mxu0 0.0
      %570 = vmatprep.subr.mxu0 0.0
      %571 = vmatpush1.msra.mxu0 0.0
      %572 = vmatprep.subr.mxu0 0.0
      %573 = vmatpush1.msra.mxu0 0.0
      %574 = vmatprep.subr.mxu0 0.0
      %575 = vmatpush1.msra.mxu0 0.0
      %576 = vmatprep.subr.mxu0 0.0
      %577 = vmatpush1.msra.mxu0 0.0
      %578 = vmatprep.subr.mxu0 0.0
      %579 = vmatpush1.msra.mxu0 0.0
      %580 = vmatprep.subr.mxu0 0.0
      %581 = vmatpush1.msra.mxu0 0.0
      %582 = vmatprep.subr.mxu0 0.0
      %583 = vmatpush1.msra.mxu0 0.0
      %584 = vmatprep.subr.mxu0 0.0
      %585 = vmatpush1.msra.mxu0 0.0
      %586 = vmatprep.subr.mxu0 0.0
      %587 = vmatpush1.msra.mxu0 0.0
      %588 = vmatprep.subr.mxu0 0.0
      %589 = vmatpush1.msra.mxu0 0.0
      %590 = vmatprep.mubr.f32.mxu0 0.0
      %591 = vmatmul.mubr.f32.gmra.mrb[0].mxu0 %v279
      %v592 = vpop.f32.mrb[0].mxu0
      %v593 = vadd.f32 %v524, %v592
      %v594 = vpop.f32.mrb[0].mxu0
      %595 = vmatprep.mubr.f32.mxu0 0.0
      %596 = vmatmul.mubr.f32.gmra.mrb[0].mxu0 %v280
      %v597 = vpop.f32.mrb[0].mxu0
      %v598 = vadd.f32 %v524, %v597
      %v599 = vpop.f32.mrb[0].mxu0
      %600 = vmatprep.mubr.f32.mxu0 0.0
      %601 = vmatmul.mubr.f32.gmra.mrb[0].mxu0 %v281
      %v602 = vpop.f32.mrb[0].mxu0
      %v603 = vadd.f32 %v524, %v602
      %v604 = vpop.f32.mrb[0].mxu0
      %605 = vmatprep.mubr.f32.mxu0 0.0
      %606 = vmatmul.mubr.f32.gmra.mrb[0].mxu0 %v282
      %v607 = vpop.f32.mrb[0].mxu0
      %v608 = vadd.f32 %v524, %v607
      %v609 = vpop.f32.mrb[0].mxu0
      %610 = vdwg.mxu0
      %vm611 = vcmask 261120
      %v613 = vsel %vm611, %v391, 0
      %v616 = vsel %vm611, %v392, 0
      %v619 = vsel %vm611, %v393, 0
      %v622 = vsel %vm611, %v394, 0
      %v625 = vsel %vm611, %v485, 0
      %v628 = vsel %vm611, %v490, 0
      %v631 = vsel %vm611, %v495, 0
      %v634 = vsel %vm611, %v500, 0
      %636 = vmatprep.subr.mxu0 0.0
      %637 = vmatpush1.xpose.msra.mxu0 %v625
      %638 = vmatprep.subr.mxu0 0.0
      %639 = vmatpush1.xpose.msra.mxu0 %v628
      %640 = vmatprep.subr.mxu0 0.0
      %641 = vmatpush1.xpose.msra.mxu0 %v631
      %642 = vmatprep.subr.mxu0 0.0
      %643 = vmatpush1.xpose.msra.mxu0 %v634
      %644 = vmatprep.subr.mxu0 0.0
      %645 = vmatpush1.xpose.msra.mxu0 0.0
      %646 = vmatprep.subr.mxu0 0.0
      %647 = vmatpush1.xpose.msra.mxu0 0.0
      %648 = vmatprep.subr.mxu0 0.0
      %649 = vmatpush1.xpose.msra.mxu0 0.0
      %650 = vmatprep.subr.mxu0 0.0
      %651 = vmatpush1.xpose.msra.mxu0 0.0
      %652 = vmatprep.subr.mxu0 0.0
      %653 = vmatpush1.xpose.msra.mxu0 0.0
      %654 = vmatprep.subr.mxu0 0.0
      %655 = vmatpush1.xpose.msra.mxu0 0.0
      %656 = vmatprep.subr.mxu0 0.0
      %657 = vmatpush1.xpose.msra.mxu0 0.0
      %658 = vmatprep.subr.mxu0 0.0
      %659 = vmatpush1.xpose.msra.mxu0 0.0
      %660 = vmatprep.subr.mxu0 0.0
      %661 = vmatpush1.xpose.msra.mxu0 0.0
      %662 = vmatprep.subr.mxu0 0.0
      %663 = vmatpush1.xpose.msra.mxu0 0.0
      %664 = vmatprep.subr.mxu0 0.0
      %665 = vmatpush1.xpose.msra.mxu0 0.0
      %666 = vmatprep.subr.mxu0 0.0
      %667 = vmatpush1.xpose.msra.mxu0 0.0
      %668 = vmatprep.subr.mxu0 0.0
      %669 = vmatpush1.xpose.msra.mxu0 0.0
      %670 = vmatprep.subr.mxu0 0.0
      %671 = vmatpush1.xpose.msra.mxu0 0.0
      %672 = vmatprep.subr.mxu0 0.0
      %673 = vmatpush1.xpose.msra.mxu0 0.0
      %674 = vmatprep.subr.mxu0 0.0
      %675 = vmatpush1.xpose.msra.mxu0 0.0
      %676 = vmatprep.subr.mxu0 0.0
      %677 = vmatpush1.xpose.msra.mxu0 0.0
      %678 = vmatprep.subr.mxu0 0.0
      %679 = vmatpush1.xpose.msra.mxu0 0.0
      %680 = vmatprep.subr.mxu0 0.0
      %681 = vmatpush1.xpose.msra.mxu0 0.0
      %682 = vmatprep.subr.mxu0 0.0
      %683 = vmatpush1.xpose.msra.mxu0 0.0
      %684 = vmatprep.subr.mxu0 0.0
      %685 = vmatpush1.xpose.msra.mxu0 0.0
      %686 = vmatprep.subr.mxu0 0.0
      %687 = vmatpush1.xpose.msra.mxu0 0.0
      %688 = vmatprep.subr.mxu0 0.0
      %689 = vmatpush1.xpose.msra.mxu0 0.0
      %690 = vmatprep.subr.mxu0 0.0
      %691 = vmatpush1.xpose.msra.mxu0 0.0
      %692 = vmatprep.subr.mxu0 0.0
      %693 = vmatpush1.xpose.msra.mxu0 0.0
      %694 = vmatprep.subr.mxu0 0.0
      %695 = vmatpush1.xpose.msra.mxu0 0.0
      %696 = vmatprep.subr.mxu0 0.0
      %697 = vmatpush1.xpose.msra.mxu0 0.0
      %698 = vmatprep.subr.mxu0 0.0
      %699 = vmatpush1.xpose.msra.mxu0 0.0
      %700 = vmatprep.mubr.f32.mxu0 0.0
      %701 = vmatmul.mubr.f32.gmra.mrb[0].mxu0 %v613
      %v702 = vpop.f32.mrb[0].mxu0
      %v703 = vadd.f32 0.0, %v702
      %v704 = vpop.f32.mrb[0].mxu0
      %705 = vmatprep.mubr.f32.mxu0 0.0
      %706 = vmatmul.mubr.f32.gmra.mrb[0].mxu0 %v616
      %v707 = vpop.f32.mrb[0].mxu0
      %v708 = vadd.f32 0.0, %v707
      %v709 = vpop.f32.mrb[0].mxu0
      %710 = vmatprep.mubr.f32.mxu0 0.0
      %711 = vmatmul.mubr.f32.gmra.mrb[0].mxu0 %v619
      %v712 = vpop.f32.mrb[0].mxu0
      %v713 = vadd.f32 0.0, %v712
      %v714 = vpop.f32.mrb[0].mxu0
      %715 = vmatprep.mubr.f32.mxu0 0.0
      %716 = vmatmul.mubr.f32.gmra.mrb[0].mxu0 %v622
      %v717 = vpop.f32.mrb[0].mxu0
      %v718 = vadd.f32 0.0, %v717
      %v719 = vpop.f32.mrb[0].mxu0
      %720 = vdwg.mxu0
      %v721 = vsel %vm611, %v703, -inf
      %722 = vmax.xlane.f32.xlu0 %v721
      %v723 = vpop.xlane.xlu0 %722
      %v724 = vsel %vm611, %v708, -inf
      %725 = vmax.xlane.f32.xlu0 %v724
      %v726 = vpop.xlane.xlu0 %725
      %v727 = vsel %vm611, %v713, -inf
      %728 = vmax.xlane.f32.xlu0 %v727
      %v729 = vpop.xlane.xlu0 %728
      %v730 = vsel %vm611, %v718, -inf
      %731 = vmax.xlane.f32.xlu0 %v730
      %v732 = vpop.xlane.xlu0 %731
      %v733 = vsub.f32 %v703, %v723
      %v734 = vsub.f32 %v708, %v726
      %v735 = vsub.f32 %v713, %v729
      %v736 = vsub.f32 %v718, %v732
      %v737 = vmul.f32 %v733, 1.442695
      %v738 = vpow.pop %v737
      %v739 = vmul.f32 %v734, 1.442695
      %v740 = vpow.pop %v739
      %v741 = vmul.f32 %v735, 1.442695
      %v742 = vpow.pop %v741
      %v743 = vmul.f32 %v736, 1.442695
      %v744 = vpow.pop %v743
      %v745 = vsel %vm611, %v738, 0.0
      %746 = vadd.xlane.f32.xlu0 %v745
      %v747 = vpop.xlane.xlu0 %746
      %v748 = vsel %vm611, %v740, 0.0
      %749 = vadd.xlane.f32.xlu0 %v748
      %v750 = vpop.xlane.xlu0 %749
      %v751 = vsel %vm611, %v742, 0.0
      %752 = vadd.xlane.f32.xlu0 %v751
      %v753 = vpop.xlane.xlu0 %752
      %v754 = vsel %vm611, %v744, 0.0
      %755 = vadd.xlane.f32.xlu0 %v754
      %v756 = vpop.xlane.xlu0 %755
      %v757 = vrcp.pop %v747
      %v758 = vrcp.pop %v750
      %v759 = vrcp.pop %v753
      %v760 = vrcp.pop %v756
      %v761 = vmul.f32 %v738, %v757
      %v762 = vmul.f32 %v740, %v758
      %v763 = vmul.f32 %v742, %v759
      %v764 = vmul.f32 %v744, %v760
      %v766 = vsel %vm611, %v761, 0
      %v769 = vsel %vm611, %v762, 0
      %v772 = vsel %vm611, %v763, 0
      %v775 = vsel %vm611, %v764, 0
      %777 = vmatprep.subr.mxu0 0.0
      %778 = vmatpush1.msra.mxu0 %v593
      %779 = vmatprep.subr.mxu0 0.0
      %780 = vmatpush1.msra.mxu0 %v598
      %781 = vmatprep.subr.mxu0 0.0
      %782 = vmatpush1.msra.mxu0 %v603
      %783 = vmatprep.subr.mxu0 0.0
      %784 = vmatpush1.msra.mxu0 %v608
      %785 = vmatprep.subr.mxu0 0.0
      %786 = vmatpush1.msra.mxu0 0.0
      %787 = vmatprep.subr.mxu0 0.0
      %788 = vmatpush1.msra.mxu0 0.0
      %789 = vmatprep.subr.mxu0 0.0
      %790 = vmatpush1.msra.mxu0 0.0
      %791 = vmatprep.subr.mxu0 0.0
      %792 = vmatpush1.msra.mxu0 0.0
      %793 = vmatprep.subr.mxu0 0.0
      %794 = vmatpush1.msra.mxu0 0.0
      %795 = vmatprep.subr.mxu0 0.0
      %796 = vmatpush1.msra.mxu0 0.0
      %797 = vmatprep.subr.mxu0 0.0
      %798 = vmatpush1.msra.mxu0 0.0
      %799 = vmatprep.subr.mxu0 0.0
      %800 = vmatpush1.msra.mxu0 0.0
      %801 = vmatprep.subr.mxu0 0.0
      %802 = vmatpush1.msra.mxu0 0.0
      %803 = vmatprep.subr.mxu0 0.0
      %804 = vmatpush1.msra.mxu0 0.0
      %805 = vmatprep.subr.mxu0 0.0
      %806 = vmatpush1.msra.mxu0 0.0
      %807 = vmatprep.subr.mxu0 0.0
      %808 = vmatpush1.msra.mxu0 0.0
      %809 = vmatprep.subr.mxu0 0.0
      %810 = vmatpush1.msra.mxu0 0.0
      %811 = vmatprep.subr.mxu0 0.0
      %812 = vmatpush1.msra.mxu0 0.0
      %813 = vmatprep.subr.mxu0 0.0
      %814 = vmatpush1.msra.mxu0 0.0
      %815 = vmatprep.subr.mxu0 0.0
      %816 = vmatpush1.msra.mxu0 0.0
      %817 = vmatprep.subr.mxu0 0.0
      %818 = vmatpush1.msra.mxu0 0.0
      %819 = vmatprep.subr.mxu0 0.0
      %820 = vmatpush1.msra.mxu0 0.0
      %821 = vmatprep.subr.mxu0 0.0
      %822 = vmatpush1.msra.mxu0 0.0
      %823 = vmatprep.subr.mxu0 0.0
      %824 = vmatpush1.msra.mxu0 0.0
      %825 = vmatprep.subr.mxu0 0.0
      %826 = vmatpush1.msra.mxu0 0.0
      %827 = vmatprep.subr.mxu0 0.0
      %828 = vmatpush1.msra.mxu0 0.0
      %829 = vmatprep.subr.mxu0 0.0
      %830 = vmatpush1.msra.mxu0 0.0
      %831 = vmatprep.subr.mxu0 0.0
      %832 = vmatpush1.msra.mxu0 0.0
      %833 = vmatprep.subr.mxu0 0.0
      %834 = vmatpush1.msra.mxu0 0.0
      %835 = vmatprep.subr.mxu0 0.0
      %836 = vmatpush1.msra.mxu0 0.0
      %837 = vmatprep.subr.mxu0 0.0
      %838 = vmatpush1.msra.mxu0 0.0
      %839 = vmatprep.subr.mxu0 0.0
      %840 = vmatpush1.msra.mxu0 0.0
      %841 = vmatprep.mubr.f32.mxu0 0.0
      %842 = vmatmul.mubr.f32.gmra.mrb[0].mxu0 %v766
      %v843 = vpop.f32.mrb[0].mxu0
      %v844 = vadd.f32 0.0, %v843
      %v845 = vpop.f32.mrb[0].mxu0
      %846 = vmatprep.mubr.f32.mxu0 0.0
      %847 = vmatmul.mubr.f32.gmra.mrb[0].mxu0 %v769
      %v848 = vpop.f32.mrb[0].mxu0
      %v849 = vadd.f32 0.0, %v848
      %v850 = vpop.f32.mrb[0].mxu0
      %851 = vmatprep.mubr.f32.mxu0 0.0
      %852 = vmatmul.mubr.f32.gmra.mrb[0].mxu0 %v772
      %v853 = vpop.f32.mrb[0].mxu0
      %v854 = vadd.f32 0.0, %v853
      %v855 = vpop.f32.mrb[0].mxu0
      %856 = vmatprep.mubr.f32.mxu0 0.0
      %857 = vmatmul.mubr.f32.gmra.mrb[0].mxu0 %v775
      %v858 = vpop.f32.mrb[0].mxu0
      %v859 = vadd.f32 0.0, %v858
      %v860 = vpop.f32.mrb[0].mxu0
      %861 = vdwg.mxu0
      %862 = vrot.lane.b32.xlu0 %v391, 96
      %v863 = vpop.permute.xlu0 %862
      %864 = vrot.lane.b32.xlu0 %v392, 96
      %v865 = vpop.permute.xlu0 %864
      %866 = vrot.lane.b32.xlu0 %v393, 96
      %v867 = vpop.permute.xlu0 %866
      %868 = vrot.lane.b32.xlu0 %v394, 96
      %v869 = vpop.permute.xlu0 %868
      %870 = vrot.lane.b32.xlu0 %v485, 96
      %v871 = vpop.permute.xlu0 %870
      %872 = vrot.lane.b32.xlu0 %v490, 96
      %v873 = vpop.permute.xlu0 %872
      %874 = vrot.lane.b32.xlu0 %v495, 96
      %v875 = vpop.permute.xlu0 %874
      %876 = vrot.lane.b32.xlu0 %v500, 96
      %v877 = vpop.permute.xlu0 %876
      %v878 = vsel %vm611, %v863, 0
      %v880 = vsel %vm611, %v865, 0
      %v882 = vsel %vm611, %v867, 0
      %v884 = vsel %vm611, %v869, 0
      %v886 = vsel %vm611, %v871, 0
      %v888 = vsel %vm611, %v873, 0
      %v890 = vsel %vm611, %v875, 0
      %v892 = vsel %vm611, %v877, 0
      %894 = vmatprep.subr.mxu0 0.0
      %895 = vmatpush1.xpose.msra.mxu0 %v886
      %896 = vmatprep.subr.mxu0 0.0
      %897 = vmatpush1.xpose.msra.mxu0 %v888
      %898 = vmatprep.subr.mxu0 0.0
      %899 = vmatpush1.xpose.msra.mxu0 %v890
      %900 = vmatprep.subr.mxu0 0.0
      %901 = vmatpush1.xpose.msra.mxu0 %v892
      %902 = vmatprep.subr.mxu0 0.0
      %903 = vmatpush1.xpose.msra.mxu0 0.0
      %904 = vmatprep.subr.mxu0 0.0
      %905 = vmatpush1.xpose.msra.mxu0 0.0
      %906 = vmatprep.subr.mxu0 0.0
      %907 = vmatpush1.xpose.msra.mxu0 0.0
      %908 = vmatprep.subr.mxu0 0.0
      %909 = vmatpush1.xpose.msra.mxu0 0.0
      %910 = vmatprep.subr.mxu0 0.0
      %911 = vmatpush1.xpose.msra.mxu0 0.0
      %912 = vmatprep.subr.mxu0 0.0
      %913 = vmatpush1.xpose.msra.mxu0 0.0
      %914 = vmatprep.subr.mxu0 0.0
      %915 = vmatpush1.xpose.msra.mxu0 0.0
      %916 = vmatprep.subr.mxu0 0.0
      %917 = vmatpush1.xpose.msra.mxu0 0.0
      %918 = vmatprep.subr.mxu0 0.0
      %919 = vmatpush1.xpose.msra.mxu0 0.0
      %920 = vmatprep.subr.mxu0 0.0
      %921 = vmatpush1.xpose.msra.mxu0 0.0
      %922 = vmatprep.subr.mxu0 0.0
      %923 = vmatpush1.xpose.msra.mxu0 0.0
      %924 = vmatprep.subr.mxu0 0.0
      %925 = vmatpush1.xpose.msra.mxu0 0.0
      %926 = vmatprep.subr.mxu0 0.0
      %927 = vmatpush1.xpose.msra.mxu0 0.0
      %928 = vmatprep.subr.mxu0 0.0
      %929 = vmatpush1.xpose.msra.mxu0 0.0
      %930 = vmatprep.subr.mxu0 0.0
      %931 = vmatpush1.xpose.msra.mxu0 0.0
      %932 = vmatprep.subr.mxu0 0.0
      %933 = vmatpush1.xpose.msra.mxu0 0.0
      %934 = vmatprep.subr.mxu0 0.0
      %935 = vmatpush1.xpose.msra.mxu0 0.0
      %936 = vmatprep.subr.mxu0 0.0
      %937 = vmatpush1.xpose.msra.mxu0 0.0
      %938 = vmatprep.subr.mxu0 0.0
      %939 = vmatpush1.xpose.msra.mxu0 0.0
      %940 = vmatprep.subr.mxu0 0.0
      %941 = vmatpush1.xpose.msra.mxu0 0.0
      %942 = vmatprep.subr.mxu0 0.0
      %943 = vmatpush1.xpose.msra.mxu0 0.0
      %944 = vmatprep.subr.mxu0 0.0
      %945 = vmatpush1.xpose.msra.mxu0 0.0
      %946 = vmatprep.subr.mxu0 0.0
      %947 = vmatpush1.xpose.msra.mxu0 0.0
      %948 = vmatprep.subr.mxu0 0.0
      %949 = vmatpush1.xpose.msra.mxu0 0.0
      %950 = vmatprep.subr.mxu0 0.0
      %951 = vmatpush1.xpose.msra.mxu0 0.0
      %952 = vmatprep.subr.mxu0 0.0
      %953 = vmatpush1.xpose.msra.mxu0 0.0
      %954 = vmatprep.subr.mxu0 0.0
      %955 = vmatpush1.xpose.msra.mxu0 0.0
      %956 = vmatprep.subr.mxu0 0.0
      %957 = vmatpush1.xpose.msra.mxu0 0.0
      %958 = vmatprep.mubr.f32.mxu0 0.0
      %959 = vmatmul.mubr.f32.gmra.mrb[0].mxu0 %v878
      %v960 = vpop.f32.mrb[0].mxu0
      %v961 = vadd.f32 0.0, %v960
      %v962 = vpop.f32.mrb[0].mxu0
      %963 = vmatprep.mubr.f32.mxu0 0.0
      %964 = vmatmul.mubr.f32.gmra.mrb[0].mxu0 %v880
      %v965 = vpop.f32.mrb[0].mxu0
      %v966 = vadd.f32 0.0, %v965
      %v967 = vpop.f32.mrb[0].mxu0
      %968 = vmatprep.mubr.f32.mxu0 0.0
      %969 = vmatmul.mubr.f32.gmra.mrb[0].mxu0 %v882
      %v970 = vpop.f32.mrb[0].mxu0
      %v971 = vadd.f32 0.0, %v970
      %v972 = vpop.f32.mrb[0].mxu0
      %973 = vmatprep.mubr.f32.mxu0 0.0
      %974 = vmatmul.mubr.f32.gmra.mrb[0].mxu0 %v884
      %v975 = vpop.f32.mrb[0].mxu0
      %v976 = vadd.f32 0.0, %v975
      %v977 = vpop.f32.mrb[0].mxu0
      %978 = vdwg.mxu0
      %v979 = vsel %vm611, %v961, -inf
      %980 = vmax.xlane.f32.xlu0 %v979
      %v981 = vpop.xlane.xlu0 %980
      %v982 = vsel %vm611, %v966, -inf
      %983 = vmax.xlane.f32.xlu0 %v982
      %v984 = vpop.xlane.xlu0 %983
      %v985 = vsel %vm611, %v971, -inf
      %986 = vmax.xlane.f32.xlu0 %v985
      %v987 = vpop.xlane.xlu0 %986
      %v988 = vsel %vm611, %v976, -inf
      %989 = vmax.xlane.f32.xlu0 %v988
      %v990 = vpop.xlane.xlu0 %989
      %v991 = vsub.f32 %v961, %v981
      %v992 = vsub.f32 %v966, %v984
      %v993 = vsub.f32 %v971, %v987
      %v994 = vsub.f32 %v976, %v990
      %v995 = vmul.f32 %v991, 1.442695
      %v996 = vpow.pop %v995
      %v997 = vmul.f32 %v992, 1.442695
      %v998 = vpow.pop %v997
      %v999 = vmul.f32 %v993, 1.442695
      %v1000 = vpow.pop %v999
      %v1001 = vmul.f32 %v994, 1.442695
      %v1002 = vpow.pop %v1001
      %v1003 = vsel %vm611, %v996, 0.0
      %1004 = vadd.xlane.f32.xlu0 %v1003
      %v1005 = vpop.xlane.xlu0 %1004
      %v1006 = vsel %vm611, %v998, 0.0
      %1007 = vadd.xlane.f32.xlu0 %v1006
      %v1008 = vpop.xlane.xlu0 %1007
      %v1009 = vsel %vm611, %v1000, 0.0
      %1010 = vadd.xlane.f32.xlu0 %v1009
      %v1011 = vpop.xlane.xlu0 %1010
      %v1012 = vsel %vm611, %v1002, 0.0
      %1013 = vadd.xlane.f32.xlu0 %v1012
      %v1014 = vpop.xlane.xlu0 %1013
      %v1015 = vrcp.pop %v1005
      %v1016 = vrcp.pop %v1008
      %v1017 = vrcp.pop %v1011
      %v1018 = vrcp.pop %v1014
      %v1019 = vmul.f32 %v996, %v1015
      %v1020 = vmul.f32 %v998, %v1016
      %v1021 = vmul.f32 %v1000, %v1017
      %v1022 = vmul.f32 %v1002, %v1018
      %1027 = vrot.lane.b32.xlu0 %v593, 96
      %v1028 = vpop.permute.xlu0 %1027
      %1029 = vrot.lane.b32.xlu0 %v598, 96
      %v1030 = vpop.permute.xlu0 %1029
      %1031 = vrot.lane.b32.xlu0 %v603, 96
      %v1032 = vpop.permute.xlu0 %1031
      %1033 = vrot.lane.b32.xlu0 %v608, 96
      %v1034 = vpop.permute.xlu0 %1033
      %v1040 = vsel %vm611, %v1019, 0
      %v1043 = vsel %vm611, %v1020, 0
      %v1046 = vsel %vm611, %v1021, 0
      %v1049 = vsel %vm611, %v1022, 0
      %1051 = vmatprep.subr.mxu0 0.0
      %1052 = vmatpush1.msra.mxu0 %v1028
      %1053 = vmatprep.subr.mxu0 0.0
      %1054 = vmatpush1.msra.mxu0 %v1030
      %1055 = vmatprep.subr.mxu0 0.0
      %1056 = vmatpush1.msra.mxu0 %v1032
      %1057 = vmatprep.subr.mxu0 0.0
      %1058 = vmatpush1.msra.mxu0 %v1034
      %1059 = vmatprep.subr.mxu0 0.0
      %1060 = vmatpush1.msra.mxu0 0.0
      %1061 = vmatprep.subr.mxu0 0.0
      %1062 = vmatpush1.msra.mxu0 0.0
      %1063 = vmatprep.subr.mxu0 0.0
      %1064 = vmatpush1.msra.mxu0 0.0
      %1065 = vmatprep.subr.mxu0 0.0
      %1066 = vmatpush1.msra.mxu0 0.0
      %1067 = vmatprep.subr.mxu0 0.0
      %1068 = vmatpush1.msra.mxu0 0.0
      %1069 = vmatprep.subr.mxu0 0.0
      %1070 = vmatpush1.msra.mxu0 0.0
      %1071 = vmatprep.subr.mxu0 0.0
      %1072 = vmatpush1.msra.mxu0 0.0
      %1073 = vmatprep.subr.mxu0 0.0
      %1074 = vmatpush1.msra.mxu0 0.0
      %1075 = vmatprep.subr.mxu0 0.0
      %1076 = vmatpush1.msra.mxu0 0.0
      %1077 = vmatprep.subr.mxu0 0.0
      %1078 = vmatpush1.msra.mxu0 0.0
      %1079 = vmatprep.subr.mxu0 0.0
      %1080 = vmatpush1.msra.mxu0 0.0
      %1081 = vmatprep.subr.mxu0 0.0
      %1082 = vmatpush1.msra.mxu0 0.0
      %1083 = vmatprep.subr.mxu0 0.0
      %1084 = vmatpush1.msra.mxu0 0.0
      %1085 = vmatprep.subr.mxu0 0.0
      %1086 = vmatpush1.msra.mxu0 0.0
      %1087 = vmatprep.subr.mxu0 0.0
      %1088 = vmatpush1.msra.mxu0 0.0
      %1089 = vmatprep.subr.mxu0 0.0
      %1090 = vmatpush1.msra.mxu0 0.0
      %1091 = vmatprep.subr.mxu0 0.0
      %1092 = vmatpush1.msra.mxu0 0.0
      %1093 = vmatprep.subr.mxu0 0.0
      %1094 = vmatpush1.msra.mxu0 0.0
      %1095 = vmatprep.subr.mxu0 0.0
      %1096 = vmatpush1.msra.mxu0 0.0
      %1097 = vmatprep.subr.mxu0 0.0
      %1098 = vmatpush1.msra.mxu0 0.0
      %1099 = vmatprep.subr.mxu0 0.0
      %1100 = vmatpush1.msra.mxu0 0.0
      %1101 = vmatprep.subr.mxu0 0.0
      %1102 = vmatpush1.msra.mxu0 0.0
      %1103 = vmatprep.subr.mxu0 0.0
      %1104 = vmatpush1.msra.mxu0 0.0
      %1105 = vmatprep.subr.mxu0 0.0
      %1106 = vmatpush1.msra.mxu0 0.0
      %1107 = vmatprep.subr.mxu0 0.0
      %1108 = vmatpush1.msra.mxu0 0.0
      %1109 = vmatprep.subr.mxu0 0.0
      %1110 = vmatpush1.msra.mxu0 0.0
      %1111 = vmatprep.subr.mxu0 0.0
      %1112 = vmatpush1.msra.mxu0 0.0
      %1113 = vmatprep.subr.mxu0 0.0
      %1114 = vmatpush1.msra.mxu0 0.0
      %1115 = vmatprep.mubr.f32.mxu0 0.0
      %1116 = vmatmul.mubr.f32.gmra.mrb[0].mxu0 %v1040
      %v1117 = vpop.f32.mrb[0].mxu0
      %v1118 = vadd.f32 0.0, %v1117
      %v1119 = vpop.f32.mrb[0].mxu0
      %1120 = vmatprep.mubr.f32.mxu0 0.0
      %1121 = vmatmul.mubr.f32.gmra.mrb[0].mxu0 %v1043
      %v1122 = vpop.f32.mrb[0].mxu0
      %v1123 = vadd.f32 0.0, %v1122
      %v1124 = vpop.f32.mrb[0].mxu0
      %1125 = vmatprep.mubr.f32.mxu0 0.0
      %1126 = vmatmul.mubr.f32.gmra.mrb[0].mxu0 %v1046
      %v1127 = vpop.f32.mrb[0].mxu0
      %v1128 = vadd.f32 0.0, %v1127
      %v1129 = vpop.f32.mrb[0].mxu0
      %1130 = vmatprep.mubr.f32.mxu0 0.0
      %1131 = vmatmul.mubr.f32.gmra.mrb[0].mxu0 %v1049
      %v1132 = vpop.f32.mrb[0].mxu0
      %v1133 = vadd.f32 0.0, %v1132
      %v1134 = vpop.f32.mrb[0].mxu0
      %1135 = vdwg.mxu0
      %1136 = vrot.lane.b32.xlu0 %v391, 64
      %v1137 = vpop.permute.xlu0 %1136
      %1138 = vrot.lane.b32.xlu0 %v392, 64
      %v1139 = vpop.permute.xlu0 %1138
      %1140 = vrot.lane.b32.xlu0 %v393, 64
      %v1141 = vpop.permute.xlu0 %1140
      %1142 = vrot.lane.b32.xlu0 %v394, 64
      %v1143 = vpop.permute.xlu0 %1142
      %1144 = vrot.lane.b32.xlu0 %v485, 64
      %v1145 = vpop.permute.xlu0 %1144
      %1146 = vrot.lane.b32.xlu0 %v490, 64
      %v1147 = vpop.permute.xlu0 %1146
      %1148 = vrot.lane.b32.xlu0 %v495, 64
      %v1149 = vpop.permute.xlu0 %1148
      %1150 = vrot.lane.b32.xlu0 %v500, 64
      %v1151 = vpop.permute.xlu0 %1150
      %v1152 = vsel %vm611, %v1137, 0
      %v1154 = vsel %vm611, %v1139, 0
      %v1156 = vsel %vm611, %v1141, 0
      %v1158 = vsel %vm611, %v1143, 0
      %v1160 = vsel %vm611, %v1145, 0
      %v1162 = vsel %vm611, %v1147, 0
      %v1164 = vsel %vm611, %v1149, 0
      %v1166 = vsel %vm611, %v1151, 0
      %1168 = vmatprep.subr.mxu0 0.0
      %1169 = vmatpush1.xpose.msra.mxu0 %v1160
      %1170 = vmatprep.subr.mxu0 0.0
      %1171 = vmatpush1.xpose.msra.mxu0 %v1162
      %1172 = vmatprep.subr.mxu0 0.0
      %1173 = vmatpush1.xpose.msra.mxu0 %v1164
      %1174 = vmatprep.subr.mxu0 0.0
      %1175 = vmatpush1.xpose.msra.mxu0 %v1166
      %1176 = vmatprep.subr.mxu0 0.0
      %1177 = vmatpush1.xpose.msra.mxu0 0.0
      %1178 = vmatprep.subr.mxu0 0.0
      %1179 = vmatpush1.xpose.msra.mxu0 0.0
      %1180 = vmatprep.subr.mxu0 0.0
      %1181 = vmatpush1.xpose.msra.mxu0 0.0
      %1182 = vmatprep.subr.mxu0 0.0
      %1183 = vmatpush1.xpose.msra.mxu0 0.0
      %1184 = vmatprep.subr.mxu0 0.0
      %1185 = vmatpush1.xpose.msra.mxu0 0.0
      %1186 = vmatprep.subr.mxu0 0.0
      %1187 = vmatpush1.xpose.msra.mxu0 0.0
      %1188 = vmatprep.subr.mxu0 0.0
      %1189 = vmatpush1.xpose.msra.mxu0 0.0
      %1190 = vmatprep.subr.mxu0 0.0
      %1191 = vmatpush1.xpose.msra.mxu0 0.0
      %1192 = vmatprep.subr.mxu0 0.0
      %1193 = vmatpush1.xpose.msra.mxu0 0.0
      %1194 = vmatprep.subr.mxu0 0.0
      %1195 = vmatpush1.xpose.msra.mxu0 0.0
      %1196 = vmatprep.subr.mxu0 0.0
      %1197 = vmatpush1.xpose.msra.mxu0 0.0
      %1198 = vmatprep.subr.mxu0 0.0
      %1199 = vmatpush1.xpose.msra.mxu0 0.0
      %1200 = vmatprep.subr.mxu0 0.0
      %1201 = vmatpush1.xpose.msra.mxu0 0.0
      %1202 = vmatprep.subr.mxu0 0.0
      %1203 = vmatpush1.xpose.msra.mxu0 0.0
      %1204 = vmatprep.subr.mxu0 0.0
      %1205 = vmatpush1.xpose.msra.mxu0 0.0
      %1206 = vmatprep.subr.mxu0 0.0
      %1207 = vmatpush1.xpose.msra.mxu0 0.0
      %1208 = vmatprep.subr.mxu0 0.0
      %1209 = vmatpush1.xpose.msra.mxu0 0.0
      %1210 = vmatprep.subr.mxu0 0.0
      %1211 = vmatpush1.xpose.msra.mxu0 0.0
      %1212 = vmatprep.subr.mxu0 0.0
      %1213 = vmatpush1.xpose.msra.mxu0 0.0
      %1214 = vmatprep.subr.mxu0 0.0
      %1215 = vmatpush1.xpose.msra.mxu0 0.0
      %1216 = vmatprep.subr.mxu0 0.0
      %1217 = vmatpush1.xpose.msra.mxu0 0.0
      %1218 = vmatprep.subr.mxu0 0.0
      %1219 = vmatpush1.xpose.msra.mxu0 0.0
      %1220 = vmatprep.subr.mxu0 0.0
      %1221 = vmatpush1.xpose.msra.mxu0 0.0
      %1222 = vmatprep.subr.mxu0 0.0
      %1223 = vmatpush1.xpose.msra.mxu0 0.0
      %1224 = vmatprep.subr.mxu0 0.0
      %1225 = vmatpush1.xpose.msra.mxu0 0.0
      %1226 = vmatprep.subr.mxu0 0.0
      %1227 = vmatpush1.xpose.msra.mxu0 0.0
      %1228 = vmatprep.subr.mxu0 0.0
      %1229 = vmatpush1.xpose.msra.mxu0 0.0
      %1230 = vmatprep.subr.mxu0 0.0
      %1231 = vmatpush1.xpose.msra.mxu0 0.0
      %1232 = vmatprep.mubr.f32.mxu0 0.0
      %1233 = vmatmul.mubr.f32.gmra.mrb[0].mxu0 %v1152
      %v1234 = vpop.f32.mrb[0].mxu0
      %v1235 = vadd.f32 0.0, %v1234
      %v1236 = vpop.f32.mrb[0].mxu0
      %1237 = vmatprep.mubr.f32.mxu0 0.0
      %1238 = vmatmul.mubr.f32.gmra.mrb[0].mxu0 %v1154
      %v1239 = vpop.f32.mrb[0].mxu0
      %v1240 = vadd.f32 0.0, %v1239
      %v1241 = vpop.f32.mrb[0].mxu0
      %1242 = vmatprep.mubr.f32.mxu0 0.0
      %1243 = vmatmul.mubr.f32.gmra.mrb[0].mxu0 %v1156
      %v1244 = vpop.f32.mrb[0].mxu0
      %v1245 = vadd.f32 0.0, %v1244
      %v1246 = vpop.f32.mrb[0].mxu0
      %1247 = vmatprep.mubr.f32.mxu0 0.0
      %1248 = vmatmul.mubr.f32.gmra.mrb[0].mxu0 %v1158
      %v1249 = vpop.f32.mrb[0].mxu0
      %v1250 = vadd.f32 0.0, %v1249
      %v1251 = vpop.f32.mrb[0].mxu0
      %1252 = vdwg.mxu0
      %v1253 = vsel %vm611, %v1235, -inf
      %1254 = vmax.xlane.f32.xlu0 %v1253
      %v1255 = vpop.xlane.xlu0 %1254
      %v1256 = vsel %vm611, %v1240, -inf
      %1257 = vmax.xlane.f32.xlu0 %v1256
      %v1258 = vpop.xlane.xlu0 %1257
      %v1259 = vsel %vm611, %v1245, -inf
      %1260 = vmax.xlane.f32.xlu0 %v1259
      %v1261 = vpop.xlane.xlu0 %1260
      %v1262 = vsel %vm611, %v1250, -inf
      %1263 = vmax.xlane.f32.xlu0 %v1262
      %v1264 = vpop.xlane.xlu0 %1263
      %v1265 = vsub.f32 %v1235, %v1255
      %v1266 = vsub.f32 %v1240, %v1258
      %v1267 = vsub.f32 %v1245, %v1261
      %v1268 = vsub.f32 %v1250, %v1264
      %v1269 = vmul.f32 %v1265, 1.442695
      %v1270 = vpow.pop %v1269
      %v1271 = vmul.f32 %v1266, 1.442695
      %v1272 = vpow.pop %v1271
      %v1273 = vmul.f32 %v1267, 1.442695
      %v1274 = vpow.pop %v1273
      %v1275 = vmul.f32 %v1268, 1.442695
      %v1276 = vpow.pop %v1275
      %v1277 = vsel %vm611, %v1270, 0.0
      %1278 = vadd.xlane.f32.xlu0 %v1277
      %v1279 = vpop.xlane.xlu0 %1278
      %v1280 = vsel %vm611, %v1272, 0.0
      %1281 = vadd.xlane.f32.xlu0 %v1280
      %v1282 = vpop.xlane.xlu0 %1281
      %v1283 = vsel %vm611, %v1274, 0.0
      %1284 = vadd.xlane.f32.xlu0 %v1283
      %v1285 = vpop.xlane.xlu0 %1284
      %v1286 = vsel %vm611, %v1276, 0.0
      %1287 = vadd.xlane.f32.xlu0 %v1286
      %v1288 = vpop.xlane.xlu0 %1287
      %v1289 = vrcp.pop %v1279
      %v1290 = vrcp.pop %v1282
      %v1291 = vrcp.pop %v1285
      %v1292 = vrcp.pop %v1288
      %v1293 = vmul.f32 %v1270, %v1289
      %v1294 = vmul.f32 %v1272, %v1290
      %v1295 = vmul.f32 %v1274, %v1291
      %v1296 = vmul.f32 %v1276, %v1292
      %1297 = vrot.lane.b32.xlu0 %v593, 64
      %v1298 = vpop.permute.xlu0 %1297
      %1299 = vrot.lane.b32.xlu0 %v598, 64
      %v1300 = vpop.permute.xlu0 %1299
      %1301 = vrot.lane.b32.xlu0 %v603, 64
      %v1302 = vpop.permute.xlu0 %1301
      %1303 = vrot.lane.b32.xlu0 %v608, 64
      %v1304 = vpop.permute.xlu0 %1303
      %v1310 = vsel %vm611, %v1293, 0
      %v1313 = vsel %vm611, %v1294, 0
      %v1316 = vsel %vm611, %v1295, 0
      %v1319 = vsel %vm611, %v1296, 0
      %1321 = vmatprep.subr.mxu0 0.0
      %1322 = vmatpush1.msra.mxu0 %v1298
      %1323 = vmatprep.subr.mxu0 0.0
      %1324 = vmatpush1.msra.mxu0 %v1300
      %1325 = vmatprep.subr.mxu0 0.0
      %1326 = vmatpush1.msra.mxu0 %v1302
      %1327 = vmatprep.subr.mxu0 0.0
      %1328 = vmatpush1.msra.mxu0 %v1304
      %1329 = vmatprep.subr.mxu0 0.0
      %1330 = vmatpush1.msra.mxu0 0.0
      %1331 = vmatprep.subr.mxu0 0.0
      %1332 = vmatpush1.msra.mxu0 0.0
      %1333 = vmatprep.subr.mxu0 0.0
      %1334 = vmatpush1.msra.mxu0 0.0
      %1335 = vmatprep.subr.mxu0 0.0
      %1336 = vmatpush1.msra.mxu0 0.0
      %1337 = vmatprep.subr.mxu0 0.0
      %1338 = vmatpush1.msra.mxu0 0.0
      %1339 = vmatprep.subr.mxu0 0.0
      %1340 = vmatpush1.msra.mxu0 0.0
      %1341 = vmatprep.subr.mxu0 0.0
      %1342 = vmatpush1.msra.mxu0 0.0
      %1343 = vmatprep.subr.mxu0 0.0
      %1344 = vmatpush1.msra.mxu0 0.0
      %1345 = vmatprep.subr.mxu0 0.0
      %1346 = vmatpush1.msra.mxu0 0.0
      %1347 = vmatprep.subr.mxu0 0.0
      %1348 = vmatpush1.msra.mxu0 0.0
      %1349 = vmatprep.subr.mxu0 0.0
      %1350 = vmatpush1.msra.mxu0 0.0
      %1351 = vmatprep.subr.mxu0 0.0
      %1352 = vmatpush1.msra.mxu0 0.0
      %1353 = vmatprep.subr.mxu0 0.0
      %1354 = vmatpush1.msra.mxu0 0.0
      %1355 = vmatprep.subr.mxu0 0.0
      %1356 = vmatpush1.msra.mxu0 0.0
      %1357 = vmatprep.subr.mxu0 0.0
      %1358 = vmatpush1.msra.mxu0 0.0
      %1359 = vmatprep.subr.mxu0 0.0
      %1360 = vmatpush1.msra.mxu0 0.0
      %1361 = vmatprep.subr.mxu0 0.0
      %1362 = vmatpush1.msra.mxu0 0.0
      %1363 = vmatprep.subr.mxu0 0.0
      %1364 = vmatpush1.msra.mxu0 0.0
      %1365 = vmatprep.subr.mxu0 0.0
      %1366 = vmatpush1.msra.mxu0 0.0
      %1367 = vmatprep.subr.mxu0 0.0
      %1368 = vmatpush1.msra.mxu0 0.0
      %1369 = vmatprep.subr.mxu0 0.0
      %1370 = vmatpush1.msra.mxu0 0.0
      %1371 = vmatprep.subr.mxu0 0.0
      %1372 = vmatpush1.msra.mxu0 0.0
      %1373 = vmatprep.subr.mxu0 0.0
      %1374 = vmatpush1.msra.mxu0 0.0
      %1375 = vmatprep.subr.mxu0 0.0
      %1376 = vmatpush1.msra.mxu0 0.0
      %1377 = vmatprep.subr.mxu0 0.0
      %1378 = vmatpush1.msra.mxu0 0.0
      %1379 = vmatprep.subr.mxu0 0.0
      %1380 = vmatpush1.msra.mxu0 0.0
      %1381 = vmatprep.subr.mxu0 0.0
      %1382 = vmatpush1.msra.mxu0 0.0
      %1383 = vmatprep.subr.mxu0 0.0
      %1384 = vmatpush1.msra.mxu0 0.0
      %1385 = vmatprep.mubr.f32.mxu0 0.0
      %1386 = vmatmul.mubr.f32.gmra.mrb[0].mxu0 %v1310
      %v1387 = vpop.f32.mrb[0].mxu0
      %v1388 = vadd.f32 0.0, %v1387
      %v1389 = vpop.f32.mrb[0].mxu0
      %1390 = vmatprep.mubr.f32.mxu0 0.0
      %1391 = vmatmul.mubr.f32.gmra.mrb[0].mxu0 %v1313
      %v1392 = vpop.f32.mrb[0].mxu0
      %v1393 = vadd.f32 0.0, %v1392
      %v1394 = vpop.f32.mrb[0].mxu0
      %1395 = vmatprep.mubr.f32.mxu0 0.0
      %1396 = vmatmul.mubr.f32.gmra.mrb[0].mxu0 %v1316
      %v1397 = vpop.f32.mrb[0].mxu0
      %v1398 = vadd.f32 0.0, %v1397
      %v1399 = vpop.f32.mrb[0].mxu0
      %1400 = vmatprep.mubr.f32.mxu0 0.0
      %1401 = vmatmul.mubr.f32.gmra.mrb[0].mxu0 %v1319
      %v1402 = vpop.f32.mrb[0].mxu0
      %v1403 = vadd.f32 0.0, %v1402
      %v1404 = vpop.f32.mrb[0].mxu0
      %1405 = vdwg.mxu0
      %1406 = vrot.lane.b32.xlu0 %v391, 32
      %v1407 = vpop.permute.xlu0 %1406
      %1408 = vrot.lane.b32.xlu0 %v392, 32
      %v1409 = vpop.permute.xlu0 %1408
      %1410 = vrot.lane.b32.xlu0 %v393, 32
      %v1411 = vpop.permute.xlu0 %1410
      %1412 = vrot.lane.b32.xlu0 %v394, 32
      %v1413 = vpop.permute.xlu0 %1412
      %1414 = vrot.lane.b32.xlu0 %v485, 32
      %v1415 = vpop.permute.xlu0 %1414
      %1416 = vrot.lane.b32.xlu0 %v490, 32
      %v1417 = vpop.permute.xlu0 %1416
      %1418 = vrot.lane.b32.xlu0 %v495, 32
      %v1419 = vpop.permute.xlu0 %1418
      %1420 = vrot.lane.b32.xlu0 %v500, 32
      %v1421 = vpop.permute.xlu0 %1420
      %v1422 = vsel %vm611, %v1407, 0
      %v1424 = vsel %vm611, %v1409, 0
      %v1426 = vsel %vm611, %v1411, 0
      %v1428 = vsel %vm611, %v1413, 0
      %v1430 = vsel %vm611, %v1415, 0
      %v1432 = vsel %vm611, %v1417, 0
      %v1434 = vsel %vm611, %v1419, 0
      %v1436 = vsel %vm611, %v1421, 0
      %1438 = vmatprep.subr.mxu0 0.0
      %1439 = vmatpush1.xpose.msra.mxu0 %v1430
      %1440 = vmatprep.subr.mxu0 0.0
      %1441 = vmatpush1.xpose.msra.mxu0 %v1432
      %1442 = vmatprep.subr.mxu0 0.0
      %1443 = vmatpush1.xpose.msra.mxu0 %v1434
      %1444 = vmatprep.subr.mxu0 0.0
      %1445 = vmatpush1.xpose.msra.mxu0 %v1436
      %1446 = vmatprep.subr.mxu0 0.0
      %1447 = vmatpush1.xpose.msra.mxu0 0.0
      %1448 = vmatprep.subr.mxu0 0.0
      %1449 = vmatpush1.xpose.msra.mxu0 0.0
      %1450 = vmatprep.subr.mxu0 0.0
      %1451 = vmatpush1.xpose.msra.mxu0 0.0
      %1452 = vmatprep.subr.mxu0 0.0
      %1453 = vmatpush1.xpose.msra.mxu0 0.0
      %1454 = vmatprep.subr.mxu0 0.0
      %1455 = vmatpush1.xpose.msra.mxu0 0.0
      %1456 = vmatprep.subr.mxu0 0.0
      %1457 = vmatpush1.xpose.msra.mxu0 0.0
      %1458 = vmatprep.subr.mxu0 0.0
      %1459 = vmatpush1.xpose.msra.mxu0 0.0
      %1460 = vmatprep.subr.mxu0 0.0
      %1461 = vmatpush1.xpose.msra.mxu0 0.0
      %1462 = vmatprep.subr.mxu0 0.0
      %1463 = vmatpush1.xpose.msra.mxu0 0.0
      %1464 = vmatprep.subr.mxu0 0.0
      %1465 = vmatpush1.xpose.msra.mxu0 0.0
      %1466 = vmatprep.subr.mxu0 0.0
      %1467 = vmatpush1.xpose.msra.mxu0 0.0
      %1468 = vmatprep.subr.mxu0 0.0
      %1469 = vmatpush1.xpose.msra.mxu0 0.0
      %1470 = vmatprep.subr.mxu0 0.0
      %1471 = vmatpush1.xpose.msra.mxu0 0.0
      %1472 = vmatprep.subr.mxu0 0.0
      %1473 = vmatpush1.xpose.msra.mxu0 0.0
      %1474 = vmatprep.subr.mxu0 0.0
      %1475 = vmatpush1.xpose.msra.mxu0 0.0
      %1476 = vmatprep.subr.mxu0 0.0
      %1477 = vmatpush1.xpose.msra.mxu0 0.0
      %1478 = vmatprep.subr.mxu0 0.0
      %1479 = vmatpush1.xpose.msra.mxu0 0.0
      %1480 = vmatprep.subr.mxu0 0.0
      %1481 = vmatpush1.xpose.msra.mxu0 0.0
      %1482 = vmatprep.subr.mxu0 0.0
      %1483 = vmatpush1.xpose.msra.mxu0 0.0
      %1484 = vmatprep.subr.mxu0 0.0
      %1485 = vmatpush1.xpose.msra.mxu0 0.0
      %1486 = vmatprep.subr.mxu0 0.0
      %1487 = vmatpush1.xpose.msra.mxu0 0.0
      %1488 = vmatprep.subr.mxu0 0.0
      %1489 = vmatpush1.xpose.msra.mxu0 0.0
      %1490 = vmatprep.subr.mxu0 0.0
      %1491 = vmatpush1.xpose.msra.mxu0 0.0
      %1492 = vmatprep.subr.mxu0 0.0
      %1493 = vmatpush1.xpose.msra.mxu0 0.0
      %1494 = vmatprep.subr.mxu0 0.0
      %1495 = vmatpush1.xpose.msra.mxu0 0.0
      %1496 = vmatprep.subr.mxu0 0.0
      %1497 = vmatpush1.xpose.msra.mxu0 0.0
      %1498 = vmatprep.subr.mxu0 0.0
      %1499 = vmatpush1.xpose.msra.mxu0 0.0
      %1500 = vmatprep.subr.mxu0 0.0
      %1501 = vmatpush1.xpose.msra.mxu0 0.0
      %1502 = vmatprep.mubr.f32.mxu0 0.0
      %1503 = vmatmul.mubr.f32.gmra.mrb[0].mxu0 %v1422
      %v1504 = vpop.f32.mrb[0].mxu0
      %v1505 = vadd.f32 0.0, %v1504
      %v1506 = vpop.f32.mrb[0].mxu0
      %1507 = vmatprep.mubr.f32.mxu0 0.0
      %1508 = vmatmul.mubr.f32.gmra.mrb[0].mxu0 %v1424
      %v1509 = vpop.f32.mrb[0].mxu0
      %v1510 = vadd.f32 0.0, %v1509
      %v1511 = vpop.f32.mrb[0].mxu0
      %1512 = vmatprep.mubr.f32.mxu0 0.0
      %1513 = vmatmul.mubr.f32.gmra.mrb[0].mxu0 %v1426
      %v1514 = vpop.f32.mrb[0].mxu0
      %v1515 = vadd.f32 0.0, %v1514
      %v1516 = vpop.f32.mrb[0].mxu0
      %1517 = vmatprep.mubr.f32.mxu0 0.0
      %1518 = vmatmul.mubr.f32.gmra.mrb[0].mxu0 %v1428
      %v1519 = vpop.f32.mrb[0].mxu0
      %v1520 = vadd.f32 0.0, %v1519
      %v1521 = vpop.f32.mrb[0].mxu0
      %1522 = vdwg.mxu0
      %v1523 = vsel %vm611, %v1505, -inf
      %1524 = vmax.xlane.f32.xlu0 %v1523
      %v1525 = vpop.xlane.xlu0 %1524
      %v1526 = vsel %vm611, %v1510, -inf
      %1527 = vmax.xlane.f32.xlu0 %v1526
      %v1528 = vpop.xlane.xlu0 %1527
      %v1529 = vsel %vm611, %v1515, -inf
      %1530 = vmax.xlane.f32.xlu0 %v1529
      %v1531 = vpop.xlane.xlu0 %1530
      %v1532 = vsel %vm611, %v1520, -inf
      %1533 = vmax.xlane.f32.xlu0 %v1532
      %v1534 = vpop.xlane.xlu0 %1533
      %v1535 = vsub.f32 %v1505, %v1525
      %v1536 = vsub.f32 %v1510, %v1528
      %v1537 = vsub.f32 %v1515, %v1531
      %v1538 = vsub.f32 %v1520, %v1534
      %v1539 = vmul.f32 %v1535, 1.442695
      %v1540 = vpow.pop %v1539
      %v1541 = vmul.f32 %v1536, 1.442695
      %v1542 = vpow.pop %v1541
      %v1543 = vmul.f32 %v1537, 1.442695
      %v1544 = vpow.pop %v1543
      %v1545 = vmul.f32 %v1538, 1.442695
      %v1546 = vpow.pop %v1545
      %v1547 = vsel %vm611, %v1540, 0.0
      %1548 = vadd.xlane.f32.xlu0 %v1547
      %v1549 = vpop.xlane.xlu0 %1548
      %v1550 = vsel %vm611, %v1542, 0.0
      %1551 = vadd.xlane.f32.xlu0 %v1550
      %v1552 = vpop.xlane.xlu0 %1551
      %v1553 = vsel %vm611, %v1544, 0.0
      %1554 = vadd.xlane.f32.xlu0 %v1553
      %v1555 = vpop.xlane.xlu0 %1554
      %v1556 = vsel %vm611, %v1546, 0.0
      %1557 = vadd.xlane.f32.xlu0 %v1556
      %v1558 = vpop.xlane.xlu0 %1557
      %v1559 = vrcp.pop %v1549
      %v1560 = vrcp.pop %v1552
      %v1561 = vrcp.pop %v1555
      %v1562 = vrcp.pop %v1558
      %v1563 = vmul.f32 %v1540, %v1559
      %v1564 = vmul.f32 %v1542, %v1560
      %v1565 = vmul.f32 %v1544, %v1561
      %v1566 = vmul.f32 %v1546, %v1562
      %1567 = vrot.lane.b32.xlu0 %v593, 32
      %v1568 = vpop.permute.xlu0 %1567
      %1569 = vrot.lane.b32.xlu0 %v598, 32
      %v1570 = vpop.permute.xlu0 %1569
      %1571 = vrot.lane.b32.xlu0 %v603, 32
      %v1572 = vpop.permute.xlu0 %1571
      %1573 = vrot.lane.b32.xlu0 %v608, 32
      %v1574 = vpop.permute.xlu0 %1573
      %v1580 = vsel %vm611, %v1563, 0
      %v1583 = vsel %vm611, %v1564, 0
      %v1586 = vsel %vm611, %v1565, 0
      %v1589 = vsel %vm611, %v1566, 0
      %1591 = vmatprep.subr.mxu0 0.0
      %1592 = vmatpush1.msra.mxu0 %v1568
      %1593 = vmatprep.subr.mxu0 0.0
      %1594 = vmatpush1.msra.mxu0 %v1570
      %1595 = vmatprep.subr.mxu0 0.0
      %1596 = vmatpush1.msra.mxu0 %v1572
      %1597 = vmatprep.subr.mxu0 0.0
      %1598 = vmatpush1.msra.mxu0 %v1574
      %1599 = vmatprep.subr.mxu0 0.0
      %1600 = vmatpush1.msra.mxu0 0.0
      %1601 = vmatprep.subr.mxu0 0.0
      %1602 = vmatpush1.msra.mxu0 0.0
      %1603 = vmatprep.subr.mxu0 0.0
      %1604 = vmatpush1.msra.mxu0 0.0
      %1605 = vmatprep.subr.mxu0 0.0
      %1606 = vmatpush1.msra.mxu0 0.0
      %1607 = vmatprep.subr.mxu0 0.0
      %1608 = vmatpush1.msra.mxu0 0.0
      %1609 = vmatprep.subr.mxu0 0.0
      %1610 = vmatpush1.msra.mxu0 0.0
      %1611 = vmatprep.subr.mxu0 0.0
      %1612 = vmatpush1.msra.mxu0 0.0
      %1613 = vmatprep.subr.mxu0 0.0
      %1614 = vmatpush1.msra.mxu0 0.0
      %1615 = vmatprep.subr.mxu0 0.0
      %1616 = vmatpush1.msra.mxu0 0.0
      %1617 = vmatprep.subr.mxu0 0.0
      %1618 = vmatpush1.msra.mxu0 0.0
      %1619 = vmatprep.subr.mxu0 0.0
      %1620 = vmatpush1.msra.mxu0 0.0
      %1621 = vmatprep.subr.mxu0 0.0
      %1622 = vmatpush1.msra.mxu0 0.0
      %1623 = vmatprep.subr.mxu0 0.0
      %1624 = vmatpush1.msra.mxu0 0.0
      %1625 = vmatprep.subr.mxu0 0.0
      %1626 = vmatpush1.msra.mxu0 0.0
      %1627 = vmatprep.subr.mxu0 0.0
      %1628 = vmatpush1.msra.mxu0 0.0
      %1629 = vmatprep.subr.mxu0 0.0
      %1630 = vmatpush1.msra.mxu0 0.0
      %1631 = vmatprep.subr.mxu0 0.0
      %1632 = vmatpush1.msra.mxu0 0.0
      %1633 = vmatprep.subr.mxu0 0.0
      %1634 = vmatpush1.msra.mxu0 0.0
      %1635 = vmatprep.subr.mxu0 0.0
      %1636 = vmatpush1.msra.mxu0 0.0
      %1637 = vmatprep.subr.mxu0 0.0
      %1638 = vmatpush1.msra.mxu0 0.0
      %1639 = vmatprep.subr.mxu0 0.0
      %1640 = vmatpush1.msra.mxu0 0.0
      %1641 = vmatprep.subr.mxu0 0.0
      %1642 = vmatpush1.msra.mxu0 0.0
      %1643 = vmatprep.subr.mxu0 0.0
      %1644 = vmatpush1.msra.mxu0 0.0
      %1645 = vmatprep.subr.mxu0 0.0
      %1646 = vmatpush1.msra.mxu0 0.0
      %1647 = vmatprep.subr.mxu0 0.0
      %1648 = vmatpush1.msra.mxu0 0.0
      %1649 = vmatprep.subr.mxu0 0.0
      %1650 = vmatpush1.msra.mxu0 0.0
      %1651 = vmatprep.subr.mxu0 0.0
      %1652 = vmatpush1.msra.mxu0 0.0
      %1653 = vmatprep.subr.mxu0 0.0
      %1654 = vmatpush1.msra.mxu0 0.0
      %1655 = vmatprep.mubr.f32.mxu0 0.0
      %1656 = vmatmul.mubr.f32.gmra.mrb[0].mxu0 %v1580
      %v1657 = vpop.f32.mrb[0].mxu0
      %v1658 = vadd.f32 0.0, %v1657
      %v1659 = vpop.f32.mrb[0].mxu0
      %1660 = vmatprep.mubr.f32.mxu0 0.0
      %1661 = vmatmul.mubr.f32.gmra.mrb[0].mxu0 %v1583
      %v1662 = vpop.f32.mrb[0].mxu0
      %v1663 = vadd.f32 0.0, %v1662
      %v1664 = vpop.f32.mrb[0].mxu0
      %1665 = vmatprep.mubr.f32.mxu0 0.0
      %1666 = vmatmul.mubr.f32.gmra.mrb[0].mxu0 %v1586
      %v1667 = vpop.f32.mrb[0].mxu0
      %v1668 = vadd.f32 0.0, %v1667
      %v1669 = vpop.f32.mrb[0].mxu0
      %1670 = vmatprep.mubr.f32.mxu0 0.0
      %1671 = vmatmul.mubr.f32.gmra.mrb[0].mxu0 %v1589
      %v1672 = vpop.f32.mrb[0].mxu0
      %v1673 = vadd.f32 0.0, %v1672
      %v1674 = vpop.f32.mrb[0].mxu0
      %1675 = vdwg.mxu0
      %1680 = vrot.lane.b32.xlu0 %v1118, 32
      %v1681 = vpop.permute.xlu0 %1680
      %1682 = vrot.lane.b32.xlu0 %v1123, 32
      %v1683 = vpop.permute.xlu0 %1682
      %1684 = vrot.lane.b32.xlu0 %v1128, 32
      %v1685 = vpop.permute.xlu0 %1684
      %1686 = vrot.lane.b32.xlu0 %v1133, 32
      %v1687 = vpop.permute.xlu0 %1686
      %1696 = vrot.lane.b32.xlu0 %v1388, 64
      %v1697 = vpop.permute.xlu0 %1696
      %1698 = vrot.lane.b32.xlu0 %v1393, 64
      %v1699 = vpop.permute.xlu0 %1698
      %1700 = vrot.lane.b32.xlu0 %v1398, 64
      %v1701 = vpop.permute.xlu0 %1700
      %1702 = vrot.lane.b32.xlu0 %v1403, 64
      %v1703 = vpop.permute.xlu0 %1702
      %1712 = vrot.lane.b32.xlu0 %v1658, 96
      %v1713 = vpop.permute.xlu0 %1712
      %1714 = vrot.lane.b32.xlu0 %v1663, 96
      %v1715 = vpop.permute.xlu0 %1714
      %1716 = vrot.lane.b32.xlu0 %v1668, 96
      %v1717 = vpop.permute.xlu0 %1716
      %1718 = vrot.lane.b32.xlu0 %v1673, 96
      %v1719 = vpop.permute.xlu0 %1718
      %v1724 = vsel %vm611, %v844, %v1681
      %v1725 = vsel %vm611, %v849, %v1683
      %v1726 = vsel %vm611, %v854, %v1685
      %v1727 = vsel %vm611, %v859, %v1687
      %vm1728 = vcmask 523264
      %v1729 = vsel %vm1728, %v1724, %v1697
      %v1730 = vsel %vm1728, %v1725, %v1699
      %v1731 = vsel %vm1728, %v1726, %v1701
      %v1732 = vsel %vm1728, %v1727, %v1703
      %vm1733 = vcmask 785408
      %v1734 = vsel %vm1733, %v1729, %v1713
      %v1735 = vsel %vm1733, %v1730, %v1715
      %v1736 = vsel %vm1733, %v1731, %v1717
      %v1737 = vsel %vm1733, %v1732, %v1719
      %1738 = vst [vmem:[%s278] sm:$0xff] %v1734
      %1739 = vst [vmem:[%s278 + $0x8] sm:$0xff] %v1735
      %1740 = vst [vmem:[%s278 + $0x10] sm:$0xff] %v1736
      %1741 = vst [vmem:[%s278 + $0x18] sm:$0xff] %v1737
      %p1742 = scmp.lt.s32.totalorder %s18, 1
      %s1743 = scalar_select %p1742, %s18, 1
      %s1744 = smul.addr %s1743, 4
      %s1745 = smul.addr %s1744, 8
      %s1746 = scalar_lea.vmem %s7, %s1745
      // Predicated region
      $region49: #{pose_transformer_forward.9} parent=47 // pred_check
        %p1747 = pneg %p188
      $region50: #{pose_transformer_forward.9} parent=47 // pred_check_branch
        %1749 = sbr.rel (%p1747) target = $region52
      $region51: #{pose_transformer_forward.9} parent=47 // pred_region
        _
      $region52: #{pose_transformer_forward.9} parent=47 // pred_fallthru
        _
    $region48: #{pose_transformer_forward.9} parent=5 // pred_fallthru
      _
    %p1750 = scmp.le.s32.totalorder 2, %s13
    // Predicated region
    $region53: #{pose_transformer_forward.9} parent=5 // pred_check
      %p1751 = pneg %p1750
    $region54: #{pose_transformer_forward.9} parent=5 // pred_check_branch
      %1753 = sbr.rel (%p1751) target = $region56
    $region55: #{pose_transformer_forward.9} parent=5 // pred_region
      %s1754 = ssub.s32 %s13, 2
      // Predicated region
      $region57: #{pose_transformer_forward.9} parent=55 // pred_check
        %p1755 = pneg %p194
      $region58: #{pose_transformer_forward.9} parent=55 // pred_check_branch
        %1757 = sbr.rel (%p1755) target = $region60
      $region59: #{pose_transformer_forward.9} parent=55 // pred_region
        %p1758 = scmp.lt.s32.totalorder %s19, 1
        %s1759 = scalar_select %p1758, %s19, 1
        %s1760 = smul.addr %s1759, 4
        %s1761 = smul.addr %s1760, 8
        %s1762 = scalar_lea.vmem %s7, %s1761
      $region60: #{pose_transformer_forward.9} parent=55 // pred_fallthru
        _
    $region56: #{pose_transformer_forward.9} parent=5 // pred_fallthru
      _
  $region6: #{pose_transformer_forward.9} parent=0 // loop_footer
    %s17 = sadd.s32 1, %s13
  $region7: #{pose_transformer_forward.9} parent=0 // loop_footer_branch
    %12 = sbr.rel target = $region3
  $region8: #{pose_transformer_forward.9} parent=0 // loop_exit
    _

// kernel: pose_transformer_forward.11
$region0: #{pose_transformer_forward.11}
  #allocation0 [shape = 'u32[]', space=smem, size = 0x4, offset = 0x4, fixed_abs, tag = 'smem constant byte address 0x4 - core index']
  #allocation1 [shape = 'u32[144,128]{1,0:T(1,128)}', space=vmem, size = 0x12000, scoped, tag = 'internal scratch']
  %s0 = inlined_call_operand.vmem [shape: f32[64,128], index: 0, kind: input, shape index: {}]
  %s1 = inlined_call_operand.vmem [shape: f32[128,256], index: 1, kind: input, shape index: {}]
  %s2 = inlined_call_operand.vmem [shape: f32[1,256], index: 2, kind: input, shape index: {}]
  %s3 = inlined_call_operand.vmem [shape: f32[256,128], index: 3, kind: input, shape index: {}]
  %s4 = inlined_call_operand.vmem [shape: f32[1,128], index: 4, kind: input, shape index: {}]
  %s5 = inlined_call_operand.vmem [shape: f32[1,128], index: 5, kind: input, shape index: {}]
  %s6 = inlined_call_operand.vmem [shape: f32[1,128], index: 6, kind: input, shape index: {}]
  %s7 = inlined_call_operand.vmem [shape: f32[64,128], index: 7, kind: output, shape index: {}]
  %s8 = sld [smem:[#allocation0]]
  $region38: #{pose_transformer_forward.11} parent=0
    _
  %s10 = ssub.s32 1, %s8
  %s11 = scalar_select 0, %s10, %s8
  // Predicated region
  $region2: #{pose_transformer_forward.11} parent=0 // pred_check
    _
  $region3: #{pose_transformer_forward.11} parent=0 // pred_check_branch
    %13 = sbr.rel (0) target = $region5
  $region4: #{pose_transformer_forward.11} parent=0 // pred_region
    _
  $region5: #{pose_transformer_forward.11} parent=0 // pred_fallthru
    _
  // Predicated region
  $region6: #{pose_transformer_forward.11} parent=0 // pred_check
    _
  $region7: #{pose_transformer_forward.11} parent=0 // pred_check_branch
    %15 = sbr.rel (0) target = $region9
  $region8: #{pose_transformer_forward.11} parent=0 // pred_region
    _
  $region9: #{pose_transformer_forward.11} parent=0 // pred_fallthru
    _
  // Predicated region
  $region10: #{pose_transformer_forward.11} parent=0 // pred_check
    _
  $region11: #{pose_transformer_forward.11} parent=0 // pred_check_branch
    %17 = sbr.rel (0) target = $region13
  $region12: #{pose_transformer_forward.11} parent=0 // pred_region
    _
  $region13: #{pose_transformer_forward.11} parent=0 // pred_fallthru
    _
  // Predicated region
  $region14: #{pose_transformer_forward.11} parent=0 // pred_check
    _
  $region15: #{pose_transformer_forward.11} parent=0 // pred_check_branch
    %19 = sbr.rel (0) target = $region17
  $region16: #{pose_transformer_forward.11} parent=0 // pred_region
    _
  $region17: #{pose_transformer_forward.11} parent=0 // pred_fallthru
    _
  // Predicated region
  $region18: #{pose_transformer_forward.11} parent=0 // pred_check
    _
  $region19: #{pose_transformer_forward.11} parent=0 // pred_check_branch
    %21 = sbr.rel (0) target = $region21
  $region20: #{pose_transformer_forward.11} parent=0 // pred_region
    _
  $region21: #{pose_transformer_forward.11} parent=0 // pred_fallthru
    _
  // Predicated region
  $region22: #{pose_transformer_forward.11} parent=0 // pred_check
    _
  $region23: #{pose_transformer_forward.11} parent=0 // pred_check_branch
    %23 = sbr.rel (0) target = $region25
  $region24: #{pose_transformer_forward.11} parent=0 // pred_region
    _
  $region25: #{pose_transformer_forward.11} parent=0 // pred_fallthru
    _
  // Predicated region
  $region26: #{pose_transformer_forward.11} parent=0 // pred_check
    _
  $region27: #{pose_transformer_forward.11} parent=0 // pred_check_branch
    %25 = sbr.rel (0) target = $region29
  $region28: #{pose_transformer_forward.11} parent=0 // pred_region
    _
  $region29: #{pose_transformer_forward.11} parent=0 // pred_fallthru
    _
  %v26 = vld [vmem:[%s0] sm:$0xff]
  %v27 = vld [vmem:[%s0 + $0x8] sm:$0xff]
  %v28 = vld [vmem:[%s0 + $0x10] sm:$0xff]
  %v29 = vld [vmem:[%s0 + $0x18] sm:$0xff]
  %v30 = vld [vmem:[%s0 + $0x20] sm:$0xff]
  %v31 = vld [vmem:[%s0 + $0x28] sm:$0xff]
  %v32 = vld [vmem:[%s0 + $0x30] sm:$0xff]
  %v33 = vld [vmem:[%s0 + $0x38] sm:$0xff]
  %v34 = vld [vmem:[%s1] sm:$0xff]
  %v35 = vld [vmem:[%s1 + $0x8] sm:$0xff]
  %v36 = vld [vmem:[%s1 + $0x10] sm:$0xff]
  %v37 = vld [vmem:[%s1 + $0x18] sm:$0xff]
  %v38 = vld [vmem:[%s1 + $0x20] sm:$0xff]
  %v39 = vld [vmem:[%s1 + $0x28] sm:$0xff]
  %v40 = vld [vmem:[%s1 + $0x30] sm:$0xff]
  %v41 = vld [vmem:[%s1 + $0x38] sm:$0xff]
  %v42 = vld [vmem:[%s1 + $0x40] sm:$0xff]
  %v43 = vld [vmem:[%s1 + $0x48] sm:$0xff]
  %v44 = vld [vmem:[%s1 + $0x50] sm:$0xff]
  %v45 = vld [vmem:[%s1 + $0x58] sm:$0xff]
  %v46 = vld [vmem:[%s1 + $0x60] sm:$0xff]
  %v47 = vld [vmem:[%s1 + $0x68] sm:$0xff]
  %v48 = vld [vmem:[%s1 + $0x70] sm:$0xff]
  %v49 = vld [vmem:[%s1 + $0x78] sm:$0xff]
  %v50 = vld [vmem:[%s1 + $0x80] sm:$0xff]
  %v51 = vld [vmem:[%s1 + $0x88] sm:$0xff]
  %v52 = vld [vmem:[%s1 + $0x90] sm:$0xff]
  %v53 = vld [vmem:[%s1 + $0x98] sm:$0xff]
  %v54 = vld [vmem:[%s1 + $0xa0] sm:$0xff]
  %v55 = vld [vmem:[%s1 + $0xa8] sm:$0xff]
  %v56 = vld [vmem:[%s1 + $0xb0] sm:$0xff]
  %v57 = vld [vmem:[%s1 + $0xb8] sm:$0xff]
  %v58 = vld [vmem:[%s1 + $0xc0] sm:$0xff]
  %v59 = vld [vmem:[%s1 + $0xc8] sm:$0xff]
  %v60 = vld [vmem:[%s1 + $0xd0] sm:$0xff]
  %v61 = vld [vmem:[%s1 + $0xd8] sm:$0xff]
  %v62 = vld [vmem:[%s1 + $0xe0] sm:$0xff]
  %v63 = vld [vmem:[%s1 + $0xe8] sm:$0xff]
  %v64 = vld [vmem:[%s1 + $0xf0] sm:$0xff]
  %v65 = vld [vmem:[%s1 + $0xf8] sm:$0xff]
  %v66 = vld [vmem:[%s2] sm:$0x3]
  %v68 = vlaneseq
  %v69 = vshrl.u32 %v68, 7
  %v70 = vsub.s32 0, %v69
  %v71 = vrot.slane %v66, %v70
  %v72 = vlaneseq
  %v73 = vshrl.u32 %v72, 7
  %v74 = vsub.s32 1, %v73
  %v75 = vrot.slane %v66, %v74
  %78 = vmatprep.subr.mxu0 %v35
  %79 = vmatpush1.msra.mxu0 %v34
  %80 = vmatprep.subr.mxu0 %v37
  %81 = vmatpush1.msra.mxu0 %v36
  %82 = vmatprep.subr.mxu0 %v39
  %83 = vmatpush1.msra.mxu0 %v38
  %84 = vmatprep.subr.mxu0 %v41
  %85 = vmatpush1.msra.mxu0 %v40
  %86 = vmatprep.subr.mxu0 %v43
  %87 = vmatpush1.msra.mxu0 %v42
  %88 = vmatprep.subr.mxu0 %v45
  %89 = vmatpush1.msra.mxu0 %v44
  %90 = vmatprep.subr.mxu0 %v47
  %91 = vmatpush1.msra.mxu0 %v46
  %92 = vmatprep.subr.mxu0 %v49
  %93 = vmatpush1.msra.mxu0 %v48
  %94 = vmatprep.subr.mxu0 %v51
  %95 = vmatpush1.msra.mxu0 %v50
  %96 = vmatprep.subr.mxu0 %v53
  %97 = vmatpush1.msra.mxu0 %v52
  %98 = vmatprep.subr.mxu0 %v55
  %99 = vmatpush1.msra.mxu0 %v54
  %100 = vmatprep.subr.mxu0 %v57
  %101 = vmatpush1.msra.mxu0 %v56
  %102 = vmatprep.subr.mxu0 %v59
  %103 = vmatpush1.msra.mxu0 %v58
  %104 = vmatprep.subr.mxu0 %v61
  %105 = vmatpush1.msra.mxu0 %v60
  %106 = vmatprep.subr.mxu0 %v63
  %107 = vmatpush1.msra.mxu0 %v62
  %108 = vmatprep.subr.mxu0 %v65
  %109 = vmatpush1.msra.mxu0 %v64
  %110 = vmatprep.subr.mxu0 0.0
  %111 = vmatpush1.msra.mxu0 0.0
  %112 = vmatprep.subr.mxu0 0.0
  %113 = vmatpush1.msra.mxu0 0.0
  %114 = vmatprep.subr.mxu0 0.0
  %115 = vmatpush1.msra.mxu0 0.0
  %116 = vmatprep.subr.mxu0 0.0
  %117 = vmatpush1.msra.mxu0 0.0
  %118 = vmatprep.subr.mxu0 0.0
  %119 = vmatpush1.msra.mxu0 0.0
  %120 = vmatprep.subr.mxu0 0.0
  %121 = vmatpush1.msra.mxu0 0.0
  %122 = vmatprep.subr.mxu0 0.0
  %123 = vmatpush1.msra.mxu0 0.0
  %124 = vmatprep.subr.mxu0 0.0
  %125 = vmatpush1.msra.mxu0 0.0
  %126 = vmatprep.subr.mxu0 0.0
  %127 = vmatpush1.msra.mxu0 0.0
  %128 = vmatprep.subr.mxu0 0.0
  %129 = vmatpush1.msra.mxu0 0.0
  %130 = vmatprep.subr.mxu0 0.0
  %131 = vmatpush1.msra.mxu0 0.0
  %132 = vmatprep.subr.mxu0 0.0
  %133 = vmatpush1.msra.mxu0 0.0
  %134 = vmatprep.subr.mxu0 0.0
  %135 = vmatpush1.msra.mxu0 0.0
  %136 = vmatprep.subr.mxu0 0.0
  %137 = vmatpush1.msra.mxu0 0.0
  %138 = vmatprep.subr.mxu0 0.0
  %139 = vmatpush1.msra.mxu0 0.0
  %140 = vmatprep.subr.mxu0 0.0
  %141 = vmatpush1.msra.mxu0 0.0
  %142 = vmatprep.mubr.f32.mxu0 0.0
  %143 = vmatmul.mubr.f32.gmra.mrb[0].mxu0 %v26
  %v144 = vpop.f32.mrb[0].mxu0
  %v145 = vadd.f32 %v71, %v144
  %v146 = vpop.f32.mrb[0].mxu0
  %v147 = vadd.f32 %v75, %v146
  %148 = vmatprep.mubr.f32.mxu0 0.0
  %149 = vmatmul.mubr.f32.gmra.mrb[0].mxu0 %v27
  %v150 = vpop.f32.mrb[0].mxu0
  %v151 = vadd.f32 %v71, %v150
  %v152 = vpop.f32.mrb[0].mxu0
  %v153 = vadd.f32 %v75, %v152
  %154 = vmatprep.mubr.f32.mxu0 0.0
  %155 = vmatmul.mubr.f32.gmra.mrb[0].mxu0 %v28
  %v156 = vpop.f32.mrb[0].mxu0
  %v157 = vadd.f32 %v71, %v156
  %v158 = vpop.f32.mrb[0].mxu0
  %v159 = vadd.f32 %v75, %v158
  %160 = vmatprep.mubr.f32.mxu0 0.0
  %161 = vmatmul.mubr.f32.gmra.mrb[0].mxu0 %v29
  %v162 = vpop.f32.mrb[0].mxu0
  %v163 = vadd.f32 %v71, %v162
  %v164 = vpop.f32.mrb[0].mxu0
  %v165 = vadd.f32 %v75, %v164
  %166 = vmatprep.mubr.f32.mxu0 0.0
  %167 = vmatmul.mubr.f32.gmra.mrb[0].mxu0 %v30
  %v168 = vpop.f32.mrb[0].mxu0
  %v169 = vadd.f32 %v71, %v168
  %v170 = vpop.f32.mrb[0].mxu0
  %v171 = vadd.f32 %v75, %v170
  %172 = vmatprep.mubr.f32.mxu0 0.0
  %173 = vmatmul.mubr.f32.gmra.mrb[0].mxu0 %v31
  %v174 = vpop.f32.mrb[0].mxu0
  %v175 = vadd.f32 %v71, %v174
  %v176 = vpop.f32.mrb[0].mxu0
  %v177 = vadd.f32 %v75, %v176
  %178 = vmatprep.mubr.f32.mxu0 0.0
  %179 = vmatmul.mubr.f32.gmra.mrb[0].mxu0 %v32
  %v180 = vpop.f32.mrb[0].mxu0
  %v181 = vadd.f32 %v71, %v180
  %v182 = vpop.f32.mrb[0].mxu0
  %v183 = vadd.f32 %v75, %v182
  %184 = vmatprep.mubr.f32.mxu0 0.0
  %185 = vmatmul.mubr.f32.gmra.mrb[0].mxu0 %v33
  %v186 = vpop.f32.mrb[0].mxu0
  %v187 = vadd.f32 %v71, %v186
  %v188 = vpop.f32.mrb[0].mxu0
  %v189 = vadd.f32 %v75, %v188
  %190 = vdwg.mxu0
  %v191 = vmax.f32 %v145, 0.0
  %v192 = vmax.f32 %v147, 0.0
  %v193 = vmax.f32 %v151, 0.0
  %v194 = vmax.f32 %v153, 0.0
  %v195 = vmax.f32 %v157, 0.0
  %v196 = vmax.f32 %v159, 0.0
  %v197 = vmax.f32 %v163, 0.0
  %v198 = vmax.f32 %v165, 0.0
  %v199 = vmax.f32 %v169, 0.0
  %v200 = vmax.f32 %v171, 0.0
  %v201 = vmax.f32 %v175, 0.0
  %v202 = vmax.f32 %v177, 0.0
  %v203 = vmax.f32 %v181, 0.0
  %v204 = vmax.f32 %v183, 0.0
  %v205 = vmax.f32 %v187, 0.0
  %v206 = vmax.f32 %v189, 0.0
  %v207 = vld [vmem:[%s3] sm:$0xff]
  %v208 = vld [vmem:[%s3 + $0x8] sm:$0xff]
  %v209 = vld [vmem:[%s3 + $0x10] sm:$0xff]
  %v210 = vld [vmem:[%s3 + $0x18] sm:$0xff]
  %v211 = vld [vmem:[%s3 + $0x20] sm:$0xff]
  %v212 = vld [vmem:[%s3 + $0x28] sm:$0xff]
  %v213 = vld [vmem:[%s3 + $0x30] sm:$0xff]
  %v214 = vld [vmem:[%s3 + $0x38] sm:$0xff]
  %v215 = vld [vmem:[%s3 + $0x40] sm:$0xff]
  %v216 = vld [vmem:[%s3 + $0x48] sm:$0xff]
  %v217 = vld [vmem:[%s3 + $0x50] sm:$0xff]
  %v218 = vld [vmem:[%s3 + $0x58] sm:$0xff]
  %v219 = vld [vmem:[%s3 + $0x60] sm:$0xff]
  %v220 = vld [vmem:[%s3 + $0x68] sm:$0xff]
  %v221 = vld [vmem:[%s3 + $0x70] sm:$0xff]
  %v222 = vld [vmem:[%s3 + $0x78] sm:$0xff]
  %v223 = vld [vmem:[%s3 + $0x80] sm:$0xff]
  %v224 = vld [vmem:[%s3 + $0x88] sm:$0xff]
  %v225 = vld [vmem:[%s3 + $0x90] sm:$0xff]
  %v226 = vld [vmem:[%s3 + $0x98] sm:$0xff]
  %v227 = vld [vmem:[%s3 + $0xa0] sm:$0xff]
  %v228 = vld [vmem:[%s3 + $0xa8] sm:$0xff]
  %v229 = vld [vmem:[%s3 + $0xb0] sm:$0xff]
  %v230 = vld [vmem:[%s3 + $0xb8] sm:$0xff]
  %v231 = vld [vmem:[%s3 + $0xc0] sm:$0xff]
  %v232 = vld [vmem:[%s3 + $0xc8] sm:$0xff]
  %v233 = vld [vmem:[%s3 + $0xd0] sm:$0xff]
  %v234 = vld [vmem:[%s3 + $0xd8] sm:$0xff]
  %v235 = vld [vmem:[%s3 + $0xe0] sm:$0xff]
  %v236 = vld [vmem:[%s3 + $0xe8] sm:$0xff]
  %v237 = vld [vmem:[%s3 + $0xf0] sm:$0xff]
  %v238 = vld [vmem:[%s3 + $0xf8] sm:$0xff]
  %v239 = vld [vmem:[%s4] sm:$0x1]
  %v241 = vlaneseq
  %v242 = vshrl.u32 %v241, 7
  %v243 = vsub.s32 0, %v242
  %v244 = vrot.slane %v239, %v243
  %246 = vmatprep.subr.mxu0 0.0
  %247 = vmatpush1.msra.mxu0 %v207
  %248 = vmatprep.subr.mxu0 0.0
  %249 = vmatpush1.msra.mxu0 %v208
  %250 = vmatprep.subr.mxu0 0.0
  %251 = vmatpush1.msra.mxu0 %v209
  %252 = vmatprep.subr.mxu0 0.0
  %253 = vmatpush1.msra.mxu0 %v210
  %254 = vmatprep.subr.mxu0 0.0
  %255 = vmatpush1.msra.mxu0 %v211
  %256 = vmatprep.subr.mxu0 0.0
  %257 = vmatpush1.msra.mxu0 %v212
  %258 = vmatprep.subr.mxu0 0.0
  %259 = vmatpush1.msra.mxu0 %v213
  %260 = vmatprep.subr.mxu0 0.0
  %261 = vmatpush1.msra.mxu0 %v214
  %262 = vmatprep.subr.mxu0 0.0
  %263 = vmatpush1.msra.mxu0 %v215
  %264 = vmatprep.subr.mxu0 0.0
  %265 = vmatpush1.msra.mxu0 %v216
  %266 = vmatprep.subr.mxu0 0.0
  %267 = vmatpush1.msra.mxu0 %v217
  %268 = vmatprep.subr.mxu0 0.0
  %269 = vmatpush1.msra.mxu0 %v218
  %270 = vmatprep.subr.mxu0 0.0
  %271 = vmatpush1.msra.mxu0 %v219
  %272 = vmatprep.subr.mxu0 0.0
  %273 = vmatpush1.msra.mxu0 %v220
  %274 = vmatprep.subr.mxu0 0.0
  %275 = vmatpush1.msra.mxu0 %v221
  %276 = vmatprep.subr.mxu0 0.0
  %277 = vmatpush1.msra.mxu0 %v222
  %278 = vmatprep.subr.mxu0 0.0
  %279 = vmatpush1.msra.mxu0 %v223
  %280 = vmatprep.subr.mxu0 0.0
  %281 = vmatpush1.msra.mxu0 %v224
  %282 = vmatprep.subr.mxu0 0.0
  %283 = vmatpush1.msra.mxu0 %v225
  %284 = vmatprep.subr.mxu0 0.0
  %285 = vmatpush1.msra.mxu0 %v226
  %286 = vmatprep.subr.mxu0 0.0
  %287 = vmatpush1.msra.mxu0 %v227
  %288 = vmatprep.subr.mxu0 0.0
  %289 = vmatpush1.msra.mxu0 %v228
  %290 = vmatprep.subr.mxu0 0.0
  %291 = vmatpush1.msra.mxu0 %v229
  %292 = vmatprep.subr.mxu0 0.0
  %293 = vmatpush1.msra.mxu0 %v230
  %294 = vmatprep.subr.mxu0 0.0
  %295 = vmatpush1.msra.mxu0 %v231
  %296 = vmatprep.subr.mxu0 0.0
  %297 = vmatpush1.msra.mxu0 %v232
  %298 = vmatprep.subr.mxu0 0.0
  %299 = vmatpush1.msra.mxu0 %v233
  %300 = vmatprep.subr.mxu0 0.0
  %301 = vmatpush1.msra.mxu0 %v234
  %302 = vmatprep.subr.mxu0 0.0
  %303 = vmatpush1.msra.mxu0 %v235
  %304 = vmatprep.subr.mxu0 0.0
  %305 = vmatpush1.msra.mxu0 %v236
  %306 = vmatprep.subr.mxu0 0.0
  %307 = vmatpush1.msra.mxu0 %v237
  %308 = vmatprep.subr.mxu0 0.0
  %309 = vmatpush1.msra.mxu0 %v238
  %310 = vmatprep.mubr.f32.mxu0 %v192
  %311 = vmatmul.mubr.f32.gmra.mrb[0].mxu0 %v191
  %v312 = vpop.f32.mrb[0].mxu0
  %v313 = vadd.f32 %v244, %v312
  %v314 = vpop.f32.mrb[0].mxu0
  %315 = vmatprep.mubr.f32.mxu0 %v194
  %316 = vmatmul.mubr.f32.gmra.mrb[0].mxu0 %v193
  %v317 = vpop.f32.mrb[0].mxu0
  %v318 = vadd.f32 %v244, %v317
  %v319 = vpop.f32.mrb[0].mxu0
  %320 = vmatprep.mubr.f32.mxu0 %v196
  %321 = vmatmul.mubr.f32.gmra.mrb[0].mxu0 %v195
  %v322 = vpop.f32.mrb[0].mxu0
  %v323 = vadd.f32 %v244, %v322
  %v324 = vpop.f32.mrb[0].mxu0
  %325 = vmatprep.mubr.f32.mxu0 %v198
  %326 = vmatmul.mubr.f32.gmra.mrb[0].mxu0 %v197
  %v327 = vpop.f32.mrb[0].mxu0
  %v328 = vadd.f32 %v244, %v327
  %v329 = vpop.f32.mrb[0].mxu0
  %330 = vmatprep.mubr.f32.mxu0 %v200
  %331 = vmatmul.mubr.f32.gmra.mrb[0].mxu0 %v199
  %v332 = vpop.f32.mrb[0].mxu0
  %v333 = vadd.f32 %v244, %v332
  %v334 = vpop.f32.mrb[0].mxu0
  %335 = vmatprep.mubr.f32.mxu0 %v202
  %336 = vmatmul.mubr.f32.gmra.mrb[0].mxu0 %v201
  %v337 = vpop.f32.mrb[0].mxu0
  %v338 = vadd.f32 %v244, %v337
  %v339 = vpop.f32.mrb[0].mxu0
  %340 = vmatprep.mubr.f32.mxu0 %v204
  %341 = vmatmul.mubr.f32.gmra.mrb[0].mxu0 %v203
  %v342 = vpop.f32.mrb[0].mxu0
  %v343 = vadd.f32 %v244, %v342
  %v344 = vpop.f32.mrb[0].mxu0
  %345 = vmatprep.mubr.f32.mxu0 %v206
  %346 = vmatmul.mubr.f32.gmra.mrb[0].mxu0 %v205
  %v347 = vpop.f32.mrb[0].mxu0
  %v348 = vadd.f32 %v244, %v347
  %v349 = vpop.f32.mrb[0].mxu0
  %350 = vdwg.mxu0
  %v351 = vadd.f32 %v313, %v26
  %v352 = vadd.f32 %v318, %v27
  %v353 = vadd.f32 %v323, %v28
  %v354 = vadd.f32 %v328, %v29
  %v355 = vadd.f32 %v333, %v30
  %v356 = vadd.f32 %v338, %v31
  %v357 = vadd.f32 %v343, %v32
  %v358 = vadd.f32 %v348, %v33
  %359 = vadd.xlane.f32.xlu0 %v351
  %v360 = vpop.xlane.xlu0 %359
  %361 = vadd.xlane.f32.xlu0 %v352
  %v362 = vpop.xlane.xlu0 %361
  %363 = vadd.xlane.f32.xlu0 %v353
  %v364 = vpop.xlane.xlu0 %363
  %365 = vadd.xlane.f32.xlu0 %v354
  %v366 = vpop.xlane.xlu0 %365
  %367 = vadd.xlane.f32.xlu0 %v355
  %v368 = vpop.xlane.xlu0 %367
  %369 = vadd.xlane.f32.xlu0 %v356
  %v370 = vpop.xlane.xlu0 %369
  %371 = vadd.xlane.f32.xlu0 %v357
  %v372 = vpop.xlane.xlu0 %371
  %373 = vadd.xlane.f32.xlu0 %v358
  %v374 = vpop.xlane.xlu0 %373
  %v375 = vrcp.pop 128.0
  %v376 = vmul.f32 %v360, %v375
  %v377 = vmul.f32 %v362, %v375
  %v378 = vmul.f32 %v364, %v375
  %v379 = vmul.f32 %v366, %v375
  %v380 = vmul.f32 %v368, %v375
  %v381 = vmul.f32 %v370, %v375
  %v382 = vmul.f32 %v372, %v375
  %v383 = vmul.f32 %v374, %v375
  %v384 = vsub.f32 %v351, %v376
  %v385 = vsub.f32 %v352, %v377
  %v386 = vsub.f32 %v353, %v378
  %v387 = vsub.f32 %v354, %v379
  %v388 = vsub.f32 %v355, %v380
  %v389 = vsub.f32 %v356, %v381
  %v390 = vsub.f32 %v357, %v382
  %v391 = vsub.f32 %v358, %v383
  %v392 = vmul.f32 %v384, %v384
  %v393 = vmul.f32 %v385, %v385
  %v394 = vmul.f32 %v386, %v386
  %v395 = vmul.f32 %v387, %v387
  %v396 = vmul.f32 %v388, %v388
  %v397 = vmul.f32 %v389, %v389
  %v398 = vmul.f32 %v390, %v390
  %v399 = vmul.f32 %v391, %v391
  %400 = vadd.xlane.f32.xlu0 %v392
  %v401 = vpop.xlane.xlu0 %400
  %402 = vadd.xlane.f32.xlu0 %v393
  %v403 = vpop.xlane.xlu0 %402
  %404 = vadd.xlane.f32.xlu0 %v394
  %v405 = vpop.xlane.xlu0 %404
  %406 = vadd.xlane.f32.xlu0 %v395
  %v407 = vpop.xlane.xlu0 %406
  %408 = vadd.xlane.f32.xlu0 %v396
  %v409 = vpop.xlane.xlu0 %408
  %410 = vadd.xlane.f32.xlu0 %v397
  %v411 = vpop.xlane.xlu0 %410
  %412 = vadd.xlane.f32.xlu0 %v398
  %v413 = vpop.xlane.xlu0 %412
  %414 = vadd.xlane.f32.xlu0 %v399
  %v415 = vpop.xlane.xlu0 %414
  %v416 = vmul.f32 %v401, %v375
  %v417 = vmul.f32 %v403, %v375
  %v418 = vmul.f32 %v405, %v375
  %v419 = vmul.f32 %v407, %v375
  %v420 = vmul.f32 %v409, %v375
  %v421 = vmul.f32 %v411, %v375
  %v422 = vmul.f32 %v413, %v375
  %v423 = vmul.f32 %v415, %v375
  %v424 = vadd.f32 %v416, 1e-05
  %v425 = vadd.f32 %v417, 1e-05
  %v426 = vadd.f32 %v418, 1e-05
  %v427 = vadd.f32 %v419, 1e-05
  %v428 = vadd.f32 %v420, 1e-05
  %v429 = vadd.f32 %v421, 1e-05
  %v430 = vadd.f32 %v422, 1e-05
  %v431 = vadd.f32 %v423, 1e-05
  %v432 = vrsqrt.pop %v424
  %v433 = vrsqrt.pop %v425
  %v434 = vrsqrt.pop %v426
  %v435 = vrsqrt.pop %v427
  %v436 = vrsqrt.pop %v428
  %v437 = vrsqrt.pop %v429
  %v438 = vrsqrt.pop %v430
  %v439 = vrsqrt.pop %v431
  %v440 = vmul.f32 %v384, %v432
  %v441 = vmul.f32 %v385, %v433
  %v442 = vmul.f32 %v386, %v434
  %v443 = vmul.f32 %v387, %v435
  %v444 = vmul.f32 %v388, %v436
  %v445 = vmul.f32 %v389, %v437
  %v446 = vmul.f32 %v390, %v438
  %v447 = vmul.f32 %v391, %v439
  %v448 = vld [vmem:[%s5] sm:$0x1]
  %v450 = vlaneseq
  %v451 = vshrl.u32 %v450, 7
  %v452 = vsub.s32 0, %v451
  %v453 = vrot.slane %v448, %v452
  %v455 = vmul.f32 %v440, %v453
  %v456 = vmul.f32 %v441, %v453
  %v457 = vmul.f32 %v442, %v453
  %v458 = vmul.f32 %v443, %v453
  %v459 = vmul.f32 %v444, %v453
  %v460 = vmul.f32 %v445, %v453
  %v461 = vmul.f32 %v446, %v453
  %v462 = vmul.f32 %v447, %v453
  %v463 = vld [vmem:[%s6] sm:$0x1]
  %v465 = vlaneseq
  %v466 = vshrl.u32 %v465, 7
  %v467 = vsub.s32 0, %v466
  %v468 = vrot.slane %v463, %v467
  %v470 = vadd.f32 %v455, %v468
  %v471 = vadd.f32 %v456, %v468
  %v472 = vadd.f32 %v457, %v468
  %v473 = vadd.f32 %v458, %v468
  %v474 = vadd.f32 %v459, %v468
  %v475 = vadd.f32 %v460, %v468
  %v476 = vadd.f32 %v461, %v468
  %v477 = vadd.f32 %v462, %v468
  %478 = vst [vmem:[%s7] sm:$0xff] %v470
  %479 = vst [vmem:[%s7 + $0x8] sm:$0xff] %v471
  %480 = vst [vmem:[%s7 + $0x10] sm:$0xff] %v472
  %481 = vst [vmem:[%s7 + $0x18] sm:$0xff] %v473
  %482 = vst [vmem:[%s7 + $0x20] sm:$0xff] %v474
  %483 = vst [vmem:[%s7 + $0x28] sm:$0xff] %v475
  %484 = vst [vmem:[%s7 + $0x30] sm:$0xff] %v476
  %485 = vst [vmem:[%s7 + $0x38] sm:$0xff] %v477
  // Predicated region
  $region30: #{pose_transformer_forward.11} parent=0 // pred_check
    _
  $region31: #{pose_transformer_forward.11} parent=0 // pred_check_branch
    %487 = sbr.rel (0) target = $region33
  $region32: #{pose_transformer_forward.11} parent=0 // pred_region
    _
  $region33: #{pose_transformer_forward.11} parent=0 // pred_fallthru
    _
  // Predicated region
  $region34: #{pose_transformer_forward.11} parent=0 // pred_check
    _
  $region35: #{pose_transformer_forward.11} parent=0 // pred_check_branch
    %489 = sbr.rel (0) target = $region37
  $region36: #{pose_transformer_forward.11} parent=0 // pred_region
    _
  $region37: #{pose_transformer_forward.11} parent=0 // pred_fallthru
    _

// kernel: pose_transformer_forward.15
$region0: #{pose_transformer_forward.15}
  #allocation0 [shape = 'u32[]', space=smem, size = 0x4, offset = 0x4, fixed_abs, tag = 'smem constant byte address 0x4 - core index']
  #allocation1 [shape = 'u32[144,128]{1,0:T(1,128)}', space=vmem, size = 0x12000, scoped, tag = 'internal scratch']
  %s0 = inlined_call_operand.vmem [shape: f32[64,128], index: 0, kind: input, shape index: {}]
  %s1 = inlined_call_operand.vmem [shape: f32[128,128], index: 1, kind: input, shape index: {}]
  %s2 = inlined_call_operand.vmem [shape: f32[1,128], index: 2, kind: input, shape index: {}]
  %s3 = inlined_call_operand.vmem [shape: f32[128,3], index: 3, kind: input, shape index: {}]
  %s4 = inlined_call_operand.vmem [shape: f32[1,3], index: 4, kind: input, shape index: {}]
  %s5 = inlined_call_operand.vmem [shape: f32[64,3], index: 5, kind: output, shape index: {}]
  %s6 = sld [smem:[#allocation0]]
  $region30: #{pose_transformer_forward.15} parent=0
    _
  %s8 = ssub.s32 1, %s6
  %s9 = scalar_select 0, %s8, %s6
  // Predicated region
  $region2: #{pose_transformer_forward.15} parent=0 // pred_check
    _
  $region3: #{pose_transformer_forward.15} parent=0 // pred_check_branch
    %11 = sbr.rel (0) target = $region5
  $region4: #{pose_transformer_forward.15} parent=0 // pred_region
    _
  $region5: #{pose_transformer_forward.15} parent=0 // pred_fallthru
    _
  // Predicated region
  $region6: #{pose_transformer_forward.15} parent=0 // pred_check
    _
  $region7: #{pose_transformer_forward.15} parent=0 // pred_check_branch
    %13 = sbr.rel (0) target = $region9
  $region8: #{pose_transformer_forward.15} parent=0 // pred_region
    _
  $region9: #{pose_transformer_forward.15} parent=0 // pred_fallthru
    _
  // Predicated region
  $region10: #{pose_transformer_forward.15} parent=0 // pred_check
    _
  $region11: #{pose_transformer_forward.15} parent=0 // pred_check_branch
    %15 = sbr.rel (0) target = $region13
  $region12: #{pose_transformer_forward.15} parent=0 // pred_region
    _
  $region13: #{pose_transformer_forward.15} parent=0 // pred_fallthru
    _
  // Predicated region
  $region14: #{pose_transformer_forward.15} parent=0 // pred_check
    _
  $region15: #{pose_transformer_forward.15} parent=0 // pred_check_branch
    %17 = sbr.rel (0) target = $region17
  $region16: #{pose_transformer_forward.15} parent=0 // pred_region
    _
  $region17: #{pose_transformer_forward.15} parent=0 // pred_fallthru
    _
  // Predicated region
  $region18: #{pose_transformer_forward.15} parent=0 // pred_check
    _
  $region19: #{pose_transformer_forward.15} parent=0 // pred_check_branch
    %19 = sbr.rel (0) target = $region21
  $region20: #{pose_transformer_forward.15} parent=0 // pred_region
    _
  $region21: #{pose_transformer_forward.15} parent=0 // pred_fallthru
    _
  %v20 = vld [vmem:[%s0] sm:$0xff]
  %v21 = vld [vmem:[%s0 + $0x8] sm:$0xff]
  %v22 = vld [vmem:[%s0 + $0x10] sm:$0xff]
  %v23 = vld [vmem:[%s0 + $0x18] sm:$0xff]
  %v24 = vld [vmem:[%s0 + $0x20] sm:$0xff]
  %v25 = vld [vmem:[%s0 + $0x28] sm:$0xff]
  %v26 = vld [vmem:[%s0 + $0x30] sm:$0xff]
  %v27 = vld [vmem:[%s0 + $0x38] sm:$0xff]
  %v28 = vld [vmem:[%s1] sm:$0xff]
  %v29 = vld [vmem:[%s1 + $0x8] sm:$0xff]
  %v30 = vld [vmem:[%s1 + $0x10] sm:$0xff]
  %v31 = vld [vmem:[%s1 + $0x18] sm:$0xff]
  %v32 = vld [vmem:[%s1 + $0x20] sm:$0xff]
  %v33 = vld [vmem:[%s1 + $0x28] sm:$0xff]
  %v34 = vld [vmem:[%s1 + $0x30] sm:$0xff]
  %v35 = vld [vmem:[%s1 + $0x38] sm:$0xff]
  %v36 = vld [vmem:[%s1 + $0x40] sm:$0xff]
  %v37 = vld [vmem:[%s1 + $0x48] sm:$0xff]
  %v38 = vld [vmem:[%s1 + $0x50] sm:$0xff]
  %v39 = vld [vmem:[%s1 + $0x58] sm:$0xff]
  %v40 = vld [vmem:[%s1 + $0x60] sm:$0xff]
  %v41 = vld [vmem:[%s1 + $0x68] sm:$0xff]
  %v42 = vld [vmem:[%s1 + $0x70] sm:$0xff]
  %v43 = vld [vmem:[%s1 + $0x78] sm:$0xff]
  %v44 = vld [vmem:[%s2] sm:$0x1]
  %v46 = vlaneseq
  %v47 = vshrl.u32 %v46, 7
  %v48 = vsub.s32 0, %v47
  %v49 = vrot.slane %v44, %v48
  %51 = vmatprep.subr.mxu0 0.0
  %52 = vmatpush1.msra.mxu0 %v28
  %53 = vmatprep.subr.mxu0 0.0
  %54 = vmatpush1.msra.mxu0 %v29
  %55 = vmatprep.subr.mxu0 0.0
  %56 = vmatpush1.msra.mxu0 %v30
  %57 = vmatprep.subr.mxu0 0.0
  %58 = vmatpush1.msra.mxu0 %v31
  %59 = vmatprep.subr.mxu0 0.0
  %60 = vmatpush1.msra.mxu0 %v32
  %61 = vmatprep.subr.mxu0 0.0
  %62 = vmatpush1.msra.mxu0 %v33
  %63 = vmatprep.subr.mxu0 0.0
  %64 = vmatpush1.msra.mxu0 %v34
  %65 = vmatprep.subr.mxu0 0.0
  %66 = vmatpush1.msra.mxu0 %v35
  %67 = vmatprep.subr.mxu0 0.0
  %68 = vmatpush1.msra.mxu0 %v36
  %69 = vmatprep.subr.mxu0 0.0
  %70 = vmatpush1.msra.mxu0 %v37
  %71 = vmatprep.subr.mxu0 0.0
  %72 = vmatpush1.msra.mxu0 %v38
  %73 = vmatprep.subr.mxu0 0.0
  %74 = vmatpush1.msra.mxu0 %v39
  %75 = vmatprep.subr.mxu0 0.0
  %76 = vmatpush1.msra.mxu0 %v40
  %77 = vmatprep.subr.mxu0 0.0
  %78 = vmatpush1.msra.mxu0 %v41
  %79 = vmatprep.subr.mxu0 0.0
  %80 = vmatpush1.msra.mxu0 %v42
  %81 = vmatprep.subr.mxu0 0.0
  %82 = vmatpush1.msra.mxu0 %v43
  %83 = vmatprep.subr.mxu0 0.0
  %84 = vmatpush1.msra.mxu0 0.0
  %85 = vmatprep.subr.mxu0 0.0
  %86 = vmatpush1.msra.mxu0 0.0
  %87 = vmatprep.subr.mxu0 0.0
  %88 = vmatpush1.msra.mxu0 0.0
  %89 = vmatprep.subr.mxu0 0.0
  %90 = vmatpush1.msra.mxu0 0.0
  %91 = vmatprep.subr.mxu0 0.0
  %92 = vmatpush1.msra.mxu0 0.0
  %93 = vmatprep.subr.mxu0 0.0
  %94 = vmatpush1.msra.mxu0 0.0
  %95 = vmatprep.subr.mxu0 0.0
  %96 = vmatpush1.msra.mxu0 0.0
  %97 = vmatprep.subr.mxu0 0.0
  %98 = vmatpush1.msra.mxu0 0.0
  %99 = vmatprep.subr.mxu0 0.0
  %100 = vmatpush1.msra.mxu0 0.0
  %101 = vmatprep.subr.mxu0 0.0
  %102 = vmatpush1.msra.mxu0 0.0
  %103 = vmatprep.subr.mxu0 0.0
  %104 = vmatpush1.msra.mxu0 0.0
  %105 = vmatprep.subr.mxu0 0.0
  %106 = vmatpush1.msra.mxu0 0.0
  %107 = vmatprep.subr.mxu0 0.0
  %108 = vmatpush1.msra.mxu0 0.0
  %109 = vmatprep.subr.mxu0 0.0
  %110 = vmatpush1.msra.mxu0 0.0
  %111 = vmatprep.subr.mxu0 0.0
  %112 = vmatpush1.msra.mxu0 0.0
  %113 = vmatprep.subr.mxu0 0.0
  %114 = vmatpush1.msra.mxu0 0.0
  %115 = vmatprep.mubr.f32.mxu0 0.0
  %116 = vmatmul.mubr.f32.gmra.mrb[0].mxu0 %v20
  %v117 = vpop.f32.mrb[0].mxu0
  %v118 = vadd.f32 %v49, %v117
  %v119 = vpop.f32.mrb[0].mxu0
  %120 = vmatprep.mubr.f32.mxu0 0.0
  %121 = vmatmul.mubr.f32.gmra.mrb[0].mxu0 %v21
  %v122 = vpop.f32.mrb[0].mxu0
  %v123 = vadd.f32 %v49, %v122
  %v124 = vpop.f32.mrb[0].mxu0
  %125 = vmatprep.mubr.f32.mxu0 0.0
  %126 = vmatmul.mubr.f32.gmra.mrb[0].mxu0 %v22
  %v127 = vpop.f32.mrb[0].mxu0
  %v128 = vadd.f32 %v49, %v127
  %v129 = vpop.f32.mrb[0].mxu0
  %130 = vmatprep.mubr.f32.mxu0 0.0
  %131 = vmatmul.mubr.f32.gmra.mrb[0].mxu0 %v23
  %v132 = vpop.f32.mrb[0].mxu0
  %v133 = vadd.f32 %v49, %v132
  %v134 = vpop.f32.mrb[0].mxu0
  %135 = vmatprep.mubr.f32.mxu0 0.0
  %136 = vmatmul.mubr.f32.gmra.mrb[0].mxu0 %v24
  %v137 = vpop.f32.mrb[0].mxu0
  %v138 = vadd.f32 %v49, %v137
  %v139 = vpop.f32.mrb[0].mxu0
  %140 = vmatprep.mubr.f32.mxu0 0.0
  %141 = vmatmul.mubr.f32.gmra.mrb[0].mxu0 %v25
  %v142 = vpop.f32.mrb[0].mxu0
  %v143 = vadd.f32 %v49, %v142
  %v144 = vpop.f32.mrb[0].mxu0
  %145 = vmatprep.mubr.f32.mxu0 0.0
  %146 = vmatmul.mubr.f32.gmra.mrb[0].mxu0 %v26
  %v147 = vpop.f32.mrb[0].mxu0
  %v148 = vadd.f32 %v49, %v147
  %v149 = vpop.f32.mrb[0].mxu0
  %150 = vmatprep.mubr.f32.mxu0 0.0
  %151 = vmatmul.mubr.f32.gmra.mrb[0].mxu0 %v27
  %v152 = vpop.f32.mrb[0].mxu0
  %v153 = vadd.f32 %v49, %v152
  %v154 = vpop.f32.mrb[0].mxu0
  %155 = vdwg.mxu0
  %v156 = vmax.f32 %v118, 0.0
  %v157 = vmax.f32 %v123, 0.0
  %v158 = vmax.f32 %v128, 0.0
  %v159 = vmax.f32 %v133, 0.0
  %v160 = vmax.f32 %v138, 0.0
  %v161 = vmax.f32 %v143, 0.0
  %v162 = vmax.f32 %v148, 0.0
  %v163 = vmax.f32 %v153, 0.0
  %v164 = vld [vmem:[%s3] sm:$0xff]
  %v165 = vld [vmem:[%s3 + $0x8] sm:$0xff]
  %v166 = vld [vmem:[%s3 + $0x10] sm:$0xff]
  %v167 = vld [vmem:[%s3 + $0x18] sm:$0xff]
  %v168 = vld [vmem:[%s3 + $0x20] sm:$0xff]
  %v169 = vld [vmem:[%s3 + $0x28] sm:$0xff]
  %v170 = vld [vmem:[%s3 + $0x30] sm:$0xff]
  %v171 = vld [vmem:[%s3 + $0x38] sm:$0xff]
  %v172 = vld [vmem:[%s3 + $0x40] sm:$0xff]
  %v173 = vld [vmem:[%s3 + $0x48] sm:$0xff]
  %v174 = vld [vmem:[%s3 + $0x50] sm:$0xff]
  %v175 = vld [vmem:[%s3 + $0x58] sm:$0xff]
  %v176 = vld [vmem:[%s3 + $0x60] sm:$0xff]
  %v177 = vld [vmem:[%s3 + $0x68] sm:$0xff]
  %v178 = vld [vmem:[%s3 + $0x70] sm:$0xff]
  %v179 = vld [vmem:[%s3 + $0x78] sm:$0xff]
  %v180 = vld [vmem:[%s4] sm:$0x1]
  %v182 = vlaneseq
  %v183 = vshrl.u32 %v182, 7
  %v184 = vsub.s32 0, %v183
  %v185 = vrot.slane %v180, %v184
  %187 = vmatprep.subr.mxu0 0.0
  %188 = vmatpush1.msra.mxu0 %v164
  %189 = vmatprep.subr.mxu0 0.0
  %190 = vmatpush1.msra.mxu0 %v165
  %191 = vmatprep.subr.mxu0 0.0
  %192 = vmatpush1.msra.mxu0 %v166
  %193 = vmatprep.subr.mxu0 0.0
  %194 = vmatpush1.msra.mxu0 %v167
  %195 = vmatprep.subr.mxu0 0.0
  %196 = vmatpush1.msra.mxu0 %v168
  %197 = vmatprep.subr.mxu0 0.0
  %198 = vmatpush1.msra.mxu0 %v169
  %199 = vmatprep.subr.mxu0 0.0
  %200 = vmatpush1.msra.mxu0 %v170
  %201 = vmatprep.subr.mxu0 0.0
  %202 = vmatpush1.msra.mxu0 %v171
  %203 = vmatprep.subr.mxu0 0.0
  %204 = vmatpush1.msra.mxu0 %v172
  %205 = vmatprep.subr.mxu0 0.0
  %206 = vmatpush1.msra.mxu0 %v173
  %207 = vmatprep.subr.mxu0 0.0
  %208 = vmatpush1.msra.mxu0 %v174
  %209 = vmatprep.subr.mxu0 0.0
  %210 = vmatpush1.msra.mxu0 %v175
  %211 = vmatprep.subr.mxu0 0.0
  %212 = vmatpush1.msra.mxu0 %v176
  %213 = vmatprep.subr.mxu0 0.0
  %214 = vmatpush1.msra.mxu0 %v177
  %215 = vmatprep.subr.mxu0 0.0
  %216 = vmatpush1.msra.mxu0 %v178
  %217 = vmatprep.subr.mxu0 0.0
  %218 = vmatpush1.msra.mxu0 %v179
  %219 = vmatprep.subr.mxu0 0.0
  %220 = vmatpush1.msra.mxu0 0.0
  %221 = vmatprep.subr.mxu0 0.0
  %222 = vmatpush1.msra.mxu0 0.0
  %223 = vmatprep.subr.mxu0 0.0
  %224 = vmatpush1.msra.mxu0 0.0
  %225 = vmatprep.subr.mxu0 0.0
  %226 = vmatpush1.msra.mxu0 0.0
  %227 = vmatprep.subr.mxu0 0.0
  %228 = vmatpush1.msra.mxu0 0.0
  %229 = vmatprep.subr.mxu0 0.0
  %230 = vmatpush1.msra.mxu0 0.0
  %231 = vmatprep.subr.mxu0 0.0
  %232 = vmatpush1.msra.mxu0 0.0
  %233 = vmatprep.subr.mxu0 0.0
  %234 = vmatpush1.msra.mxu0 0.0
  %235 = vmatprep.subr.mxu0 0.0
  %236 = vmatpush1.msra.mxu0 0.0
  %237 = vmatprep.subr.mxu0 0.0
  %238 = vmatpush1.msra.mxu0 0.0
  %239 = vmatprep.subr.mxu0 0.0
  %240 = vmatpush1.msra.mxu0 0.0
  %241 = vmatprep.subr.mxu0 0.0
  %242 = vmatpush1.msra.mxu0 0.0
  %243 = vmatprep.subr.mxu0 0.0
  %244 = vmatpush1.msra.mxu0 0.0
  %245 = vmatprep.subr.mxu0 0.0
  %246 = vmatpush1.msra.mxu0 0.0
  %247 = vmatprep.subr.mxu0 0.0
  %248 = vmatpush1.msra.mxu0 0.0
  %249 = vmatprep.subr.mxu0 0.0
  %250 = vmatpush1.msra.mxu0 0.0
  %251 = vmatprep.mubr.f32.mxu0 0.0
  %252 = vmatmul.mubr.f32.gmra.mrb[0].mxu0 %v156
  %v253 = vpop.f32.mrb[0].mxu0
  %v254 = vadd.f32 %v185, %v253
  %v255 = vpop.f32.mrb[0].mxu0
  %256 = vmatprep.mubr.f32.mxu0 0.0
  %257 = vmatmul.mubr.f32.gmra.mrb[0].mxu0 %v157
  %v258 = vpop.f32.mrb[0].mxu0
  %v259 = vadd.f32 %v185, %v258
  %v260 = vpop.f32.mrb[0].mxu0
  %261 = vmatprep.mubr.f32.mxu0 0.0
  %262 = vmatmul.mubr.f32.gmra.mrb[0].mxu0 %v158
  %v263 = vpop.f32.mrb[0].mxu0
  %v264 = vadd.f32 %v185, %v263
  %v265 = vpop.f32.mrb[0].mxu0
  %266 = vmatprep.mubr.f32.mxu0 0.0
  %267 = vmatmul.mubr.f32.gmra.mrb[0].mxu0 %v159
  %v268 = vpop.f32.mrb[0].mxu0
  %v269 = vadd.f32 %v185, %v268
  %v270 = vpop.f32.mrb[0].mxu0
  %271 = vmatprep.mubr.f32.mxu0 0.0
  %272 = vmatmul.mubr.f32.gmra.mrb[0].mxu0 %v160
  %v273 = vpop.f32.mrb[0].mxu0
  %v274 = vadd.f32 %v185, %v273
  %v275 = vpop.f32.mrb[0].mxu0
  %276 = vmatprep.mubr.f32.mxu0 0.0
  %277 = vmatmul.mubr.f32.gmra.mrb[0].mxu0 %v161
  %v278 = vpop.f32.mrb[0].mxu0
  %v279 = vadd.f32 %v185, %v278
  %v280 = vpop.f32.mrb[0].mxu0
  %281 = vmatprep.mubr.f32.mxu0 0.0
  %282 = vmatmul.mubr.f32.gmra.mrb[0].mxu0 %v162
  %v283 = vpop.f32.mrb[0].mxu0
  %v284 = vadd.f32 %v185, %v283
  %v285 = vpop.f32.mrb[0].mxu0
  %286 = vmatprep.mubr.f32.mxu0 0.0
  %287 = vmatmul.mubr.f32.gmra.mrb[0].mxu0 %v163
  %v288 = vpop.f32.mrb[0].mxu0
  %v289 = vadd.f32 %v185, %v288
  %v290 = vpop.f32.mrb[0].mxu0
  %291 = vdwg.mxu0
  %v292 = vmax.f32 %v254, 0.0
  %v293 = vmax.f32 %v259, 0.0
  %v294 = vmax.f32 %v264, 0.0
  %v295 = vmax.f32 %v269, 0.0
  %v296 = vmax.f32 %v274, 0.0
  %v297 = vmax.f32 %v279, 0.0
  %v298 = vmax.f32 %v284, 0.0
  %v299 = vmax.f32 %v289, 0.0
  %vm300 = vcmask 23552
  %301 = vst.msk [vmem:[%s5] sm:$0xff] %vm300, %v292
  %302 = vst.msk [vmem:[%s5 + $0x8] sm:$0xff] %vm300, %v293
  %303 = vst.msk [vmem:[%s5 + $0x10] sm:$0xff] %vm300, %v294
  %304 = vst.msk [vmem:[%s5 + $0x18] sm:$0xff] %vm300, %v295
  %305 = vst.msk [vmem:[%s5 + $0x20] sm:$0xff] %vm300, %v296
  %306 = vst.msk [vmem:[%s5 + $0x28] sm:$0xff] %vm300, %v297
  %307 = vst.msk [vmem:[%s5 + $0x30] sm:$0xff] %vm300, %v298
  %308 = vst.msk [vmem:[%s5 + $0x38] sm:$0xff] %vm300, %v299
  // Predicated region
  $region22: #{pose_transformer_forward.15} parent=0 // pred_check
    _
  $region23: #{pose_transformer_forward.15} parent=0 // pred_check_branch
    %310 = sbr.rel (0) target = $region25
  $region24: #{pose_transformer_forward.15} parent=0 // pred_region
    _
  $region25: #{pose_transformer_forward.15} parent=0 // pred_fallthru
    _
  // Predicated region
  $region26: #{pose_transformer_forward.15} parent=0 // pred_check
    _
  $region27: #{pose_transformer_forward.15} parent=0 // pred_check_branch
    %312 = sbr.rel (0) target = $region29
  $region28: #{pose_transformer_forward.15} parent=0 // pred_region
    _
  $region29: #{pose_transformer_forward.15} parent=0 // pred_fallthru
    _

</llo_original>
